<compile_context>
chip_gen: v6e
topology: v6e:2x2x1
jax: 0.10.0
libtpu: 0.0.40
codegen_flags: <defaults>
</compile_context>

<pallas_src>
import math

import jax
import jax.numpy as jnp
from jax import lax
from jax.experimental import pallas as pl
from jax.experimental.pallas import tpu as pltpu

N_HIDDEN = 51          # real hidden size of the PyTorch module
H_PAD = 128            # padded hidden size: each gate occupies one 128-lane group
HEAD_LAYER = 2         # Linear head reads h_t3 (layer index 2), as in forward()
COMPUTE_UNUSED_LAYERS = False   # layers 4-5 never affect the output
BATCH_TILE = 8         # rows per grid step (f32 sublane count)

_GATE_SCALE = (0.5, 0.5, 1.0, 0.5)   # i, f, g, o ; sigmoid-via-tanh pre-scale folded in


# ---------------------------------------------------------------------------
# Kernel
# ---------------------------------------------------------------------------
def _make_kernel(num_layers, Hp, T):
    """Wavefront-scheduled stack of LSTM cells + deferred linear head."""
    G = 4 * Hp

    def kernel(x_ref, w1x_ref, w1h_ref, *rest):
        # rest = (wcat_2 .. wcat_L, biases, wlin, blin, out)
        out_ref = rest[-1]
        blin_ref = rest[-2]
        wlin_ref = rest[-3]
        b_ref = rest[-4]                       # (L, 1, 4*Hp)
        wcat_refs = rest[:num_layers - 1]      # (2*Hp, 4*Hp) each, layers 2..L

        B = x_ref.shape[0]
        x = x_ref[...]                         # (B, T) batch tile, tiny, loaded once

        # Per-gate post-activation scale/offset.  The 0.5 pre-scale of
        # sigmoid(z) = 0.5*tanh(0.5*z)+0.5 is already folded into the i/f/o
        # weight/bias columns, so each cell needs only ONE tanh over the whole
        # (B, 4*Hp) gate slab plus ONE FMA here.
        lane = lax.broadcasted_iota(jnp.int32, (1, G), 1)
        is_g_gate = (lane >= 2 * Hp) & (lane < 3 * Hp)
        post_scale = jnp.where(is_g_gate, 1.0, 0.5).astype(jnp.float32)
        post_off = jnp.where(is_g_gate, 0.0, 0.5).astype(jnp.float32)

        zeros = jnp.zeros((B, Hp), jnp.float32)
        hs = [zeros] * num_layers
        cs = [zeros] * num_layers
        h3 = [None] * T                        # head input per time step

        # Wavefront (diagonal) schedule: step s evaluates layer l at t = s - l.
        # All cells of one wavefront depend only on the previous wavefront, so
        # their MXU / EUP work interleaves; critical path is T + L - 1 cells.
        for s in range(T + num_layers - 1):
            prev_h = list(hs)                  # state after wavefront s-1
            prev_c = list(cs)
            for l in range(num_layers):
                t = s - l
                if t < 0 or t >= T:
                    continue                   # cell not active at this wavefront
                # Weights are read at their point of use (no long live ranges).
                if l == 0:
                    # Input size is 1: x_t @ Wih1 is a broadcast multiply.
                    gates = (x[:, t:t + 1] * w1x_ref[...]
                             + jnp.dot(prev_h[0], w1h_ref[...],
                                       preferred_element_type=jnp.float32)
                             + b_ref[0])
                else:
                    # Fused K = 2*Hp = 256 contraction (one full-depth MXU pass
                    # on v6e/v7x): [h_{l-1}(t) ; h_l(t-1)] @ [Wih_l ; Whh_l].
                    lhs = jnp.concatenate([prev_h[l - 1], prev_h[l]], axis=-1)
                    gates = (jnp.dot(lhs, wcat_refs[l - 1][...],
                                     preferred_element_type=jnp.float32)
                             + b_ref[l])
                act = jnp.tanh(gates) * post_scale + post_off
                # Gate slices fall exactly on 128-lane boundaries -> free.
                i_g = act[:, 0 * Hp:1 * Hp]
                f_g = act[:, 1 * Hp:2 * Hp]
                g_g = act[:, 2 * Hp:3 * Hp]
                o_g = act[:, 3 * Hp:4 * Hp]
                c_new = f_g * prev_c[l] + i_g * g_g
                h_new = o_g * jnp.tanh(c_new)
                hs[l] = h_new
                cs[l] = c_new
                if l == HEAD_LAYER:
                    h3[t] = h_new              # kept in registers; head applied below

        # Linear head + output assembly, fully outside the recurrent region:
        # one dense store at the end, no masked column stores in the hot loop.
        # TODO(synk): for long T, apply the head per step instead of keeping all
        #             h3(t) live (register pressure grows linearly with T).
        wlin = wlin_ref[...]                                   # (1, Hp)
        col = lax.broadcasted_iota(jnp.int32, (1, T), 1)       # (1, T)
        out = jnp.zeros((B, T), jnp.float32)
        for t in range(T):
            y_t = jnp.sum(h3[t] * wlin, axis=-1, keepdims=True)   # (B, 1)
            out = out + jnp.where(col == t, y_t, 0.0)
        out_ref[...] = out + blin_ref[...]

    return kernel


# ---------------------------------------------------------------------------
# Parameter preparation (zero-padded, gate-aligned, pre-scaled, fused layout)
# ---------------------------------------------------------------------------
def _gate_cols(w, H, Hp):
    """(rows, 4H) -> (rows, 4Hp): each gate's H real columns start its own Hp lane
    group; i/f/o columns pre-scaled by 0.5 (sigmoid-via-tanh identity)."""
    out = jnp.zeros((w.shape[0], 4 * Hp), jnp.float32)
    for g, sc in enumerate(_GATE_SCALE):
        out = out.at[:, g * Hp:g * Hp + H].set(
            sc * w[:, g * H:(g + 1) * H].astype(jnp.float32))
    return out


def _pad_rows(w, rows_pad):
    return jnp.zeros((rows_pad,) + w.shape[1:], w.dtype).at[:w.shape[0]].set(w)


def prepare_kernel_params(params, num_layers):
    """Raw (H=51, torch-derived) params -> kernel weight list.

    Layout (all f32; pads are zero so pad lanes of h/c stay exactly 0):
      w1x    (1, 4*Hp)       layer-1 input weights (input size 1)
      w1h    (Hp, 4*Hp)      layer-1 recurrent weights
      wcat_l (2*Hp, 4*Hp)    layers 2..L: [Wih_l ; Whh_l] stacked for one K=256 dot
      b_all  (L, 1, 4*Hp)    all biases packed in one slab
      wlin   (1, Hp), blin (1, 1)
    """
    H, Hp = N_HIDDEN, H_PAD
    w1x = _gate_cols(params["wih1"], H, Hp)
    w1h = _pad_rows(_gate_cols(params["whh1"], H, Hp), Hp)
    weights = [w1x, w1h]
    for l in range(2, num_layers + 1):
        wih = _pad_rows(_gate_cols(params[f"wih{l}"], H, Hp), Hp)
        whh = _pad_rows(_gate_cols(params[f"whh{l}"], H, Hp), Hp)
        weights.append(jnp.concatenate([wih, whh], axis=0))      # (2*Hp, 4*Hp)
    b_all = jnp.stack([_gate_cols(params[f"b{l}"], H, Hp)
                       for l in range(1, num_layers + 1)], axis=0)   # (L, 1, 4*Hp)
    weights.append(b_all)
    wlin = jnp.zeros((1, Hp), jnp.float32).at[:, :H].set(
        jnp.transpose(params["wlin"]).astype(jnp.float32))
    blin = params["blin"].reshape(1, 1).astype(jnp.float32)
    weights += [wlin, blin]
    return weights


# ---------------------------------------------------------------------------
# Wrapper
# ---------------------------------------------------------------------------
def _replicated_spec(shape):
    zeros = (0,) * len(shape)
    return pl.BlockSpec(shape, lambda i, _z=zeros: _z)


def sequence_one_channel5(x, params):
    """x: (B, T) float32 -> (B, T) float32 (PyTorch forward() with future=0)."""
    B, T = x.shape
    num_layers = 5 if COMPUTE_UNUSED_LAYERS else 3   # layers 4-5 are dead compute
    TB = BATCH_TILE
    Bp = max(TB, ((B + TB - 1) // TB) * TB)

    x_pad = jnp.zeros((Bp, T), jnp.float32).at[:B, :].set(x.astype(jnp.float32))
    weights = prepare_kernel_params(params, num_layers)

    kernel = _make_kernel(num_layers, H_PAD, T)
    grid = (Bp // TB,)   # batch tiles: "parallel" -> sharded across TCs on v7x

    out = pl.pallas_call(
        kernel,
        out_shape=jax.ShapeDtypeStruct((Bp, T), jnp.float32),
        grid=grid,
        in_specs=[pl.BlockSpec((TB, T), lambda i: (i, 0))]
                 + [_replicated_spec(w.shape) for w in weights],
        out_specs=pl.BlockSpec((TB, T), lambda i: (i, 0)),
        compiler_params=pltpu.CompilerParams(dimension_semantics=("parallel",)),
    )(x_pad, *weights)

    return out[:B, :]


# ---------------------------------------------------------------------------
# Deterministic init (torch default U(-1/sqrt(H), 1/sqrt(H)), torch shapes)
# ---------------------------------------------------------------------------
def init_params(key):
    H = N_HIDDEN
    k = 1.0 / math.sqrt(H)
    keys = iter(jax.random.split(key, 32))

    def unif(shape):
        return jax.random.uniform(next(keys), shape, jnp.float32, -k, k)

    params = {}
    in_sizes = [1, H, H, H, H]
    for layer, in_sz in enumerate(in_sizes, start=1):
        w_ih = unif((4 * H, in_sz))                  # torch layout (4H, in)
        w_hh = unif((4 * H, H))                      # torch layout (4H, H)
        b_ih = unif((4 * H,))
        b_hh = unif((4 * H,))
        params[f"wih{layer}"] = jnp.transpose(w_ih)          # (in, 4H)
        params[f"whh{layer}"] = jnp.transpose(w_hh)          # (H, 4H)
        params[f"b{layer}"] = (b_ih + b_hh)[None, :]         # (1, 4H)
    w_lin = unif((1, H))                             # torch Linear(H, 1) weight
    b_lin = unif((1,))
    params["wlin"] = jnp.transpose(w_lin)            # (H, 1)
    params["blin"] = b_lin.reshape(1, 1)             # (1, 1)
    return params


# ---------------------------------------------------------------------------
# Pure-JAX reference (unpadded, H=51, all 5 layers) for correctness checking
# ---------------------------------------------------------------------------
def reference_forward(x, params):
    B, T = x.shape
    H = N_HIDDEN

    def cell(xg, h, c, whh, b):
        gates = xg + h @ whh + b
        i = jax.nn.sigmoid(gates[:, :H])
        f = jax.nn.sigmoid(gates[:, H:2 * H])
        g = jnp.tanh(gates[:, 2 * H:3 * H])
        o = jax.nn.sigmoid(gates[:, 3 * H:])
        cn = f * c + i * g
        return o * jnp.tanh(cn), cn

    hs = [jnp.zeros((B, H), jnp.float32) for _ in range(5)]
    cs = [jnp.zeros((B, H), jnp.float32) for _ in range(5)]
    outs = []
    for t in range(T):
        xt = x[:, t:t + 1]
        hs[0], cs[0] = cell(xt @ params["wih1"], hs[0], cs[0],
                            params["whh1"], params["b1"])
        for l in range(1, 5):
            xg = hs[l - 1] @ params[f"wih{l + 1}"]
            hs[l], cs[l] = cell(xg, hs[l], cs[l],
                                params[f"whh{l + 1}"], params[f"b{l + 1}"])
        outs.append(hs[2] @ params["wlin"] + params["blin"])   # head reads h_t3
    return jnp.concatenate(outs, axis=1)


if __name__ == "__main__":
    key = jax.random.PRNGKey(0)
    pkey, xkey = jax.random.split(key)
    params = init_params(pkey)

    B, T = 4, 8
    x = jax.random.normal(xkey, (B, T), jnp.float32)

    fwd = jax.jit(sequence_one_channel5)
    out = jax.block_until_ready(fwd(x, params))

    ref = reference_forward(x, params)
    assert out.shape == (B, T), out.shape
    assert jnp.allclose(out, ref, atol=5e-4, rtol=5e-4), "mismatch vs JAX reference"

    print("KERNEL_OK")
</pallas_src>

<mosaic_0001>
module attributes {stable_mosaic.version = 11 : i64} {
  func.func @kernel(%arg0: i32, %arg1: memref<8x8xf32, #tpu.memory_space<vmem>>, %arg2: memref<1x512xf32, #tpu.memory_space<vmem>>, %arg3: memref<128x512xf32, #tpu.memory_space<vmem>>, %arg4: memref<256x512xf32, #tpu.memory_space<vmem>>, %arg5: memref<256x512xf32, #tpu.memory_space<vmem>>, %arg6: memref<3x1x512xf32, #tpu.memory_space<vmem>>, %arg7: memref<1x128xf32, #tpu.memory_space<vmem>>, %arg8: memref<1x1xf32, #tpu.memory_space<vmem>>, %arg9: memref<8x8xf32, #tpu.memory_space<vmem>>) attributes {dimension_semantics = [#tpu.dimension_semantics<parallel>], iteration_bounds = array<i64: 1>, scalar_prefetch = 0 : i64, scratch_operands = 0 : i64, tpu.core_type = #tpu.core_type<tc>, window_params = [{transform_indices = @transform_0, window_bounds = array<i64: 8, 8>}, {pipeline_mode = #tpu.pipeline_mode<synchronous>, transform_indices = @transform_1, window_bounds = array<i64: 1, 512>}, {pipeline_mode = #tpu.pipeline_mode<synchronous>, transform_indices = @transform_2, window_bounds = array<i64: 128, 512>}, {pipeline_mode = #tpu.pipeline_mode<synchronous>, transform_indices = @transform_3, window_bounds = array<i64: 256, 512>}, {pipeline_mode = #tpu.pipeline_mode<synchronous>, transform_indices = @transform_4, window_bounds = array<i64: 256, 512>}, {pipeline_mode = #tpu.pipeline_mode<synchronous>, transform_indices = @transform_5, window_bounds = array<i64: 3, 1, 512>}, {pipeline_mode = #tpu.pipeline_mode<synchronous>, transform_indices = @transform_6, window_bounds = array<i64: 1, 128>}, {pipeline_mode = #tpu.pipeline_mode<synchronous>, transform_indices = @transform_7, window_bounds = array<i64: 1, 1>}, {transform_indices = @transform_8, window_bounds = array<i64: 8, 8>}]} {
    %c0 = arith.constant 0 : index
    %c0_0 = arith.constant 0 : index
    %0 = vector.load %arg1[%c0, %c0_0] : memref<8x8xf32, #tpu.memory_space<vmem>>, vector<8x8xf32>
    %1 = tpu.iota {dimensions = array<i32: 1>} : vector<1x512xi32>
    %c256_i32 = arith.constant 256 : i32
    %2 = vector.broadcast %c256_i32 : i32 to vector<1x512xi32>
    %3 = arith.cmpi sge, %1, %2 : vector<1x512xi32>
    %c384_i32 = arith.constant 384 : i32
    %4 = vector.broadcast %c384_i32 : i32 to vector<1x512xi32>
    %5 = arith.cmpi slt, %1, %4 : vector<1x512xi32>
    %6 = arith.andi %3, %5 : vector<1x512xi1>
    %cst = arith.constant 1.000000e+00 : f32
    %cst_1 = arith.constant 5.000000e-01 : f32
    %7 = vector.broadcast %cst : f32 to vector<1x512xf32>
    %8 = vector.broadcast %cst_1 : f32 to vector<1x512xf32>
    %9 = arith.select %6, %7, %8 : vector<1x512xi1>, vector<1x512xf32>
    %cst_2 = arith.constant 0.000000e+00 : f32
    %cst_3 = arith.constant 5.000000e-01 : f32
    %10 = vector.broadcast %cst_2 : f32 to vector<1x512xf32>
    %11 = vector.broadcast %cst_3 : f32 to vector<1x512xf32>
    %12 = arith.select %6, %10, %11 : vector<1x512xi1>, vector<1x512xf32>
    %cst_4 = arith.constant 0.000000e+00 : f32
    %13 = vector.broadcast %cst_4 : f32 to vector<8x128xf32>
    %14 = vector.extract_strided_slice %0 {offsets = [0, 0], sizes = [8, 1], strides = [1, 1]} : vector<8x8xf32> to vector<8x1xf32>
    %c0_5 = arith.constant 0 : index
    %c0_6 = arith.constant 0 : index
    %15 = vector.load %arg2[%c0_5, %c0_6] : memref<1x512xf32, #tpu.memory_space<vmem>>, vector<1x512xf32>
    %16 = vector.broadcast %14 : vector<8x1xf32> to vector<8x512xf32>
    %17 = vector.broadcast %15 : vector<1x512xf32> to vector<8x512xf32>
    %18 = arith.mulf %16, %17 : vector<8x512xf32>
    %c0_7 = arith.constant 0 : index
    %c0_8 = arith.constant 0 : index
    %19 = vector.load %arg3[%c0_7, %c0_8] : memref<128x512xf32, #tpu.memory_space<vmem>>, vector<128x512xf32>
    %cst_9 = arith.constant dense<0.000000e+00> : vector<8x512xf32>
    %20 = tpu.matmul %13, %19, %cst_9 {dimension_numbers = #tpu.dot_dimension_numbers<[1], [0], [0], [1], [0, 0, 1, 1], [], []>} : vector<8x128xf32>, vector<128x512xf32>, vector<8x512xf32> -> vector<8x512xf32>
    %21 = arith.addf %18, %20 : vector<8x512xf32>
    %c0_10 = arith.constant 0 : index
    %c0_11 = arith.constant 0 : index
    %c0_12 = arith.constant 0 : index
    %22 = vector.load %arg6[%c0_10, %c0_11, %c0_12] : memref<3x1x512xf32, #tpu.memory_space<vmem>>, vector<1x1x512xf32>
    %23 = vector.shape_cast %22 : vector<1x1x512xf32> to vector<1x512xf32>
    %24 = vector.broadcast %23 : vector<1x512xf32> to vector<8x512xf32>
    %25 = arith.addf %21, %24 : vector<8x512xf32>
    %26 = math.tanh %25 : vector<8x512xf32>
    %27 = vector.broadcast %9 : vector<1x512xf32> to vector<8x512xf32>
    %28 = arith.mulf %26, %27 : vector<8x512xf32>
    %29 = vector.broadcast %12 : vector<1x512xf32> to vector<8x512xf32>
    %30 = arith.addf %28, %29 : vector<8x512xf32>
    %31 = vector.extract_strided_slice %30 {offsets = [0, 0], sizes = [8, 128], strides = [1, 1]} : vector<8x512xf32> to vector<8x128xf32>
    %32 = vector.extract_strided_slice %30 {offsets = [0, 128], sizes = [8, 128], strides = [1, 1]} : vector<8x512xf32> to vector<8x128xf32>
    %33 = vector.extract_strided_slice %30 {offsets = [0, 256], sizes = [8, 128], strides = [1, 1]} : vector<8x512xf32> to vector<8x128xf32>
    %34 = vector.extract_strided_slice %30 {offsets = [0, 384], sizes = [8, 128], strides = [1, 1]} : vector<8x512xf32> to vector<8x128xf32>
    %35 = arith.mulf %32, %13 : vector<8x128xf32>
    %36 = arith.mulf %31, %33 : vector<8x128xf32>
    %37 = arith.addf %35, %36 : vector<8x128xf32>
    %38 = math.tanh %37 : vector<8x128xf32>
    %39 = arith.mulf %34, %38 : vector<8x128xf32>
    %40 = vector.extract_strided_slice %0 {offsets = [0, 1], sizes = [8, 1], strides = [1, 1]} : vector<8x8xf32> to vector<8x1xf32>
    %c0_13 = arith.constant 0 : index
    %c0_14 = arith.constant 0 : index
    %41 = vector.load %arg2[%c0_13, %c0_14] : memref<1x512xf32, #tpu.memory_space<vmem>>, vector<1x512xf32>
    %42 = vector.broadcast %40 : vector<8x1xf32> to vector<8x512xf32>
    %43 = vector.broadcast %41 : vector<1x512xf32> to vector<8x512xf32>
    %44 = arith.mulf %42, %43 : vector<8x512xf32>
    %c0_15 = arith.constant 0 : index
    %c0_16 = arith.constant 0 : index
    %45 = vector.load %arg3[%c0_15, %c0_16] : memref<128x512xf32, #tpu.memory_space<vmem>>, vector<128x512xf32>
    %cst_17 = arith.constant dense<0.000000e+00> : vector<8x512xf32>
    %46 = tpu.matmul %39, %45, %cst_17 {dimension_numbers = #tpu.dot_dimension_numbers<[1], [0], [0], [1], [0, 0, 1, 1], [], []>} : vector<8x128xf32>, vector<128x512xf32>, vector<8x512xf32> -> vector<8x512xf32>
    %47 = arith.addf %44, %46 : vector<8x512xf32>
    %c0_18 = arith.constant 0 : index
    %c0_19 = arith.constant 0 : index
    %c0_20 = arith.constant 0 : index
    %48 = vector.load %arg6[%c0_18, %c0_19, %c0_20] : memref<3x1x512xf32, #tpu.memory_space<vmem>>, vector<1x1x512xf32>
    %49 = vector.shape_cast %48 : vector<1x1x512xf32> to vector<1x512xf32>
    %50 = vector.broadcast %49 : vector<1x512xf32> to vector<8x512xf32>
    %51 = arith.addf %47, %50 : vector<8x512xf32>
    %52 = math.tanh %51 : vector<8x512xf32>
    %53 = vector.broadcast %9 : vector<1x512xf32> to vector<8x512xf32>
    %54 = arith.mulf %52, %53 : vector<8x512xf32>
    %55 = vector.broadcast %12 : vector<1x512xf32> to vector<8x512xf32>
    %56 = arith.addf %54, %55 : vector<8x512xf32>
    %57 = vector.extract_strided_slice %56 {offsets = [0, 0], sizes = [8, 128], strides = [1, 1]} : vector<8x512xf32> to vector<8x128xf32>
    %58 = vector.extract_strided_slice %56 {offsets = [0, 128], sizes = [8, 128], strides = [1, 1]} : vector<8x512xf32> to vector<8x128xf32>
    %59 = vector.extract_strided_slice %56 {offsets = [0, 256], sizes = [8, 128], strides = [1, 1]} : vector<8x512xf32> to vector<8x128xf32>
    %60 = vector.extract_strided_slice %56 {offsets = [0, 384], sizes = [8, 128], strides = [1, 1]} : vector<8x512xf32> to vector<8x128xf32>
    %61 = arith.mulf %58, %37 : vector<8x128xf32>
    %62 = arith.mulf %57, %59 : vector<8x128xf32>
    %63 = arith.addf %61, %62 : vector<8x128xf32>
    %64 = math.tanh %63 : vector<8x128xf32>
    %65 = arith.mulf %60, %64 : vector<8x128xf32>
    %66 = tpu.concatenate %39, %13 in 1 : vector<8x128xf32>, vector<8x128xf32> -> vector<8x256xf32>
    %c0_21 = arith.constant 0 : index
    %c0_22 = arith.constant 0 : index
    %67 = vector.load %arg4[%c0_21, %c0_22] : memref<256x512xf32, #tpu.memory_space<vmem>>, vector<256x512xf32>
    %cst_23 = arith.constant dense<0.000000e+00> : vector<8x512xf32>
    %68 = tpu.matmul %66, %67, %cst_23 {dimension_numbers = #tpu.dot_dimension_numbers<[1], [0], [0], [1], [0, 0, 1, 1], [], []>} : vector<8x256xf32>, vector<256x512xf32>, vector<8x512xf32> -> vector<8x512xf32>
    %c1 = arith.constant 1 : index
    %c0_24 = arith.constant 0 : index
    %c0_25 = arith.constant 0 : index
    %69 = vector.load %arg6[%c1, %c0_24, %c0_25] : memref<3x1x512xf32, #tpu.memory_space<vmem>>, vector<1x1x512xf32>
    %70 = vector.shape_cast %69 : vector<1x1x512xf32> to vector<1x512xf32>
    %71 = vector.broadcast %70 : vector<1x512xf32> to vector<8x512xf32>
    %72 = arith.addf %68, %71 : vector<8x512xf32>
    %73 = math.tanh %72 : vector<8x512xf32>
    %74 = vector.broadcast %9 : vector<1x512xf32> to vector<8x512xf32>
    %75 = arith.mulf %73, %74 : vector<8x512xf32>
    %76 = vector.broadcast %12 : vector<1x512xf32> to vector<8x512xf32>
    %77 = arith.addf %75, %76 : vector<8x512xf32>
    %78 = vector.extract_strided_slice %77 {offsets = [0, 0], sizes = [8, 128], strides = [1, 1]} : vector<8x512xf32> to vector<8x128xf32>
    %79 = vector.extract_strided_slice %77 {offsets = [0, 128], sizes = [8, 128], strides = [1, 1]} : vector<8x512xf32> to vector<8x128xf32>
    %80 = vector.extract_strided_slice %77 {offsets = [0, 256], sizes = [8, 128], strides = [1, 1]} : vector<8x512xf32> to vector<8x128xf32>
    %81 = vector.extract_strided_slice %77 {offsets = [0, 384], sizes = [8, 128], strides = [1, 1]} : vector<8x512xf32> to vector<8x128xf32>
    %82 = arith.mulf %79, %13 : vector<8x128xf32>
    %83 = arith.mulf %78, %80 : vector<8x128xf32>
    %84 = arith.addf %82, %83 : vector<8x128xf32>
    %85 = math.tanh %84 : vector<8x128xf32>
    %86 = arith.mulf %81, %85 : vector<8x128xf32>
    %87 = vector.extract_strided_slice %0 {offsets = [0, 2], sizes = [8, 1], strides = [1, 1]} : vector<8x8xf32> to vector<8x1xf32>
    %c0_26 = arith.constant 0 : index
    %c0_27 = arith.constant 0 : index
    %88 = vector.load %arg2[%c0_26, %c0_27] : memref<1x512xf32, #tpu.memory_space<vmem>>, vector<1x512xf32>
    %89 = vector.broadcast %87 : vector<8x1xf32> to vector<8x512xf32>
    %90 = vector.broadcast %88 : vector<1x512xf32> to vector<8x512xf32>
    %91 = arith.mulf %89, %90 : vector<8x512xf32>
    %c0_28 = arith.constant 0 : index
    %c0_29 = arith.constant 0 : index
    %92 = vector.load %arg3[%c0_28, %c0_29] : memref<128x512xf32, #tpu.memory_space<vmem>>, vector<128x512xf32>
    %cst_30 = arith.constant dense<0.000000e+00> : vector<8x512xf32>
    %93 = tpu.matmul %65, %92, %cst_30 {dimension_numbers = #tpu.dot_dimension_numbers<[1], [0], [0], [1], [0, 0, 1, 1], [], []>} : vector<8x128xf32>, vector<128x512xf32>, vector<8x512xf32> -> vector<8x512xf32>
    %94 = arith.addf %91, %93 : vector<8x512xf32>
    %c0_31 = arith.constant 0 : index
    %c0_32 = arith.constant 0 : index
    %c0_33 = arith.constant 0 : index
    %95 = vector.load %arg6[%c0_31, %c0_32, %c0_33] : memref<3x1x512xf32, #tpu.memory_space<vmem>>, vector<1x1x512xf32>
    %96 = vector.shape_cast %95 : vector<1x1x512xf32> to vector<1x512xf32>
    %97 = vector.broadcast %96 : vector<1x512xf32> to vector<8x512xf32>
    %98 = arith.addf %94, %97 : vector<8x512xf32>
    %99 = math.tanh %98 : vector<8x512xf32>
    %100 = vector.broadcast %9 : vector<1x512xf32> to vector<8x512xf32>
    %101 = arith.mulf %99, %100 : vector<8x512xf32>
    %102 = vector.broadcast %12 : vector<1x512xf32> to vector<8x512xf32>
    %103 = arith.addf %101, %102 : vector<8x512xf32>
    %104 = vector.extract_strided_slice %103 {offsets = [0, 0], sizes = [8, 128], strides = [1, 1]} : vector<8x512xf32> to vector<8x128xf32>
    %105 = vector.extract_strided_slice %103 {offsets = [0, 128], sizes = [8, 128], strides = [1, 1]} : vector<8x512xf32> to vector<8x128xf32>
    %106 = vector.extract_strided_slice %103 {offsets = [0, 256], sizes = [8, 128], strides = [1, 1]} : vector<8x512xf32> to vector<8x128xf32>
    %107 = vector.extract_strided_slice %103 {offsets = [0, 384], sizes = [8, 128], strides = [1, 1]} : vector<8x512xf32> to vector<8x128xf32>
    %108 = arith.mulf %105, %63 : vector<8x128xf32>
    %109 = arith.mulf %104, %106 : vector<8x128xf32>
    %110 = arith.addf %108, %109 : vector<8x128xf32>
    %111 = math.tanh %110 : vector<8x128xf32>
    %112 = arith.mulf %107, %111 : vector<8x128xf32>
    %113 = tpu.concatenate %65, %86 in 1 : vector<8x128xf32>, vector<8x128xf32> -> vector<8x256xf32>
    %c0_34 = arith.constant 0 : index
    %c0_35 = arith.constant 0 : index
    %114 = vector.load %arg4[%c0_34, %c0_35] : memref<256x512xf32, #tpu.memory_space<vmem>>, vector<256x512xf32>
    %cst_36 = arith.constant dense<0.000000e+00> : vector<8x512xf32>
    %115 = tpu.matmul %113, %114, %cst_36 {dimension_numbers = #tpu.dot_dimension_numbers<[1], [0], [0], [1], [0, 0, 1, 1], [], []>} : vector<8x256xf32>, vector<256x512xf32>, vector<8x512xf32> -> vector<8x512xf32>
    %c1_37 = arith.constant 1 : index
    %c0_38 = arith.constant 0 : index
    %c0_39 = arith.constant 0 : index
    %116 = vector.load %arg6[%c1_37, %c0_38, %c0_39] : memref<3x1x512xf32, #tpu.memory_space<vmem>>, vector<1x1x512xf32>
    %117 = vector.shape_cast %116 : vector<1x1x512xf32> to vector<1x512xf32>
    %118 = vector.broadcast %117 : vector<1x512xf32> to vector<8x512xf32>
    %119 = arith.addf %115, %118 : vector<8x512xf32>
    %120 = math.tanh %119 : vector<8x512xf32>
    %121 = vector.broadcast %9 : vector<1x512xf32> to vector<8x512xf32>
    %122 = arith.mulf %120, %121 : vector<8x512xf32>
    %123 = vector.broadcast %12 : vector<1x512xf32> to vector<8x512xf32>
    %124 = arith.addf %122, %123 : vector<8x512xf32>
    %125 = vector.extract_strided_slice %124 {offsets = [0, 0], sizes = [8, 128], strides = [1, 1]} : vector<8x512xf32> to vector<8x128xf32>
    %126 = vector.extract_strided_slice %124 {offsets = [0, 128], sizes = [8, 128], strides = [1, 1]} : vector<8x512xf32> to vector<8x128xf32>
    %127 = vector.extract_strided_slice %124 {offsets = [0, 256], sizes = [8, 128], strides = [1, 1]} : vector<8x512xf32> to vector<8x128xf32>
    %128 = vector.extract_strided_slice %124 {offsets = [0, 384], sizes = [8, 128], strides = [1, 1]} : vector<8x512xf32> to vector<8x128xf32>
    %129 = arith.mulf %126, %84 : vector<8x128xf32>
    %130 = arith.mulf %125, %127 : vector<8x128xf32>
    %131 = arith.addf %129, %130 : vector<8x128xf32>
    %132 = math.tanh %131 : vector<8x128xf32>
    %133 = arith.mulf %128, %132 : vector<8x128xf32>
    %134 = tpu.concatenate %86, %13 in 1 : vector<8x128xf32>, vector<8x128xf32> -> vector<8x256xf32>
    %c0_40 = arith.constant 0 : index
    %c0_41 = arith.constant 0 : index
    %135 = vector.load %arg5[%c0_40, %c0_41] : memref<256x512xf32, #tpu.memory_space<vmem>>, vector<256x512xf32>
    %cst_42 = arith.constant dense<0.000000e+00> : vector<8x512xf32>
    %136 = tpu.matmul %134, %135, %cst_42 {dimension_numbers = #tpu.dot_dimension_numbers<[1], [0], [0], [1], [0, 0, 1, 1], [], []>} : vector<8x256xf32>, vector<256x512xf32>, vector<8x512xf32> -> vector<8x512xf32>
    %c2 = arith.constant 2 : index
    %c0_43 = arith.constant 0 : index
    %c0_44 = arith.constant 0 : index
    %137 = vector.load %arg6[%c2, %c0_43, %c0_44] : memref<3x1x512xf32, #tpu.memory_space<vmem>>, vector<1x1x512xf32>
    %138 = vector.shape_cast %137 : vector<1x1x512xf32> to vector<1x512xf32>
    %139 = vector.broadcast %138 : vector<1x512xf32> to vector<8x512xf32>
    %140 = arith.addf %136, %139 : vector<8x512xf32>
    %141 = math.tanh %140 : vector<8x512xf32>
    %142 = vector.broadcast %9 : vector<1x512xf32> to vector<8x512xf32>
    %143 = arith.mulf %141, %142 : vector<8x512xf32>
    %144 = vector.broadcast %12 : vector<1x512xf32> to vector<8x512xf32>
    %145 = arith.addf %143, %144 : vector<8x512xf32>
    %146 = vector.extract_strided_slice %145 {offsets = [0, 0], sizes = [8, 128], strides = [1, 1]} : vector<8x512xf32> to vector<8x128xf32>
    %147 = vector.extract_strided_slice %145 {offsets = [0, 128], sizes = [8, 128], strides = [1, 1]} : vector<8x512xf32> to vector<8x128xf32>
    %148 = vector.extract_strided_slice %145 {offsets = [0, 256], sizes = [8, 128], strides = [1, 1]} : vector<8x512xf32> to vector<8x128xf32>
    %149 = vector.extract_strided_slice %145 {offsets = [0, 384], sizes = [8, 128], strides = [1, 1]} : vector<8x512xf32> to vector<8x128xf32>
    %150 = arith.mulf %147, %13 : vector<8x128xf32>
    %151 = arith.mulf %146, %148 : vector<8x128xf32>
    %152 = arith.addf %150, %151 : vector<8x128xf32>
    %153 = math.tanh %152 : vector<8x128xf32>
    %154 = arith.mulf %149, %153 : vector<8x128xf32>
    %155 = vector.extract_strided_slice %0 {offsets = [0, 3], sizes = [8, 1], strides = [1, 1]} : vector<8x8xf32> to vector<8x1xf32>
    %c0_45 = arith.constant 0 : index
    %c0_46 = arith.constant 0 : index
    %156 = vector.load %arg2[%c0_45, %c0_46] : memref<1x512xf32, #tpu.memory_space<vmem>>, vector<1x512xf32>
    %157 = vector.broadcast %155 : vector<8x1xf32> to vector<8x512xf32>
    %158 = vector.broadcast %156 : vector<1x512xf32> to vector<8x512xf32>
    %159 = arith.mulf %157, %158 : vector<8x512xf32>
    %c0_47 = arith.constant 0 : index
    %c0_48 = arith.constant 0 : index
    %160 = vector.load %arg3[%c0_47, %c0_48] : memref<128x512xf32, #tpu.memory_space<vmem>>, vector<128x512xf32>
    %cst_49 = arith.constant dense<0.000000e+00> : vector<8x512xf32>
    %161 = tpu.matmul %112, %160, %cst_49 {dimension_numbers = #tpu.dot_dimension_numbers<[1], [0], [0], [1], [0, 0, 1, 1], [], []>} : vector<8x128xf32>, vector<128x512xf32>, vector<8x512xf32> -> vector<8x512xf32>
    %162 = arith.addf %159, %161 : vector<8x512xf32>
    %c0_50 = arith.constant 0 : index
    %c0_51 = arith.constant 0 : index
    %c0_52 = arith.constant 0 : index
    %163 = vector.load %arg6[%c0_50, %c0_51, %c0_52] : memref<3x1x512xf32, #tpu.memory_space<vmem>>, vector<1x1x512xf32>
    %164 = vector.shape_cast %163 : vector<1x1x512xf32> to vector<1x512xf32>
    %165 = vector.broadcast %164 : vector<1x512xf32> to vector<8x512xf32>
    %166 = arith.addf %162, %165 : vector<8x512xf32>
    %167 = math.tanh %166 : vector<8x512xf32>
    %168 = vector.broadcast %9 : vector<1x512xf32> to vector<8x512xf32>
    %169 = arith.mulf %167, %168 : vector<8x512xf32>
    %170 = vector.broadcast %12 : vector<1x512xf32> to vector<8x512xf32>
    %171 = arith.addf %169, %170 : vector<8x512xf32>
    %172 = vector.extract_strided_slice %171 {offsets = [0, 0], sizes = [8, 128], strides = [1, 1]} : vector<8x512xf32> to vector<8x128xf32>
    %173 = vector.extract_strided_slice %171 {offsets = [0, 128], sizes = [8, 128], strides = [1, 1]} : vector<8x512xf32> to vector<8x128xf32>
    %174 = vector.extract_strided_slice %171 {offsets = [0, 256], sizes = [8, 128], strides = [1, 1]} : vector<8x512xf32> to vector<8x128xf32>
    %175 = vector.extract_strided_slice %171 {offsets = [0, 384], sizes = [8, 128], strides = [1, 1]} : vector<8x512xf32> to vector<8x128xf32>
    %176 = arith.mulf %173, %110 : vector<8x128xf32>
    %177 = arith.mulf %172, %174 : vector<8x128xf32>
    %178 = arith.addf %176, %177 : vector<8x128xf32>
    %179 = math.tanh %178 : vector<8x128xf32>
    %180 = arith.mulf %175, %179 : vector<8x128xf32>
    %181 = tpu.concatenate %112, %133 in 1 : vector<8x128xf32>, vector<8x128xf32> -> vector<8x256xf32>
    %c0_53 = arith.constant 0 : index
    %c0_54 = arith.constant 0 : index
    %182 = vector.load %arg4[%c0_53, %c0_54] : memref<256x512xf32, #tpu.memory_space<vmem>>, vector<256x512xf32>
    %cst_55 = arith.constant dense<0.000000e+00> : vector<8x512xf32>
    %183 = tpu.matmul %181, %182, %cst_55 {dimension_numbers = #tpu.dot_dimension_numbers<[1], [0], [0], [1], [0, 0, 1, 1], [], []>} : vector<8x256xf32>, vector<256x512xf32>, vector<8x512xf32> -> vector<8x512xf32>
    %c1_56 = arith.constant 1 : index
    %c0_57 = arith.constant 0 : index
    %c0_58 = arith.constant 0 : index
    %184 = vector.load %arg6[%c1_56, %c0_57, %c0_58] : memref<3x1x512xf32, #tpu.memory_space<vmem>>, vector<1x1x512xf32>
    %185 = vector.shape_cast %184 : vector<1x1x512xf32> to vector<1x512xf32>
    %186 = vector.broadcast %185 : vector<1x512xf32> to vector<8x512xf32>
    %187 = arith.addf %183, %186 : vector<8x512xf32>
    %188 = math.tanh %187 : vector<8x512xf32>
    %189 = vector.broadcast %9 : vector<1x512xf32> to vector<8x512xf32>
    %190 = arith.mulf %188, %189 : vector<8x512xf32>
    %191 = vector.broadcast %12 : vector<1x512xf32> to vector<8x512xf32>
    %192 = arith.addf %190, %191 : vector<8x512xf32>
    %193 = vector.extract_strided_slice %192 {offsets = [0, 0], sizes = [8, 128], strides = [1, 1]} : vector<8x512xf32> to vector<8x128xf32>
    %194 = vector.extract_strided_slice %192 {offsets = [0, 128], sizes = [8, 128], strides = [1, 1]} : vector<8x512xf32> to vector<8x128xf32>
    %195 = vector.extract_strided_slice %192 {offsets = [0, 256], sizes = [8, 128], strides = [1, 1]} : vector<8x512xf32> to vector<8x128xf32>
    %196 = vector.extract_strided_slice %192 {offsets = [0, 384], sizes = [8, 128], strides = [1, 1]} : vector<8x512xf32> to vector<8x128xf32>
    %197 = arith.mulf %194, %131 : vector<8x128xf32>
    %198 = arith.mulf %193, %195 : vector<8x128xf32>
    %199 = arith.addf %197, %198 : vector<8x128xf32>
    %200 = math.tanh %199 : vector<8x128xf32>
    %201 = arith.mulf %196, %200 : vector<8x128xf32>
    %202 = tpu.concatenate %133, %154 in 1 : vector<8x128xf32>, vector<8x128xf32> -> vector<8x256xf32>
    %c0_59 = arith.constant 0 : index
    %c0_60 = arith.constant 0 : index
    %203 = vector.load %arg5[%c0_59, %c0_60] : memref<256x512xf32, #tpu.memory_space<vmem>>, vector<256x512xf32>
    %cst_61 = arith.constant dense<0.000000e+00> : vector<8x512xf32>
    %204 = tpu.matmul %202, %203, %cst_61 {dimension_numbers = #tpu.dot_dimension_numbers<[1], [0], [0], [1], [0, 0, 1, 1], [], []>} : vector<8x256xf32>, vector<256x512xf32>, vector<8x512xf32> -> vector<8x512xf32>
    %c2_62 = arith.constant 2 : index
    %c0_63 = arith.constant 0 : index
    %c0_64 = arith.constant 0 : index
    %205 = vector.load %arg6[%c2_62, %c0_63, %c0_64] : memref<3x1x512xf32, #tpu.memory_space<vmem>>, vector<1x1x512xf32>
    %206 = vector.shape_cast %205 : vector<1x1x512xf32> to vector<1x512xf32>
    %207 = vector.broadcast %206 : vector<1x512xf32> to vector<8x512xf32>
    %208 = arith.addf %204, %207 : vector<8x512xf32>
    %209 = math.tanh %208 : vector<8x512xf32>
    %210 = vector.broadcast %9 : vector<1x512xf32> to vector<8x512xf32>
    %211 = arith.mulf %209, %210 : vector<8x512xf32>
    %212 = vector.broadcast %12 : vector<1x512xf32> to vector<8x512xf32>
    %213 = arith.addf %211, %212 : vector<8x512xf32>
    %214 = vector.extract_strided_slice %213 {offsets = [0, 0], sizes = [8, 128], strides = [1, 1]} : vector<8x512xf32> to vector<8x128xf32>
    %215 = vector.extract_strided_slice %213 {offsets = [0, 128], sizes = [8, 128], strides = [1, 1]} : vector<8x512xf32> to vector<8x128xf32>
    %216 = vector.extract_strided_slice %213 {offsets = [0, 256], sizes = [8, 128], strides = [1, 1]} : vector<8x512xf32> to vector<8x128xf32>
    %217 = vector.extract_strided_slice %213 {offsets = [0, 384], sizes = [8, 128], strides = [1, 1]} : vector<8x512xf32> to vector<8x128xf32>
    %218 = arith.mulf %215, %152 : vector<8x128xf32>
    %219 = arith.mulf %214, %216 : vector<8x128xf32>
    %220 = arith.addf %218, %219 : vector<8x128xf32>
    %221 = math.tanh %220 : vector<8x128xf32>
    %222 = arith.mulf %217, %221 : vector<8x128xf32>
    %223 = vector.extract_strided_slice %0 {offsets = [0, 4], sizes = [8, 1], strides = [1, 1]} : vector<8x8xf32> to vector<8x1xf32>
    %c0_65 = arith.constant 0 : index
    %c0_66 = arith.constant 0 : index
    %224 = vector.load %arg2[%c0_65, %c0_66] : memref<1x512xf32, #tpu.memory_space<vmem>>, vector<1x512xf32>
    %225 = vector.broadcast %223 : vector<8x1xf32> to vector<8x512xf32>
    %226 = vector.broadcast %224 : vector<1x512xf32> to vector<8x512xf32>
    %227 = arith.mulf %225, %226 : vector<8x512xf32>
    %c0_67 = arith.constant 0 : index
    %c0_68 = arith.constant 0 : index
    %228 = vector.load %arg3[%c0_67, %c0_68] : memref<128x512xf32, #tpu.memory_space<vmem>>, vector<128x512xf32>
    %cst_69 = arith.constant dense<0.000000e+00> : vector<8x512xf32>
    %229 = tpu.matmul %180, %228, %cst_69 {dimension_numbers = #tpu.dot_dimension_numbers<[1], [0], [0], [1], [0, 0, 1, 1], [], []>} : vector<8x128xf32>, vector<128x512xf32>, vector<8x512xf32> -> vector<8x512xf32>
    %230 = arith.addf %227, %229 : vector<8x512xf32>
    %c0_70 = arith.constant 0 : index
    %c0_71 = arith.constant 0 : index
    %c0_72 = arith.constant 0 : index
    %231 = vector.load %arg6[%c0_70, %c0_71, %c0_72] : memref<3x1x512xf32, #tpu.memory_space<vmem>>, vector<1x1x512xf32>
    %232 = vector.shape_cast %231 : vector<1x1x512xf32> to vector<1x512xf32>
    %233 = vector.broadcast %232 : vector<1x512xf32> to vector<8x512xf32>
    %234 = arith.addf %230, %233 : vector<8x512xf32>
    %235 = math.tanh %234 : vector<8x512xf32>
    %236 = vector.broadcast %9 : vector<1x512xf32> to vector<8x512xf32>
    %237 = arith.mulf %235, %236 : vector<8x512xf32>
    %238 = vector.broadcast %12 : vector<1x512xf32> to vector<8x512xf32>
    %239 = arith.addf %237, %238 : vector<8x512xf32>
    %240 = vector.extract_strided_slice %239 {offsets = [0, 0], sizes = [8, 128], strides = [1, 1]} : vector<8x512xf32> to vector<8x128xf32>
    %241 = vector.extract_strided_slice %239 {offsets = [0, 128], sizes = [8, 128], strides = [1, 1]} : vector<8x512xf32> to vector<8x128xf32>
    %242 = vector.extract_strided_slice %239 {offsets = [0, 256], sizes = [8, 128], strides = [1, 1]} : vector<8x512xf32> to vector<8x128xf32>
    %243 = vector.extract_strided_slice %239 {offsets = [0, 384], sizes = [8, 128], strides = [1, 1]} : vector<8x512xf32> to vector<8x128xf32>
    %244 = arith.mulf %241, %178 : vector<8x128xf32>
    %245 = arith.mulf %240, %242 : vector<8x128xf32>
    %246 = arith.addf %244, %245 : vector<8x128xf32>
    %247 = math.tanh %246 : vector<8x128xf32>
    %248 = arith.mulf %243, %247 : vector<8x128xf32>
    %249 = tpu.concatenate %180, %201 in 1 : vector<8x128xf32>, vector<8x128xf32> -> vector<8x256xf32>
    %c0_73 = arith.constant 0 : index
    %c0_74 = arith.constant 0 : index
    %250 = vector.load %arg4[%c0_73, %c0_74] : memref<256x512xf32, #tpu.memory_space<vmem>>, vector<256x512xf32>
    %cst_75 = arith.constant dense<0.000000e+00> : vector<8x512xf32>
    %251 = tpu.matmul %249, %250, %cst_75 {dimension_numbers = #tpu.dot_dimension_numbers<[1], [0], [0], [1], [0, 0, 1, 1], [], []>} : vector<8x256xf32>, vector<256x512xf32>, vector<8x512xf32> -> vector<8x512xf32>
    %c1_76 = arith.constant 1 : index
    %c0_77 = arith.constant 0 : index
    %c0_78 = arith.constant 0 : index
    %252 = vector.load %arg6[%c1_76, %c0_77, %c0_78] : memref<3x1x512xf32, #tpu.memory_space<vmem>>, vector<1x1x512xf32>
    %253 = vector.shape_cast %252 : vector<1x1x512xf32> to vector<1x512xf32>
    %254 = vector.broadcast %253 : vector<1x512xf32> to vector<8x512xf32>
    %255 = arith.addf %251, %254 : vector<8x512xf32>
    %256 = math.tanh %255 : vector<8x512xf32>
    %257 = vector.broadcast %9 : vector<1x512xf32> to vector<8x512xf32>
    %258 = arith.mulf %256, %257 : vector<8x512xf32>
    %259 = vector.broadcast %12 : vector<1x512xf32> to vector<8x512xf32>
    %260 = arith.addf %258, %259 : vector<8x512xf32>
    %261 = vector.extract_strided_slice %260 {offsets = [0, 0], sizes = [8, 128], strides = [1, 1]} : vector<8x512xf32> to vector<8x128xf32>
    %262 = vector.extract_strided_slice %260 {offsets = [0, 128], sizes = [8, 128], strides = [1, 1]} : vector<8x512xf32> to vector<8x128xf32>
    %263 = vector.extract_strided_slice %260 {offsets = [0, 256], sizes = [8, 128], strides = [1, 1]} : vector<8x512xf32> to vector<8x128xf32>
    %264 = vector.extract_strided_slice %260 {offsets = [0, 384], sizes = [8, 128], strides = [1, 1]} : vector<8x512xf32> to vector<8x128xf32>
    %265 = arith.mulf %262, %199 : vector<8x128xf32>
    %266 = arith.mulf %261, %263 : vector<8x128xf32>
    %267 = arith.addf %265, %266 : vector<8x128xf32>
    %268 = math.tanh %267 : vector<8x128xf32>
    %269 = arith.mulf %264, %268 : vector<8x128xf32>
    %270 = tpu.concatenate %201, %222 in 1 : vector<8x128xf32>, vector<8x128xf32> -> vector<8x256xf32>
    %c0_79 = arith.constant 0 : index
    %c0_80 = arith.constant 0 : index
    %271 = vector.load %arg5[%c0_79, %c0_80] : memref<256x512xf32, #tpu.memory_space<vmem>>, vector<256x512xf32>
    %cst_81 = arith.constant dense<0.000000e+00> : vector<8x512xf32>
    %272 = tpu.matmul %270, %271, %cst_81 {dimension_numbers = #tpu.dot_dimension_numbers<[1], [0], [0], [1], [0, 0, 1, 1], [], []>} : vector<8x256xf32>, vector<256x512xf32>, vector<8x512xf32> -> vector<8x512xf32>
    %c2_82 = arith.constant 2 : index
    %c0_83 = arith.constant 0 : index
    %c0_84 = arith.constant 0 : index
    %273 = vector.load %arg6[%c2_82, %c0_83, %c0_84] : memref<3x1x512xf32, #tpu.memory_space<vmem>>, vector<1x1x512xf32>
    %274 = vector.shape_cast %273 : vector<1x1x512xf32> to vector<1x512xf32>
    %275 = vector.broadcast %274 : vector<1x512xf32> to vector<8x512xf32>
    %276 = arith.addf %272, %275 : vector<8x512xf32>
    %277 = math.tanh %276 : vector<8x512xf32>
    %278 = vector.broadcast %9 : vector<1x512xf32> to vector<8x512xf32>
    %279 = arith.mulf %277, %278 : vector<8x512xf32>
    %280 = vector.broadcast %12 : vector<1x512xf32> to vector<8x512xf32>
    %281 = arith.addf %279, %280 : vector<8x512xf32>
    %282 = vector.extract_strided_slice %281 {offsets = [0, 0], sizes = [8, 128], strides = [1, 1]} : vector<8x512xf32> to vector<8x128xf32>
    %283 = vector.extract_strided_slice %281 {offsets = [0, 128], sizes = [8, 128], strides = [1, 1]} : vector<8x512xf32> to vector<8x128xf32>
    %284 = vector.extract_strided_slice %281 {offsets = [0, 256], sizes = [8, 128], strides = [1, 1]} : vector<8x512xf32> to vector<8x128xf32>
    %285 = vector.extract_strided_slice %281 {offsets = [0, 384], sizes = [8, 128], strides = [1, 1]} : vector<8x512xf32> to vector<8x128xf32>
    %286 = arith.mulf %283, %220 : vector<8x128xf32>
    %287 = arith.mulf %282, %284 : vector<8x128xf32>
    %288 = arith.addf %286, %287 : vector<8x128xf32>
    %289 = math.tanh %288 : vector<8x128xf32>
    %290 = arith.mulf %285, %289 : vector<8x128xf32>
    %291 = vector.extract_strided_slice %0 {offsets = [0, 5], sizes = [8, 1], strides = [1, 1]} : vector<8x8xf32> to vector<8x1xf32>
    %c0_85 = arith.constant 0 : index
    %c0_86 = arith.constant 0 : index
    %292 = vector.load %arg2[%c0_85, %c0_86] : memref<1x512xf32, #tpu.memory_space<vmem>>, vector<1x512xf32>
    %293 = vector.broadcast %291 : vector<8x1xf32> to vector<8x512xf32>
    %294 = vector.broadcast %292 : vector<1x512xf32> to vector<8x512xf32>
    %295 = arith.mulf %293, %294 : vector<8x512xf32>
    %c0_87 = arith.constant 0 : index
    %c0_88 = arith.constant 0 : index
    %296 = vector.load %arg3[%c0_87, %c0_88] : memref<128x512xf32, #tpu.memory_space<vmem>>, vector<128x512xf32>
    %cst_89 = arith.constant dense<0.000000e+00> : vector<8x512xf32>
    %297 = tpu.matmul %248, %296, %cst_89 {dimension_numbers = #tpu.dot_dimension_numbers<[1], [0], [0], [1], [0, 0, 1, 1], [], []>} : vector<8x128xf32>, vector<128x512xf32>, vector<8x512xf32> -> vector<8x512xf32>
    %298 = arith.addf %295, %297 : vector<8x512xf32>
    %c0_90 = arith.constant 0 : index
    %c0_91 = arith.constant 0 : index
    %c0_92 = arith.constant 0 : index
    %299 = vector.load %arg6[%c0_90, %c0_91, %c0_92] : memref<3x1x512xf32, #tpu.memory_space<vmem>>, vector<1x1x512xf32>
    %300 = vector.shape_cast %299 : vector<1x1x512xf32> to vector<1x512xf32>
    %301 = vector.broadcast %300 : vector<1x512xf32> to vector<8x512xf32>
    %302 = arith.addf %298, %301 : vector<8x512xf32>
    %303 = math.tanh %302 : vector<8x512xf32>
    %304 = vector.broadcast %9 : vector<1x512xf32> to vector<8x512xf32>
    %305 = arith.mulf %303, %304 : vector<8x512xf32>
    %306 = vector.broadcast %12 : vector<1x512xf32> to vector<8x512xf32>
    %307 = arith.addf %305, %306 : vector<8x512xf32>
    %308 = vector.extract_strided_slice %307 {offsets = [0, 0], sizes = [8, 128], strides = [1, 1]} : vector<8x512xf32> to vector<8x128xf32>
    %309 = vector.extract_strided_slice %307 {offsets = [0, 128], sizes = [8, 128], strides = [1, 1]} : vector<8x512xf32> to vector<8x128xf32>
    %310 = vector.extract_strided_slice %307 {offsets = [0, 256], sizes = [8, 128], strides = [1, 1]} : vector<8x512xf32> to vector<8x128xf32>
    %311 = vector.extract_strided_slice %307 {offsets = [0, 384], sizes = [8, 128], strides = [1, 1]} : vector<8x512xf32> to vector<8x128xf32>
    %312 = arith.mulf %309, %246 : vector<8x128xf32>
    %313 = arith.mulf %308, %310 : vector<8x128xf32>
    %314 = arith.addf %312, %313 : vector<8x128xf32>
    %315 = math.tanh %314 : vector<8x128xf32>
    %316 = arith.mulf %311, %315 : vector<8x128xf32>
    %317 = tpu.concatenate %248, %269 in 1 : vector<8x128xf32>, vector<8x128xf32> -> vector<8x256xf32>
    %c0_93 = arith.constant 0 : index
    %c0_94 = arith.constant 0 : index
    %318 = vector.load %arg4[%c0_93, %c0_94] : memref<256x512xf32, #tpu.memory_space<vmem>>, vector<256x512xf32>
    %cst_95 = arith.constant dense<0.000000e+00> : vector<8x512xf32>
    %319 = tpu.matmul %317, %318, %cst_95 {dimension_numbers = #tpu.dot_dimension_numbers<[1], [0], [0], [1], [0, 0, 1, 1], [], []>} : vector<8x256xf32>, vector<256x512xf32>, vector<8x512xf32> -> vector<8x512xf32>
    %c1_96 = arith.constant 1 : index
    %c0_97 = arith.constant 0 : index
    %c0_98 = arith.constant 0 : index
    %320 = vector.load %arg6[%c1_96, %c0_97, %c0_98] : memref<3x1x512xf32, #tpu.memory_space<vmem>>, vector<1x1x512xf32>
    %321 = vector.shape_cast %320 : vector<1x1x512xf32> to vector<1x512xf32>
    %322 = vector.broadcast %321 : vector<1x512xf32> to vector<8x512xf32>
    %323 = arith.addf %319, %322 : vector<8x512xf32>
    %324 = math.tanh %323 : vector<8x512xf32>
    %325 = vector.broadcast %9 : vector<1x512xf32> to vector<8x512xf32>
    %326 = arith.mulf %324, %325 : vector<8x512xf32>
    %327 = vector.broadcast %12 : vector<1x512xf32> to vector<8x512xf32>
    %328 = arith.addf %326, %327 : vector<8x512xf32>
    %329 = vector.extract_strided_slice %328 {offsets = [0, 0], sizes = [8, 128], strides = [1, 1]} : vector<8x512xf32> to vector<8x128xf32>
    %330 = vector.extract_strided_slice %328 {offsets = [0, 128], sizes = [8, 128], strides = [1, 1]} : vector<8x512xf32> to vector<8x128xf32>
    %331 = vector.extract_strided_slice %328 {offsets = [0, 256], sizes = [8, 128], strides = [1, 1]} : vector<8x512xf32> to vector<8x128xf32>
    %332 = vector.extract_strided_slice %328 {offsets = [0, 384], sizes = [8, 128], strides = [1, 1]} : vector<8x512xf32> to vector<8x128xf32>
    %333 = arith.mulf %330, %267 : vector<8x128xf32>
    %334 = arith.mulf %329, %331 : vector<8x128xf32>
    %335 = arith.addf %333, %334 : vector<8x128xf32>
    %336 = math.tanh %335 : vector<8x128xf32>
    %337 = arith.mulf %332, %336 : vector<8x128xf32>
    %338 = tpu.concatenate %269, %290 in 1 : vector<8x128xf32>, vector<8x128xf32> -> vector<8x256xf32>
    %c0_99 = arith.constant 0 : index
    %c0_100 = arith.constant 0 : index
    %339 = vector.load %arg5[%c0_99, %c0_100] : memref<256x512xf32, #tpu.memory_space<vmem>>, vector<256x512xf32>
    %cst_101 = arith.constant dense<0.000000e+00> : vector<8x512xf32>
    %340 = tpu.matmul %338, %339, %cst_101 {dimension_numbers = #tpu.dot_dimension_numbers<[1], [0], [0], [1], [0, 0, 1, 1], [], []>} : vector<8x256xf32>, vector<256x512xf32>, vector<8x512xf32> -> vector<8x512xf32>
    %c2_102 = arith.constant 2 : index
    %c0_103 = arith.constant 0 : index
    %c0_104 = arith.constant 0 : index
    %341 = vector.load %arg6[%c2_102, %c0_103, %c0_104] : memref<3x1x512xf32, #tpu.memory_space<vmem>>, vector<1x1x512xf32>
    %342 = vector.shape_cast %341 : vector<1x1x512xf32> to vector<1x512xf32>
    %343 = vector.broadcast %342 : vector<1x512xf32> to vector<8x512xf32>
    %344 = arith.addf %340, %343 : vector<8x512xf32>
    %345 = math.tanh %344 : vector<8x512xf32>
    %346 = vector.broadcast %9 : vector<1x512xf32> to vector<8x512xf32>
    %347 = arith.mulf %345, %346 : vector<8x512xf32>
    %348 = vector.broadcast %12 : vector<1x512xf32> to vector<8x512xf32>
    %349 = arith.addf %347, %348 : vector<8x512xf32>
    %350 = vector.extract_strided_slice %349 {offsets = [0, 0], sizes = [8, 128], strides = [1, 1]} : vector<8x512xf32> to vector<8x128xf32>
    %351 = vector.extract_strided_slice %349 {offsets = [0, 128], sizes = [8, 128], strides = [1, 1]} : vector<8x512xf32> to vector<8x128xf32>
    %352 = vector.extract_strided_slice %349 {offsets = [0, 256], sizes = [8, 128], strides = [1, 1]} : vector<8x512xf32> to vector<8x128xf32>
    %353 = vector.extract_strided_slice %349 {offsets = [0, 384], sizes = [8, 128], strides = [1, 1]} : vector<8x512xf32> to vector<8x128xf32>
    %354 = arith.mulf %351, %288 : vector<8x128xf32>
    %355 = arith.mulf %350, %352 : vector<8x128xf32>
    %356 = arith.addf %354, %355 : vector<8x128xf32>
    %357 = math.tanh %356 : vector<8x128xf32>
    %358 = arith.mulf %353, %357 : vector<8x128xf32>
    %359 = vector.extract_strided_slice %0 {offsets = [0, 6], sizes = [8, 1], strides = [1, 1]} : vector<8x8xf32> to vector<8x1xf32>
    %c0_105 = arith.constant 0 : index
    %c0_106 = arith.constant 0 : index
    %360 = vector.load %arg2[%c0_105, %c0_106] : memref<1x512xf32, #tpu.memory_space<vmem>>, vector<1x512xf32>
    %361 = vector.broadcast %359 : vector<8x1xf32> to vector<8x512xf32>
    %362 = vector.broadcast %360 : vector<1x512xf32> to vector<8x512xf32>
    %363 = arith.mulf %361, %362 : vector<8x512xf32>
    %c0_107 = arith.constant 0 : index
    %c0_108 = arith.constant 0 : index
    %364 = vector.load %arg3[%c0_107, %c0_108] : memref<128x512xf32, #tpu.memory_space<vmem>>, vector<128x512xf32>
    %cst_109 = arith.constant dense<0.000000e+00> : vector<8x512xf32>
    %365 = tpu.matmul %316, %364, %cst_109 {dimension_numbers = #tpu.dot_dimension_numbers<[1], [0], [0], [1], [0, 0, 1, 1], [], []>} : vector<8x128xf32>, vector<128x512xf32>, vector<8x512xf32> -> vector<8x512xf32>
    %366 = arith.addf %363, %365 : vector<8x512xf32>
    %c0_110 = arith.constant 0 : index
    %c0_111 = arith.constant 0 : index
    %c0_112 = arith.constant 0 : index
    %367 = vector.load %arg6[%c0_110, %c0_111, %c0_112] : memref<3x1x512xf32, #tpu.memory_space<vmem>>, vector<1x1x512xf32>
    %368 = vector.shape_cast %367 : vector<1x1x512xf32> to vector<1x512xf32>
    %369 = vector.broadcast %368 : vector<1x512xf32> to vector<8x512xf32>
    %370 = arith.addf %366, %369 : vector<8x512xf32>
    %371 = math.tanh %370 : vector<8x512xf32>
    %372 = vector.broadcast %9 : vector<1x512xf32> to vector<8x512xf32>
    %373 = arith.mulf %371, %372 : vector<8x512xf32>
    %374 = vector.broadcast %12 : vector<1x512xf32> to vector<8x512xf32>
    %375 = arith.addf %373, %374 : vector<8x512xf32>
    %376 = vector.extract_strided_slice %375 {offsets = [0, 0], sizes = [8, 128], strides = [1, 1]} : vector<8x512xf32> to vector<8x128xf32>
    %377 = vector.extract_strided_slice %375 {offsets = [0, 128], sizes = [8, 128], strides = [1, 1]} : vector<8x512xf32> to vector<8x128xf32>
    %378 = vector.extract_strided_slice %375 {offsets = [0, 256], sizes = [8, 128], strides = [1, 1]} : vector<8x512xf32> to vector<8x128xf32>
    %379 = vector.extract_strided_slice %375 {offsets = [0, 384], sizes = [8, 128], strides = [1, 1]} : vector<8x512xf32> to vector<8x128xf32>
    %380 = arith.mulf %377, %314 : vector<8x128xf32>
    %381 = arith.mulf %376, %378 : vector<8x128xf32>
    %382 = arith.addf %380, %381 : vector<8x128xf32>
    %383 = math.tanh %382 : vector<8x128xf32>
    %384 = arith.mulf %379, %383 : vector<8x128xf32>
    %385 = tpu.concatenate %316, %337 in 1 : vector<8x128xf32>, vector<8x128xf32> -> vector<8x256xf32>
    %c0_113 = arith.constant 0 : index
    %c0_114 = arith.constant 0 : index
    %386 = vector.load %arg4[%c0_113, %c0_114] : memref<256x512xf32, #tpu.memory_space<vmem>>, vector<256x512xf32>
    %cst_115 = arith.constant dense<0.000000e+00> : vector<8x512xf32>
    %387 = tpu.matmul %385, %386, %cst_115 {dimension_numbers = #tpu.dot_dimension_numbers<[1], [0], [0], [1], [0, 0, 1, 1], [], []>} : vector<8x256xf32>, vector<256x512xf32>, vector<8x512xf32> -> vector<8x512xf32>
    %c1_116 = arith.constant 1 : index
    %c0_117 = arith.constant 0 : index
    %c0_118 = arith.constant 0 : index
    %388 = vector.load %arg6[%c1_116, %c0_117, %c0_118] : memref<3x1x512xf32, #tpu.memory_space<vmem>>, vector<1x1x512xf32>
    %389 = vector.shape_cast %388 : vector<1x1x512xf32> to vector<1x512xf32>
    %390 = vector.broadcast %389 : vector<1x512xf32> to vector<8x512xf32>
    %391 = arith.addf %387, %390 : vector<8x512xf32>
    %392 = math.tanh %391 : vector<8x512xf32>
    %393 = vector.broadcast %9 : vector<1x512xf32> to vector<8x512xf32>
    %394 = arith.mulf %392, %393 : vector<8x512xf32>
    %395 = vector.broadcast %12 : vector<1x512xf32> to vector<8x512xf32>
    %396 = arith.addf %394, %395 : vector<8x512xf32>
    %397 = vector.extract_strided_slice %396 {offsets = [0, 0], sizes = [8, 128], strides = [1, 1]} : vector<8x512xf32> to vector<8x128xf32>
    %398 = vector.extract_strided_slice %396 {offsets = [0, 128], sizes = [8, 128], strides = [1, 1]} : vector<8x512xf32> to vector<8x128xf32>
    %399 = vector.extract_strided_slice %396 {offsets = [0, 256], sizes = [8, 128], strides = [1, 1]} : vector<8x512xf32> to vector<8x128xf32>
    %400 = vector.extract_strided_slice %396 {offsets = [0, 384], sizes = [8, 128], strides = [1, 1]} : vector<8x512xf32> to vector<8x128xf32>
    %401 = arith.mulf %398, %335 : vector<8x128xf32>
    %402 = arith.mulf %397, %399 : vector<8x128xf32>
    %403 = arith.addf %401, %402 : vector<8x128xf32>
    %404 = math.tanh %403 : vector<8x128xf32>
    %405 = arith.mulf %400, %404 : vector<8x128xf32>
    %406 = tpu.concatenate %337, %358 in 1 : vector<8x128xf32>, vector<8x128xf32> -> vector<8x256xf32>
    %c0_119 = arith.constant 0 : index
    %c0_120 = arith.constant 0 : index
    %407 = vector.load %arg5[%c0_119, %c0_120] : memref<256x512xf32, #tpu.memory_space<vmem>>, vector<256x512xf32>
    %cst_121 = arith.constant dense<0.000000e+00> : vector<8x512xf32>
    %408 = tpu.matmul %406, %407, %cst_121 {dimension_numbers = #tpu.dot_dimension_numbers<[1], [0], [0], [1], [0, 0, 1, 1], [], []>} : vector<8x256xf32>, vector<256x512xf32>, vector<8x512xf32> -> vector<8x512xf32>
    %c2_122 = arith.constant 2 : index
    %c0_123 = arith.constant 0 : index
    %c0_124 = arith.constant 0 : index
    %409 = vector.load %arg6[%c2_122, %c0_123, %c0_124] : memref<3x1x512xf32, #tpu.memory_space<vmem>>, vector<1x1x512xf32>
    %410 = vector.shape_cast %409 : vector<1x1x512xf32> to vector<1x512xf32>
    %411 = vector.broadcast %410 : vector<1x512xf32> to vector<8x512xf32>
    %412 = arith.addf %408, %411 : vector<8x512xf32>
    %413 = math.tanh %412 : vector<8x512xf32>
    %414 = vector.broadcast %9 : vector<1x512xf32> to vector<8x512xf32>
    %415 = arith.mulf %413, %414 : vector<8x512xf32>
    %416 = vector.broadcast %12 : vector<1x512xf32> to vector<8x512xf32>
    %417 = arith.addf %415, %416 : vector<8x512xf32>
    %418 = vector.extract_strided_slice %417 {offsets = [0, 0], sizes = [8, 128], strides = [1, 1]} : vector<8x512xf32> to vector<8x128xf32>
    %419 = vector.extract_strided_slice %417 {offsets = [0, 128], sizes = [8, 128], strides = [1, 1]} : vector<8x512xf32> to vector<8x128xf32>
    %420 = vector.extract_strided_slice %417 {offsets = [0, 256], sizes = [8, 128], strides = [1, 1]} : vector<8x512xf32> to vector<8x128xf32>
    %421 = vector.extract_strided_slice %417 {offsets = [0, 384], sizes = [8, 128], strides = [1, 1]} : vector<8x512xf32> to vector<8x128xf32>
    %422 = arith.mulf %419, %356 : vector<8x128xf32>
    %423 = arith.mulf %418, %420 : vector<8x128xf32>
    %424 = arith.addf %422, %423 : vector<8x128xf32>
    %425 = math.tanh %424 : vector<8x128xf32>
    %426 = arith.mulf %421, %425 : vector<8x128xf32>
    %427 = vector.extract_strided_slice %0 {offsets = [0, 7], sizes = [8, 1], strides = [1, 1]} : vector<8x8xf32> to vector<8x1xf32>
    %c0_125 = arith.constant 0 : index
    %c0_126 = arith.constant 0 : index
    %428 = vector.load %arg2[%c0_125, %c0_126] : memref<1x512xf32, #tpu.memory_space<vmem>>, vector<1x512xf32>
    %429 = vector.broadcast %427 : vector<8x1xf32> to vector<8x512xf32>
    %430 = vector.broadcast %428 : vector<1x512xf32> to vector<8x512xf32>
    %431 = arith.mulf %429, %430 : vector<8x512xf32>
    %c0_127 = arith.constant 0 : index
    %c0_128 = arith.constant 0 : index
    %432 = vector.load %arg3[%c0_127, %c0_128] : memref<128x512xf32, #tpu.memory_space<vmem>>, vector<128x512xf32>
    %cst_129 = arith.constant dense<0.000000e+00> : vector<8x512xf32>
    %433 = tpu.matmul %384, %432, %cst_129 {dimension_numbers = #tpu.dot_dimension_numbers<[1], [0], [0], [1], [0, 0, 1, 1], [], []>} : vector<8x128xf32>, vector<128x512xf32>, vector<8x512xf32> -> vector<8x512xf32>
    %434 = arith.addf %431, %433 : vector<8x512xf32>
    %c0_130 = arith.constant 0 : index
    %c0_131 = arith.constant 0 : index
    %c0_132 = arith.constant 0 : index
    %435 = vector.load %arg6[%c0_130, %c0_131, %c0_132] : memref<3x1x512xf32, #tpu.memory_space<vmem>>, vector<1x1x512xf32>
    %436 = vector.shape_cast %435 : vector<1x1x512xf32> to vector<1x512xf32>
    %437 = vector.broadcast %436 : vector<1x512xf32> to vector<8x512xf32>
    %438 = arith.addf %434, %437 : vector<8x512xf32>
    %439 = math.tanh %438 : vector<8x512xf32>
    %440 = vector.broadcast %9 : vector<1x512xf32> to vector<8x512xf32>
    %441 = arith.mulf %439, %440 : vector<8x512xf32>
    %442 = vector.broadcast %12 : vector<1x512xf32> to vector<8x512xf32>
    %443 = arith.addf %441, %442 : vector<8x512xf32>
    %444 = vector.extract_strided_slice %443 {offsets = [0, 0], sizes = [8, 128], strides = [1, 1]} : vector<8x512xf32> to vector<8x128xf32>
    %445 = vector.extract_strided_slice %443 {offsets = [0, 128], sizes = [8, 128], strides = [1, 1]} : vector<8x512xf32> to vector<8x128xf32>
    %446 = vector.extract_strided_slice %443 {offsets = [0, 256], sizes = [8, 128], strides = [1, 1]} : vector<8x512xf32> to vector<8x128xf32>
    %447 = vector.extract_strided_slice %443 {offsets = [0, 384], sizes = [8, 128], strides = [1, 1]} : vector<8x512xf32> to vector<8x128xf32>
    %448 = arith.mulf %445, %382 : vector<8x128xf32>
    %449 = arith.mulf %444, %446 : vector<8x128xf32>
    %450 = arith.addf %448, %449 : vector<8x128xf32>
    %451 = math.tanh %450 : vector<8x128xf32>
    %452 = arith.mulf %447, %451 : vector<8x128xf32>
    %453 = tpu.concatenate %384, %405 in 1 : vector<8x128xf32>, vector<8x128xf32> -> vector<8x256xf32>
    %c0_133 = arith.constant 0 : index
    %c0_134 = arith.constant 0 : index
    %454 = vector.load %arg4[%c0_133, %c0_134] : memref<256x512xf32, #tpu.memory_space<vmem>>, vector<256x512xf32>
    %cst_135 = arith.constant dense<0.000000e+00> : vector<8x512xf32>
    %455 = tpu.matmul %453, %454, %cst_135 {dimension_numbers = #tpu.dot_dimension_numbers<[1], [0], [0], [1], [0, 0, 1, 1], [], []>} : vector<8x256xf32>, vector<256x512xf32>, vector<8x512xf32> -> vector<8x512xf32>
    %c1_136 = arith.constant 1 : index
    %c0_137 = arith.constant 0 : index
    %c0_138 = arith.constant 0 : index
    %456 = vector.load %arg6[%c1_136, %c0_137, %c0_138] : memref<3x1x512xf32, #tpu.memory_space<vmem>>, vector<1x1x512xf32>
    %457 = vector.shape_cast %456 : vector<1x1x512xf32> to vector<1x512xf32>
    %458 = vector.broadcast %457 : vector<1x512xf32> to vector<8x512xf32>
    %459 = arith.addf %455, %458 : vector<8x512xf32>
    %460 = math.tanh %459 : vector<8x512xf32>
    %461 = vector.broadcast %9 : vector<1x512xf32> to vector<8x512xf32>
    %462 = arith.mulf %460, %461 : vector<8x512xf32>
    %463 = vector.broadcast %12 : vector<1x512xf32> to vector<8x512xf32>
    %464 = arith.addf %462, %463 : vector<8x512xf32>
    %465 = vector.extract_strided_slice %464 {offsets = [0, 0], sizes = [8, 128], strides = [1, 1]} : vector<8x512xf32> to vector<8x128xf32>
    %466 = vector.extract_strided_slice %464 {offsets = [0, 128], sizes = [8, 128], strides = [1, 1]} : vector<8x512xf32> to vector<8x128xf32>
    %467 = vector.extract_strided_slice %464 {offsets = [0, 256], sizes = [8, 128], strides = [1, 1]} : vector<8x512xf32> to vector<8x128xf32>
    %468 = vector.extract_strided_slice %464 {offsets = [0, 384], sizes = [8, 128], strides = [1, 1]} : vector<8x512xf32> to vector<8x128xf32>
    %469 = arith.mulf %466, %403 : vector<8x128xf32>
    %470 = arith.mulf %465, %467 : vector<8x128xf32>
    %471 = arith.addf %469, %470 : vector<8x128xf32>
    %472 = math.tanh %471 : vector<8x128xf32>
    %473 = arith.mulf %468, %472 : vector<8x128xf32>
    %474 = tpu.concatenate %405, %426 in 1 : vector<8x128xf32>, vector<8x128xf32> -> vector<8x256xf32>
    %c0_139 = arith.constant 0 : index
    %c0_140 = arith.constant 0 : index
    %475 = vector.load %arg5[%c0_139, %c0_140] : memref<256x512xf32, #tpu.memory_space<vmem>>, vector<256x512xf32>
    %cst_141 = arith.constant dense<0.000000e+00> : vector<8x512xf32>
    %476 = tpu.matmul %474, %475, %cst_141 {dimension_numbers = #tpu.dot_dimension_numbers<[1], [0], [0], [1], [0, 0, 1, 1], [], []>} : vector<8x256xf32>, vector<256x512xf32>, vector<8x512xf32> -> vector<8x512xf32>
    %c2_142 = arith.constant 2 : index
    %c0_143 = arith.constant 0 : index
    %c0_144 = arith.constant 0 : index
    %477 = vector.load %arg6[%c2_142, %c0_143, %c0_144] : memref<3x1x512xf32, #tpu.memory_space<vmem>>, vector<1x1x512xf32>
    %478 = vector.shape_cast %477 : vector<1x1x512xf32> to vector<1x512xf32>
    %479 = vector.broadcast %478 : vector<1x512xf32> to vector<8x512xf32>
    %480 = arith.addf %476, %479 : vector<8x512xf32>
    %481 = math.tanh %480 : vector<8x512xf32>
    %482 = vector.broadcast %9 : vector<1x512xf32> to vector<8x512xf32>
    %483 = arith.mulf %481, %482 : vector<8x512xf32>
    %484 = vector.broadcast %12 : vector<1x512xf32> to vector<8x512xf32>
    %485 = arith.addf %483, %484 : vector<8x512xf32>
    %486 = vector.extract_strided_slice %485 {offsets = [0, 0], sizes = [8, 128], strides = [1, 1]} : vector<8x512xf32> to vector<8x128xf32>
    %487 = vector.extract_strided_slice %485 {offsets = [0, 128], sizes = [8, 128], strides = [1, 1]} : vector<8x512xf32> to vector<8x128xf32>
    %488 = vector.extract_strided_slice %485 {offsets = [0, 256], sizes = [8, 128], strides = [1, 1]} : vector<8x512xf32> to vector<8x128xf32>
    %489 = vector.extract_strided_slice %485 {offsets = [0, 384], sizes = [8, 128], strides = [1, 1]} : vector<8x512xf32> to vector<8x128xf32>
    %490 = arith.mulf %487, %424 : vector<8x128xf32>
    %491 = arith.mulf %486, %488 : vector<8x128xf32>
    %492 = arith.addf %490, %491 : vector<8x128xf32>
    %493 = math.tanh %492 : vector<8x128xf32>
    %494 = arith.mulf %489, %493 : vector<8x128xf32>
    %495 = tpu.concatenate %452, %473 in 1 : vector<8x128xf32>, vector<8x128xf32> -> vector<8x256xf32>
    %c0_145 = arith.constant 0 : index
    %c0_146 = arith.constant 0 : index
    %496 = vector.load %arg4[%c0_145, %c0_146] : memref<256x512xf32, #tpu.memory_space<vmem>>, vector<256x512xf32>
    %cst_147 = arith.constant dense<0.000000e+00> : vector<8x512xf32>
    %497 = tpu.matmul %495, %496, %cst_147 {dimension_numbers = #tpu.dot_dimension_numbers<[1], [0], [0], [1], [0, 0, 1, 1], [], []>} : vector<8x256xf32>, vector<256x512xf32>, vector<8x512xf32> -> vector<8x512xf32>
    %c1_148 = arith.constant 1 : index
    %c0_149 = arith.constant 0 : index
    %c0_150 = arith.constant 0 : index
    %498 = vector.load %arg6[%c1_148, %c0_149, %c0_150] : memref<3x1x512xf32, #tpu.memory_space<vmem>>, vector<1x1x512xf32>
    %499 = vector.shape_cast %498 : vector<1x1x512xf32> to vector<1x512xf32>
    %500 = vector.broadcast %499 : vector<1x512xf32> to vector<8x512xf32>
    %501 = arith.addf %497, %500 : vector<8x512xf32>
    %502 = math.tanh %501 : vector<8x512xf32>
    %503 = vector.broadcast %9 : vector<1x512xf32> to vector<8x512xf32>
    %504 = arith.mulf %502, %503 : vector<8x512xf32>
    %505 = vector.broadcast %12 : vector<1x512xf32> to vector<8x512xf32>
    %506 = arith.addf %504, %505 : vector<8x512xf32>
    %507 = vector.extract_strided_slice %506 {offsets = [0, 0], sizes = [8, 128], strides = [1, 1]} : vector<8x512xf32> to vector<8x128xf32>
    %508 = vector.extract_strided_slice %506 {offsets = [0, 128], sizes = [8, 128], strides = [1, 1]} : vector<8x512xf32> to vector<8x128xf32>
    %509 = vector.extract_strided_slice %506 {offsets = [0, 256], sizes = [8, 128], strides = [1, 1]} : vector<8x512xf32> to vector<8x128xf32>
    %510 = vector.extract_strided_slice %506 {offsets = [0, 384], sizes = [8, 128], strides = [1, 1]} : vector<8x512xf32> to vector<8x128xf32>
    %511 = arith.mulf %508, %471 : vector<8x128xf32>
    %512 = arith.mulf %507, %509 : vector<8x128xf32>
    %513 = arith.addf %511, %512 : vector<8x128xf32>
    %514 = math.tanh %513 : vector<8x128xf32>
    %515 = arith.mulf %510, %514 : vector<8x128xf32>
    %516 = tpu.concatenate %473, %494 in 1 : vector<8x128xf32>, vector<8x128xf32> -> vector<8x256xf32>
    %c0_151 = arith.constant 0 : index
    %c0_152 = arith.constant 0 : index
    %517 = vector.load %arg5[%c0_151, %c0_152] : memref<256x512xf32, #tpu.memory_space<vmem>>, vector<256x512xf32>
    %cst_153 = arith.constant dense<0.000000e+00> : vector<8x512xf32>
    %518 = tpu.matmul %516, %517, %cst_153 {dimension_numbers = #tpu.dot_dimension_numbers<[1], [0], [0], [1], [0, 0, 1, 1], [], []>} : vector<8x256xf32>, vector<256x512xf32>, vector<8x512xf32> -> vector<8x512xf32>
    %c2_154 = arith.constant 2 : index
    %c0_155 = arith.constant 0 : index
    %c0_156 = arith.constant 0 : index
    %519 = vector.load %arg6[%c2_154, %c0_155, %c0_156] : memref<3x1x512xf32, #tpu.memory_space<vmem>>, vector<1x1x512xf32>
    %520 = vector.shape_cast %519 : vector<1x1x512xf32> to vector<1x512xf32>
    %521 = vector.broadcast %520 : vector<1x512xf32> to vector<8x512xf32>
    %522 = arith.addf %518, %521 : vector<8x512xf32>
    %523 = math.tanh %522 : vector<8x512xf32>
    %524 = vector.broadcast %9 : vector<1x512xf32> to vector<8x512xf32>
    %525 = arith.mulf %523, %524 : vector<8x512xf32>
    %526 = vector.broadcast %12 : vector<1x512xf32> to vector<8x512xf32>
    %527 = arith.addf %525, %526 : vector<8x512xf32>
    %528 = vector.extract_strided_slice %527 {offsets = [0, 0], sizes = [8, 128], strides = [1, 1]} : vector<8x512xf32> to vector<8x128xf32>
    %529 = vector.extract_strided_slice %527 {offsets = [0, 128], sizes = [8, 128], strides = [1, 1]} : vector<8x512xf32> to vector<8x128xf32>
    %530 = vector.extract_strided_slice %527 {offsets = [0, 256], sizes = [8, 128], strides = [1, 1]} : vector<8x512xf32> to vector<8x128xf32>
    %531 = vector.extract_strided_slice %527 {offsets = [0, 384], sizes = [8, 128], strides = [1, 1]} : vector<8x512xf32> to vector<8x128xf32>
    %532 = arith.mulf %529, %492 : vector<8x128xf32>
    %533 = arith.mulf %528, %530 : vector<8x128xf32>
    %534 = arith.addf %532, %533 : vector<8x128xf32>
    %535 = math.tanh %534 : vector<8x128xf32>
    %536 = arith.mulf %531, %535 : vector<8x128xf32>
    %537 = tpu.concatenate %515, %536 in 1 : vector<8x128xf32>, vector<8x128xf32> -> vector<8x256xf32>
    %c0_157 = arith.constant 0 : index
    %c0_158 = arith.constant 0 : index
    %538 = vector.load %arg5[%c0_157, %c0_158] : memref<256x512xf32, #tpu.memory_space<vmem>>, vector<256x512xf32>
    %cst_159 = arith.constant dense<0.000000e+00> : vector<8x512xf32>
    %539 = tpu.matmul %537, %538, %cst_159 {dimension_numbers = #tpu.dot_dimension_numbers<[1], [0], [0], [1], [0, 0, 1, 1], [], []>} : vector<8x256xf32>, vector<256x512xf32>, vector<8x512xf32> -> vector<8x512xf32>
    %c2_160 = arith.constant 2 : index
    %c0_161 = arith.constant 0 : index
    %c0_162 = arith.constant 0 : index
    %540 = vector.load %arg6[%c2_160, %c0_161, %c0_162] : memref<3x1x512xf32, #tpu.memory_space<vmem>>, vector<1x1x512xf32>
    %541 = vector.shape_cast %540 : vector<1x1x512xf32> to vector<1x512xf32>
    %542 = vector.broadcast %541 : vector<1x512xf32> to vector<8x512xf32>
    %543 = arith.addf %539, %542 : vector<8x512xf32>
    %544 = math.tanh %543 : vector<8x512xf32>
    %545 = vector.broadcast %9 : vector<1x512xf32> to vector<8x512xf32>
    %546 = arith.mulf %544, %545 : vector<8x512xf32>
    %547 = vector.broadcast %12 : vector<1x512xf32> to vector<8x512xf32>
    %548 = arith.addf %546, %547 : vector<8x512xf32>
    %549 = vector.extract_strided_slice %548 {offsets = [0, 0], sizes = [8, 128], strides = [1, 1]} : vector<8x512xf32> to vector<8x128xf32>
    %550 = vector.extract_strided_slice %548 {offsets = [0, 128], sizes = [8, 128], strides = [1, 1]} : vector<8x512xf32> to vector<8x128xf32>
    %551 = vector.extract_strided_slice %548 {offsets = [0, 256], sizes = [8, 128], strides = [1, 1]} : vector<8x512xf32> to vector<8x128xf32>
    %552 = vector.extract_strided_slice %548 {offsets = [0, 384], sizes = [8, 128], strides = [1, 1]} : vector<8x512xf32> to vector<8x128xf32>
    %553 = arith.mulf %550, %534 : vector<8x128xf32>
    %554 = arith.mulf %549, %551 : vector<8x128xf32>
    %555 = arith.addf %553, %554 : vector<8x128xf32>
    %556 = math.tanh %555 : vector<8x128xf32>
    %557 = arith.mulf %552, %556 : vector<8x128xf32>
    %c0_163 = arith.constant 0 : index
    %c0_164 = arith.constant 0 : index
    %558 = vector.load %arg7[%c0_163, %c0_164] : memref<1x128xf32, #tpu.memory_space<vmem>>, vector<1x128xf32>
    %559 = tpu.iota {dimensions = array<i32: 1>} : vector<1x8xi32>
    %cst_165 = arith.constant 0.000000e+00 : f32
    %560 = vector.broadcast %cst_165 : f32 to vector<8x8xf32>
    %561 = vector.broadcast %558 : vector<1x128xf32> to vector<8x128xf32>
    %562 = arith.mulf %154, %561 : vector<8x128xf32>
    %cst_166 = arith.constant dense<0.000000e+00> : vector<8xf32>
    %563 = vector.multi_reduction <add>, %562, %cst_166 [1] : vector<8x128xf32> to vector<8xf32>
    %564 = vector.shape_cast %563 : vector<8xf32> to vector<8x1xf32>
    %c0_i32 = arith.constant 0 : i32
    %565 = vector.broadcast %c0_i32 : i32 to vector<1x8xi32>
    %566 = arith.cmpi eq, %559, %565 : vector<1x8xi32>
    %cst_167 = arith.constant 0.000000e+00 : f32
    %567 = vector.shape_cast %566 : vector<1x8xi1> to vector<1x8xi1>
    %568 = vector.broadcast %567 : vector<1x8xi1> to vector<8x8xi1>
    %569 = vector.shape_cast %564 : vector<8x1xf32> to vector<8x1xf32>
    %570 = vector.broadcast %569 : vector<8x1xf32> to vector<8x8xf32>
    %571 = vector.broadcast %cst_167 : f32 to vector<8x8xf32>
    %572 = arith.select %568, %570, %571 : vector<8x8xi1>, vector<8x8xf32>
    %573 = arith.addf %560, %572 : vector<8x8xf32>
    %574 = vector.broadcast %558 : vector<1x128xf32> to vector<8x128xf32>
    %575 = arith.mulf %222, %574 : vector<8x128xf32>
    %cst_168 = arith.constant dense<0.000000e+00> : vector<8xf32>
    %576 = vector.multi_reduction <add>, %575, %cst_168 [1] : vector<8x128xf32> to vector<8xf32>
    %577 = vector.shape_cast %576 : vector<8xf32> to vector<8x1xf32>
    %c1_i32 = arith.constant 1 : i32
    %578 = vector.broadcast %c1_i32 : i32 to vector<1x8xi32>
    %579 = arith.cmpi eq, %559, %578 : vector<1x8xi32>
    %cst_169 = arith.constant 0.000000e+00 : f32
    %580 = vector.shape_cast %579 : vector<1x8xi1> to vector<1x8xi1>
    %581 = vector.broadcast %580 : vector<1x8xi1> to vector<8x8xi1>
    %582 = vector.shape_cast %577 : vector<8x1xf32> to vector<8x1xf32>
    %583 = vector.broadcast %582 : vector<8x1xf32> to vector<8x8xf32>
    %584 = vector.broadcast %cst_169 : f32 to vector<8x8xf32>
    %585 = arith.select %581, %583, %584 : vector<8x8xi1>, vector<8x8xf32>
    %586 = arith.addf %573, %585 : vector<8x8xf32>
    %587 = vector.broadcast %558 : vector<1x128xf32> to vector<8x128xf32>
    %588 = arith.mulf %290, %587 : vector<8x128xf32>
    %cst_170 = arith.constant dense<0.000000e+00> : vector<8xf32>
    %589 = vector.multi_reduction <add>, %588, %cst_170 [1] : vector<8x128xf32> to vector<8xf32>
    %590 = vector.shape_cast %589 : vector<8xf32> to vector<8x1xf32>
    %c2_i32 = arith.constant 2 : i32
    %591 = vector.broadcast %c2_i32 : i32 to vector<1x8xi32>
    %592 = arith.cmpi eq, %559, %591 : vector<1x8xi32>
    %cst_171 = arith.constant 0.000000e+00 : f32
    %593 = vector.shape_cast %592 : vector<1x8xi1> to vector<1x8xi1>
    %594 = vector.broadcast %593 : vector<1x8xi1> to vector<8x8xi1>
    %595 = vector.shape_cast %590 : vector<8x1xf32> to vector<8x1xf32>
    %596 = vector.broadcast %595 : vector<8x1xf32> to vector<8x8xf32>
    %597 = vector.broadcast %cst_171 : f32 to vector<8x8xf32>
    %598 = arith.select %594, %596, %597 : vector<8x8xi1>, vector<8x8xf32>
    %599 = arith.addf %586, %598 : vector<8x8xf32>
    %600 = vector.broadcast %558 : vector<1x128xf32> to vector<8x128xf32>
    %601 = arith.mulf %358, %600 : vector<8x128xf32>
    %cst_172 = arith.constant dense<0.000000e+00> : vector<8xf32>
    %602 = vector.multi_reduction <add>, %601, %cst_172 [1] : vector<8x128xf32> to vector<8xf32>
    %603 = vector.shape_cast %602 : vector<8xf32> to vector<8x1xf32>
    %c3_i32 = arith.constant 3 : i32
    %604 = vector.broadcast %c3_i32 : i32 to vector<1x8xi32>
    %605 = arith.cmpi eq, %559, %604 : vector<1x8xi32>
    %cst_173 = arith.constant 0.000000e+00 : f32
    %606 = vector.shape_cast %605 : vector<1x8xi1> to vector<1x8xi1>
    %607 = vector.broadcast %606 : vector<1x8xi1> to vector<8x8xi1>
    %608 = vector.shape_cast %603 : vector<8x1xf32> to vector<8x1xf32>
    %609 = vector.broadcast %608 : vector<8x1xf32> to vector<8x8xf32>
    %610 = vector.broadcast %cst_173 : f32 to vector<8x8xf32>
    %611 = arith.select %607, %609, %610 : vector<8x8xi1>, vector<8x8xf32>
    %612 = arith.addf %599, %611 : vector<8x8xf32>
    %613 = vector.broadcast %558 : vector<1x128xf32> to vector<8x128xf32>
    %614 = arith.mulf %426, %613 : vector<8x128xf32>
    %cst_174 = arith.constant dense<0.000000e+00> : vector<8xf32>
    %615 = vector.multi_reduction <add>, %614, %cst_174 [1] : vector<8x128xf32> to vector<8xf32>
    %616 = vector.shape_cast %615 : vector<8xf32> to vector<8x1xf32>
    %c4_i32 = arith.constant 4 : i32
    %617 = vector.broadcast %c4_i32 : i32 to vector<1x8xi32>
    %618 = arith.cmpi eq, %559, %617 : vector<1x8xi32>
    %cst_175 = arith.constant 0.000000e+00 : f32
    %619 = vector.shape_cast %618 : vector<1x8xi1> to vector<1x8xi1>
    %620 = vector.broadcast %619 : vector<1x8xi1> to vector<8x8xi1>
    %621 = vector.shape_cast %616 : vector<8x1xf32> to vector<8x1xf32>
    %622 = vector.broadcast %621 : vector<8x1xf32> to vector<8x8xf32>
    %623 = vector.broadcast %cst_175 : f32 to vector<8x8xf32>
    %624 = arith.select %620, %622, %623 : vector<8x8xi1>, vector<8x8xf32>
    %625 = arith.addf %612, %624 : vector<8x8xf32>
    %626 = vector.broadcast %558 : vector<1x128xf32> to vector<8x128xf32>
    %627 = arith.mulf %494, %626 : vector<8x128xf32>
    %cst_176 = arith.constant dense<0.000000e+00> : vector<8xf32>
    %628 = vector.multi_reduction <add>, %627, %cst_176 [1] : vector<8x128xf32> to vector<8xf32>
    %629 = vector.shape_cast %628 : vector<8xf32> to vector<8x1xf32>
    %c5_i32 = arith.constant 5 : i32
    %630 = vector.broadcast %c5_i32 : i32 to vector<1x8xi32>
    %631 = arith.cmpi eq, %559, %630 : vector<1x8xi32>
    %cst_177 = arith.constant 0.000000e+00 : f32
    %632 = vector.shape_cast %631 : vector<1x8xi1> to vector<1x8xi1>
    %633 = vector.broadcast %632 : vector<1x8xi1> to vector<8x8xi1>
    %634 = vector.shape_cast %629 : vector<8x1xf32> to vector<8x1xf32>
    %635 = vector.broadcast %634 : vector<8x1xf32> to vector<8x8xf32>
    %636 = vector.broadcast %cst_177 : f32 to vector<8x8xf32>
    %637 = arith.select %633, %635, %636 : vector<8x8xi1>, vector<8x8xf32>
    %638 = arith.addf %625, %637 : vector<8x8xf32>
    %639 = vector.broadcast %558 : vector<1x128xf32> to vector<8x128xf32>
    %640 = arith.mulf %536, %639 : vector<8x128xf32>
    %cst_178 = arith.constant dense<0.000000e+00> : vector<8xf32>
    %641 = vector.multi_reduction <add>, %640, %cst_178 [1] : vector<8x128xf32> to vector<8xf32>
    %642 = vector.shape_cast %641 : vector<8xf32> to vector<8x1xf32>
    %c6_i32 = arith.constant 6 : i32
    %643 = vector.broadcast %c6_i32 : i32 to vector<1x8xi32>
    %644 = arith.cmpi eq, %559, %643 : vector<1x8xi32>
    %cst_179 = arith.constant 0.000000e+00 : f32
    %645 = vector.shape_cast %644 : vector<1x8xi1> to vector<1x8xi1>
    %646 = vector.broadcast %645 : vector<1x8xi1> to vector<8x8xi1>
    %647 = vector.shape_cast %642 : vector<8x1xf32> to vector<8x1xf32>
    %648 = vector.broadcast %647 : vector<8x1xf32> to vector<8x8xf32>
    %649 = vector.broadcast %cst_179 : f32 to vector<8x8xf32>
    %650 = arith.select %646, %648, %649 : vector<8x8xi1>, vector<8x8xf32>
    %651 = arith.addf %638, %650 : vector<8x8xf32>
    %652 = vector.broadcast %558 : vector<1x128xf32> to vector<8x128xf32>
    %653 = arith.mulf %557, %652 : vector<8x128xf32>
    %cst_180 = arith.constant dense<0.000000e+00> : vector<8xf32>
    %654 = vector.multi_reduction <add>, %653, %cst_180 [1] : vector<8x128xf32> to vector<8xf32>
    %655 = vector.shape_cast %654 : vector<8xf32> to vector<8x1xf32>
    %c7_i32 = arith.constant 7 : i32
    %656 = vector.broadcast %c7_i32 : i32 to vector<1x8xi32>
    %657 = arith.cmpi eq, %559, %656 : vector<1x8xi32>
    %cst_181 = arith.constant 0.000000e+00 : f32
    %658 = vector.shape_cast %657 : vector<1x8xi1> to vector<1x8xi1>
    %659 = vector.broadcast %658 : vector<1x8xi1> to vector<8x8xi1>
    %660 = vector.shape_cast %655 : vector<8x1xf32> to vector<8x1xf32>
    %661 = vector.broadcast %660 : vector<8x1xf32> to vector<8x8xf32>
    %662 = vector.broadcast %cst_181 : f32 to vector<8x8xf32>
    %663 = arith.select %659, %661, %662 : vector<8x8xi1>, vector<8x8xf32>
    %664 = arith.addf %651, %663 : vector<8x8xf32>
    %c0_182 = arith.constant 0 : index
    %c0_183 = arith.constant 0 : index
    %665 = vector.load %arg8[%c0_182, %c0_183] : memref<1x1xf32, #tpu.memory_space<vmem>>, vector<1x1xf32>
    %666 = vector.broadcast %665 : vector<1x1xf32> to vector<8x8xf32>
    %667 = arith.addf %664, %666 : vector<8x8xf32>
    %c0_184 = arith.constant 0 : index
    %c0_185 = arith.constant 0 : index
    %668 = vector.load %arg9[%c0_184, %c0_185] : memref<8x8xf32, #tpu.memory_space<vmem>>, vector<8x8xf32>
    tpu.vector_store %arg9[%c0_184, %c0_185], %667 {strides = array<i32>} : memref<8x8xf32, #tpu.memory_space<vmem>>, vector<8x8xf32>,
    return
  }
  func.func @transform_0(%arg0: i32) -> (i32, i32) {
    %c0_i32 = arith.constant 0 : i32
    %c0_i32_0 = arith.constant 0 : i32
    return %arg0, %c0_i32 : i32, i32
  }
  func.func @transform_1(%arg0: i32) -> (i32, i32) {
    %c0_i32 = arith.constant 0 : i32
    %c0_i32_0 = arith.constant 0 : i32
    %c0_i32_1 = arith.constant 0 : i32
    return %c0_i32, %c0_i32_0 : i32, i32
  }
  func.func @transform_2(%arg0: i32) -> (i32, i32) {
    %c0_i32 = arith.constant 0 : i32
    %c0_i32_0 = arith.constant 0 : i32
    %c0_i32_1 = arith.constant 0 : i32
    return %c0_i32, %c0_i32_0 : i32, i32
  }
  func.func @transform_3(%arg0: i32) -> (i32, i32) {
    %c0_i32 = arith.constant 0 : i32
    %c0_i32_0 = arith.constant 0 : i32
    %c0_i32_1 = arith.constant 0 : i32
    return %c0_i32, %c0_i32_0 : i32, i32
  }
  func.func @transform_4(%arg0: i32) -> (i32, i32) {
    %c0_i32 = arith.constant 0 : i32
    %c0_i32_0 = arith.constant 0 : i32
    %c0_i32_1 = arith.constant 0 : i32
    return %c0_i32, %c0_i32_0 : i32, i32
  }
  func.func @transform_5(%arg0: i32) -> (i32, i32, i32) {
    %c0_i32 = arith.constant 0 : i32
    %c0_i32_0 = arith.constant 0 : i32
    %c0_i32_1 = arith.constant 0 : i32
    %c0_i32_2 = arith.constant 0 : i32
    return %c0_i32, %c0_i32_0, %c0_i32_1 : i32, i32, i32
  }
  func.func @transform_6(%arg0: i32) -> (i32, i32) {
    %c0_i32 = arith.constant 0 : i32
    %c0_i32_0 = arith.constant 0 : i32
    %c0_i32_1 = arith.constant 0 : i32
    return %c0_i32, %c0_i32_0 : i32, i32
  }
  func.func @transform_7(%arg0: i32) -> (i32, i32) {
    %c0_i32 = arith.constant 0 : i32
    %c0_i32_0 = arith.constant 0 : i32
    %c0_i32_1 = arith.constant 0 : i32
    return %c0_i32, %c0_i32_0 : i32, i32
  }
  func.func @transform_8(%arg0: i32) -> (i32, i32) {
    %c0_i32 = arith.constant 0 : i32
    %c0_i32_0 = arith.constant 0 : i32
    return %arg0, %c0_i32 : i32, i32
  }
}

</mosaic_0001>

<llo_original>
// kernel: sequence_one_channel5.1
$region0: #{sequence_one_channel5.1}
  #allocation0 [shape = 'u32[]', space=smem, size = 0x4, offset = 0x4, fixed_abs, tag = 'smem constant byte address 0x4 - core index']
  #allocation1 [shape = 'u32[144,128]{1,0:T(1,128)}', space=vmem, size = 0x12000, scoped, tag = 'internal scratch']
  #allocation2 [shape = 'f32[1,1]{1,0:T(1,128)S(1)}', space=vmem, size = 0x200, scoped, tag = 'scoped memory for sequence_one_channel5.1']
  %s0 = inlined_call_operand.vmem [shape: f32[8,8], index: 0, kind: input, shape index: {}]
  %s1 = inlined_call_operand.vmem [shape: f32[1,512], index: 1, kind: input, shape index: {}]
  %s2 = inlined_call_operand.vmem [shape: f32[128,512], index: 2, kind: input, shape index: {}]
  %s3 = inlined_call_operand.vmem [shape: f32[256,512], index: 3, kind: input, shape index: {}]
  %s4 = inlined_call_operand.vmem [shape: f32[256,512], index: 4, kind: input, shape index: {}]
  %s5 = inlined_call_operand.vmem [shape: f32[3,1,512], index: 5, kind: input, shape index: {}]
  %s6 = inlined_call_operand.vmem [shape: f32[1,128], index: 6, kind: input, shape index: {}]
  %s7 = inlined_call_operand.<no memory space> [shape: f32[1,1], index: 7, kind: input, shape index: {}]
  %s8 = inlined_call_operand.vmem [shape: f32[8,8], index: 8, kind: output, shape index: {}]
  %s9 = sld [smem:[#allocation0]]
  $region42: #{sequence_one_channel5.1} parent=0
    _
  %s11 = ssub.s32 1, %s9
  %s12 = scalar_select 0, %s11, %s9
  %v13 = vstv %s7
  %14 = vst [vmem:[#allocation2] sm:$0x1] %v13
  // Predicated region
  $region2: #{sequence_one_channel5.1} parent=0 // pred_check
    _
  $region3: #{sequence_one_channel5.1} parent=0 // pred_check_branch
    %16 = sbr.rel (0) target = $region5
  $region4: #{sequence_one_channel5.1} parent=0 // pred_region
    _
  $region5: #{sequence_one_channel5.1} parent=0 // pred_fallthru
    _
  // Predicated region
  $region6: #{sequence_one_channel5.1} parent=0 // pred_check
    _
  $region7: #{sequence_one_channel5.1} parent=0 // pred_check_branch
    %18 = sbr.rel (0) target = $region9
  $region8: #{sequence_one_channel5.1} parent=0 // pred_region
    _
  $region9: #{sequence_one_channel5.1} parent=0 // pred_fallthru
    _
  // Predicated region
  $region10: #{sequence_one_channel5.1} parent=0 // pred_check
    _
  $region11: #{sequence_one_channel5.1} parent=0 // pred_check_branch
    %20 = sbr.rel (0) target = $region13
  $region12: #{sequence_one_channel5.1} parent=0 // pred_region
    _
  $region13: #{sequence_one_channel5.1} parent=0 // pred_fallthru
    _
  // Predicated region
  $region14: #{sequence_one_channel5.1} parent=0 // pred_check
    _
  $region15: #{sequence_one_channel5.1} parent=0 // pred_check_branch
    %22 = sbr.rel (0) target = $region17
  $region16: #{sequence_one_channel5.1} parent=0 // pred_region
    _
  $region17: #{sequence_one_channel5.1} parent=0 // pred_fallthru
    _
  // Predicated region
  $region18: #{sequence_one_channel5.1} parent=0 // pred_check
    _
  $region19: #{sequence_one_channel5.1} parent=0 // pred_check_branch
    %24 = sbr.rel (0) target = $region21
  $region20: #{sequence_one_channel5.1} parent=0 // pred_region
    _
  $region21: #{sequence_one_channel5.1} parent=0 // pred_fallthru
    _
  // Predicated region
  $region22: #{sequence_one_channel5.1} parent=0 // pred_check
    _
  $region23: #{sequence_one_channel5.1} parent=0 // pred_check_branch
    %26 = sbr.rel (0) target = $region25
  $region24: #{sequence_one_channel5.1} parent=0 // pred_region
    _
  $region25: #{sequence_one_channel5.1} parent=0 // pred_fallthru
    _
  // Predicated region
  $region26: #{sequence_one_channel5.1} parent=0 // pred_check
    _
  $region27: #{sequence_one_channel5.1} parent=0 // pred_check_branch
    %28 = sbr.rel (0) target = $region29
  $region28: #{sequence_one_channel5.1} parent=0 // pred_region
    _
  $region29: #{sequence_one_channel5.1} parent=0 // pred_fallthru
    _
  // Predicated region
  $region30: #{sequence_one_channel5.1} parent=0 // pred_check
    _
  $region31: #{sequence_one_channel5.1} parent=0 // pred_check_branch
    %30 = sbr.rel (0) target = $region33
  $region32: #{sequence_one_channel5.1} parent=0 // pred_region
    _
  $region33: #{sequence_one_channel5.1} parent=0 // pred_fallthru
    _
  %v31 = vld [vmem:[%s0] sm:$0xff]
  %v32 = vlaneseq
  %v33 = vand.u32 %v32, 127
  %v34 = vadd.s32 %v33, 128
  %v35 = vadd.s32 %v33, 256
  %v36 = vadd.s32 %v33, 384
  %vm37 = vcmp.ge.s32.totalorder %v33, 256
  %vm38 = vcmp.ge.s32.totalorder %v34, 256
  %vm39 = vcmp.ge.s32.totalorder %v35, 256
  %vm40 = vcmp.ge.s32.totalorder %v36, 256
  %vm41 = vcmp.lt.s32.totalorder %v33, 384
  %vm42 = vcmp.lt.s32.totalorder %v34, 384
  %vm43 = vcmp.lt.s32.totalorder %v35, 384
  %vm44 = vcmp.lt.s32.totalorder %v36, 384
  %vm45 = vmand %vm37, %vm41
  %vm46 = vmand %vm38, %vm42
  %vm47 = vmand %vm39, %vm43
  %vm48 = vmand %vm40, %vm44
  %v49 = vsel %vm45, 1.0, 0.5
  %v50 = vsel %vm46, 1.0, 0.5
  %v51 = vsel %vm47, 1.0, 0.5
  %v52 = vsel %vm48, 1.0, 0.5
  %v53 = vsel %vm45, 0.0, 0.5
  %v54 = vsel %vm46, 0.0, 0.5
  %v55 = vsel %vm47, 0.0, 0.5
  %v56 = vsel %vm48, 0.0, 0.5
  %v57 = vld [vmem:[%s1] sm:$0xf]
  %59 = vset.pattern.permute.xlu0 0
  %60 = vperm.xlu0 %59, %v31
  %v61 = vpop.permute.xlu0 %60
  %v64 = vlaneseq
  %v65 = vshrl.u32 %v64, 7
  %v66 = vsub.s32 0, %v65
  %v67 = vrot.slane %v57, %v66
  %v68 = vlaneseq
  %v69 = vshrl.u32 %v68, 7
  %v70 = vsub.s32 1, %v69
  %v71 = vrot.slane %v57, %v70
  %v72 = vlaneseq
  %v73 = vshrl.u32 %v72, 7
  %v74 = vsub.s32 2, %v73
  %v75 = vrot.slane %v57, %v74
  %v76 = vlaneseq
  %v77 = vshrl.u32 %v76, 7
  %v78 = vsub.s32 3, %v77
  %v79 = vrot.slane %v57, %v78
  %v84 = vmul.f32 %v61, %v67
  %v85 = vmul.f32 %v61, %v71
  %v86 = vmul.f32 %v61, %v75
  %v87 = vmul.f32 %v61, %v79
  %v88 = vld [vmem:[%s2] sm:$0xff]
  %v89 = vld [vmem:[%s2 + $0x8] sm:$0xff]
  %v90 = vld [vmem:[%s2 + $0x10] sm:$0xff]
  %v91 = vld [vmem:[%s2 + $0x18] sm:$0xff]
  %v92 = vld [vmem:[%s2 + $0x20] sm:$0xff]
  %v93 = vld [vmem:[%s2 + $0x28] sm:$0xff]
  %v94 = vld [vmem:[%s2 + $0x30] sm:$0xff]
  %v95 = vld [vmem:[%s2 + $0x38] sm:$0xff]
  %v96 = vld [vmem:[%s2 + $0x40] sm:$0xff]
  %v97 = vld [vmem:[%s2 + $0x48] sm:$0xff]
  %v98 = vld [vmem:[%s2 + $0x50] sm:$0xff]
  %v99 = vld [vmem:[%s2 + $0x58] sm:$0xff]
  %v100 = vld [vmem:[%s2 + $0x60] sm:$0xff]
  %v101 = vld [vmem:[%s2 + $0x68] sm:$0xff]
  %v102 = vld [vmem:[%s2 + $0x70] sm:$0xff]
  %v103 = vld [vmem:[%s2 + $0x78] sm:$0xff]
  %v104 = vld [vmem:[%s2 + $0x80] sm:$0xff]
  %v105 = vld [vmem:[%s2 + $0x88] sm:$0xff]
  %v106 = vld [vmem:[%s2 + $0x90] sm:$0xff]
  %v107 = vld [vmem:[%s2 + $0x98] sm:$0xff]
  %v108 = vld [vmem:[%s2 + $0xa0] sm:$0xff]
  %v109 = vld [vmem:[%s2 + $0xa8] sm:$0xff]
  %v110 = vld [vmem:[%s2 + $0xb0] sm:$0xff]
  %v111 = vld [vmem:[%s2 + $0xb8] sm:$0xff]
  %v112 = vld [vmem:[%s2 + $0xc0] sm:$0xff]
  %v113 = vld [vmem:[%s2 + $0xc8] sm:$0xff]
  %v114 = vld [vmem:[%s2 + $0xd0] sm:$0xff]
  %v115 = vld [vmem:[%s2 + $0xd8] sm:$0xff]
  %v116 = vld [vmem:[%s2 + $0xe0] sm:$0xff]
  %v117 = vld [vmem:[%s2 + $0xe8] sm:$0xff]
  %v118 = vld [vmem:[%s2 + $0xf0] sm:$0xff]
  %v119 = vld [vmem:[%s2 + $0xf8] sm:$0xff]
  %v120 = vld [vmem:[%s2 + $0x100] sm:$0xff]
  %v121 = vld [vmem:[%s2 + $0x108] sm:$0xff]
  %v122 = vld [vmem:[%s2 + $0x110] sm:$0xff]
  %v123 = vld [vmem:[%s2 + $0x118] sm:$0xff]
  %v124 = vld [vmem:[%s2 + $0x120] sm:$0xff]
  %v125 = vld [vmem:[%s2 + $0x128] sm:$0xff]
  %v126 = vld [vmem:[%s2 + $0x130] sm:$0xff]
  %v127 = vld [vmem:[%s2 + $0x138] sm:$0xff]
  %v128 = vld [vmem:[%s2 + $0x140] sm:$0xff]
  %v129 = vld [vmem:[%s2 + $0x148] sm:$0xff]
  %v130 = vld [vmem:[%s2 + $0x150] sm:$0xff]
  %v131 = vld [vmem:[%s2 + $0x158] sm:$0xff]
  %v132 = vld [vmem:[%s2 + $0x160] sm:$0xff]
  %v133 = vld [vmem:[%s2 + $0x168] sm:$0xff]
  %v134 = vld [vmem:[%s2 + $0x170] sm:$0xff]
  %v135 = vld [vmem:[%s2 + $0x178] sm:$0xff]
  %v136 = vld [vmem:[%s2 + $0x180] sm:$0xff]
  %v137 = vld [vmem:[%s2 + $0x188] sm:$0xff]
  %v138 = vld [vmem:[%s2 + $0x190] sm:$0xff]
  %v139 = vld [vmem:[%s2 + $0x198] sm:$0xff]
  %v140 = vld [vmem:[%s2 + $0x1a0] sm:$0xff]
  %v141 = vld [vmem:[%s2 + $0x1a8] sm:$0xff]
  %v142 = vld [vmem:[%s2 + $0x1b0] sm:$0xff]
  %v143 = vld [vmem:[%s2 + $0x1b8] sm:$0xff]
  %v144 = vld [vmem:[%s2 + $0x1c0] sm:$0xff]
  %v145 = vld [vmem:[%s2 + $0x1c8] sm:$0xff]
  %v146 = vld [vmem:[%s2 + $0x1d0] sm:$0xff]
  %v147 = vld [vmem:[%s2 + $0x1d8] sm:$0xff]
  %v148 = vld [vmem:[%s2 + $0x1e0] sm:$0xff]
  %v149 = vld [vmem:[%s2 + $0x1e8] sm:$0xff]
  %v150 = vld [vmem:[%s2 + $0x1f0] sm:$0xff]
  %v151 = vld [vmem:[%s2 + $0x1f8] sm:$0xff]
  %152 = vmatprep.subr.mxu0 %v149
  %153 = vmatpush1.msra.mxu0 %v148
  %154 = vmatprep.subr.mxu0 %v145
  %155 = vmatpush1.msra.mxu0 %v144
  %156 = vmatprep.subr.mxu0 %v141
  %157 = vmatpush1.msra.mxu0 %v140
  %158 = vmatprep.subr.mxu0 %v137
  %159 = vmatpush1.msra.mxu0 %v136
  %160 = vmatprep.subr.mxu0 %v133
  %161 = vmatpush1.msra.mxu0 %v132
  %162 = vmatprep.subr.mxu0 %v129
  %163 = vmatpush1.msra.mxu0 %v128
  %164 = vmatprep.subr.mxu0 %v125
  %165 = vmatpush1.msra.mxu0 %v124
  %166 = vmatprep.subr.mxu0 %v121
  %167 = vmatpush1.msra.mxu0 %v120
  %168 = vmatprep.subr.mxu0 %v117
  %169 = vmatpush1.msra.mxu0 %v116
  %170 = vmatprep.subr.mxu0 %v113
  %171 = vmatpush1.msra.mxu0 %v112
  %172 = vmatprep.subr.mxu0 %v109
  %173 = vmatpush1.msra.mxu0 %v108
  %174 = vmatprep.subr.mxu0 %v105
  %175 = vmatpush1.msra.mxu0 %v104
  %176 = vmatprep.subr.mxu0 %v101
  %177 = vmatpush1.msra.mxu0 %v100
  %178 = vmatprep.subr.mxu0 %v97
  %179 = vmatpush1.msra.mxu0 %v96
  %180 = vmatprep.subr.mxu0 %v93
  %181 = vmatpush1.msra.mxu0 %v92
  %182 = vmatprep.subr.mxu0 %v89
  %183 = vmatpush1.msra.mxu0 %v88
  %184 = vmatprep.subr.mxu0 0.0
  %185 = vmatpush2.msra.mxu0 0.0
  %186 = vmatprep.subr.mxu0 0.0
  %187 = vmatpush2.msra.mxu0 0.0
  %188 = vmatprep.subr.mxu0 0.0
  %189 = vmatpush2.msra.mxu0 0.0
  %190 = vmatprep.subr.mxu0 0.0
  %191 = vmatpush2.msra.mxu0 0.0
  %192 = vmatprep.subr.mxu0 0.0
  %193 = vmatpush2.msra.mxu0 0.0
  %194 = vmatprep.subr.mxu0 0.0
  %195 = vmatpush2.msra.mxu0 0.0
  %196 = vmatprep.subr.mxu0 0.0
  %197 = vmatpush2.msra.mxu0 0.0
  %198 = vmatprep.subr.mxu0 0.0
  %199 = vmatpush2.msra.mxu0 0.0
  %200 = vmatprep.subr.mxu0 0.0
  %201 = vmatpush2.msra.mxu0 0.0
  %202 = vmatprep.subr.mxu0 0.0
  %203 = vmatpush2.msra.mxu0 0.0
  %204 = vmatprep.subr.mxu0 0.0
  %205 = vmatpush2.msra.mxu0 0.0
  %206 = vmatprep.subr.mxu0 0.0
  %207 = vmatpush2.msra.mxu0 0.0
  %208 = vmatprep.subr.mxu0 0.0
  %209 = vmatpush2.msra.mxu0 0.0
  %210 = vmatprep.subr.mxu0 0.0
  %211 = vmatpush2.msra.mxu0 0.0
  %212 = vmatprep.subr.mxu0 0.0
  %213 = vmatpush2.msra.mxu0 0.0
  %214 = vmatprep.subr.mxu0 0.0
  %215 = vmatpush2.msra.mxu0 0.0
  %216 = vmatprep.mubr.f32.mxu0 0.0
  %217 = vmatmul.mubr.f32.gmra.mxu0 0.0
  %v218 = vpop.f32.mrf.mxu0
  %v219 = vadd.f32 0.0, %v218
  %v220 = vpop.f32.mrf.mxu0
  %v221 = vadd.f32 0.0, %v220
  %222 = vdwg.mxu0
  %223 = vmatprep.subr.mxu0 %v151
  %224 = vmatpush1.msra.mxu0 %v150
  %225 = vmatprep.subr.mxu0 %v147
  %226 = vmatpush1.msra.mxu0 %v146
  %227 = vmatprep.subr.mxu0 %v143
  %228 = vmatpush1.msra.mxu0 %v142
  %229 = vmatprep.subr.mxu0 %v139
  %230 = vmatpush1.msra.mxu0 %v138
  %231 = vmatprep.subr.mxu0 %v135
  %232 = vmatpush1.msra.mxu0 %v134
  %233 = vmatprep.subr.mxu0 %v131
  %234 = vmatpush1.msra.mxu0 %v130
  %235 = vmatprep.subr.mxu0 %v127
  %236 = vmatpush1.msra.mxu0 %v126
  %237 = vmatprep.subr.mxu0 %v123
  %238 = vmatpush1.msra.mxu0 %v122
  %239 = vmatprep.subr.mxu0 %v119
  %240 = vmatpush1.msra.mxu0 %v118
  %241 = vmatprep.subr.mxu0 %v115
  %242 = vmatpush1.msra.mxu0 %v114
  %243 = vmatprep.subr.mxu0 %v111
  %244 = vmatpush1.msra.mxu0 %v110
  %245 = vmatprep.subr.mxu0 %v107
  %246 = vmatpush1.msra.mxu0 %v106
  %247 = vmatprep.subr.mxu0 %v103
  %248 = vmatpush1.msra.mxu0 %v102
  %249 = vmatprep.subr.mxu0 %v99
  %250 = vmatpush1.msra.mxu0 %v98
  %251 = vmatprep.subr.mxu0 %v95
  %252 = vmatpush1.msra.mxu0 %v94
  %253 = vmatprep.subr.mxu0 %v91
  %254 = vmatpush1.msra.mxu0 %v90
  %255 = vmatprep.subr.mxu0 0.0
  %256 = vmatpush2.msra.mxu0 0.0
  %257 = vmatprep.subr.mxu0 0.0
  %258 = vmatpush2.msra.mxu0 0.0
  %259 = vmatprep.subr.mxu0 0.0
  %260 = vmatpush2.msra.mxu0 0.0
  %261 = vmatprep.subr.mxu0 0.0
  %262 = vmatpush2.msra.mxu0 0.0
  %263 = vmatprep.subr.mxu0 0.0
  %264 = vmatpush2.msra.mxu0 0.0
  %265 = vmatprep.subr.mxu0 0.0
  %266 = vmatpush2.msra.mxu0 0.0
  %267 = vmatprep.subr.mxu0 0.0
  %268 = vmatpush2.msra.mxu0 0.0
  %269 = vmatprep.subr.mxu0 0.0
  %270 = vmatpush2.msra.mxu0 0.0
  %271 = vmatprep.subr.mxu0 0.0
  %272 = vmatpush2.msra.mxu0 0.0
  %273 = vmatprep.subr.mxu0 0.0
  %274 = vmatpush2.msra.mxu0 0.0
  %275 = vmatprep.subr.mxu0 0.0
  %276 = vmatpush2.msra.mxu0 0.0
  %277 = vmatprep.subr.mxu0 0.0
  %278 = vmatpush2.msra.mxu0 0.0
  %279 = vmatprep.subr.mxu0 0.0
  %280 = vmatpush2.msra.mxu0 0.0
  %281 = vmatprep.subr.mxu0 0.0
  %282 = vmatpush2.msra.mxu0 0.0
  %283 = vmatprep.subr.mxu0 0.0
  %284 = vmatpush2.msra.mxu0 0.0
  %285 = vmatprep.subr.mxu0 0.0
  %286 = vmatpush2.msra.mxu0 0.0
  %287 = vmatprep.mubr.f32.mxu0 0.0
  %288 = vmatmul.mubr.f32.gmra.mxu0 0.0
  %v289 = vpop.f32.mrf.mxu0
  %v290 = vadd.f32 0.0, %v289
  %v291 = vpop.f32.mrf.mxu0
  %v292 = vadd.f32 0.0, %v291
  %293 = vdwg.mxu0
  %v294 = vadd.f32 %v84, %v219
  %v295 = vadd.f32 %v85, %v221
  %v296 = vadd.f32 %v86, %v290
  %v297 = vadd.f32 %v87, %v292
  %v298 = vld [vmem:[%s5] sm:$0xf]
  %v300 = vlaneseq
  %v301 = vshrl.u32 %v300, 7
  %v302 = vsub.s32 0, %v301
  %v303 = vrot.slane %v298, %v302
  %v304 = vlaneseq
  %v305 = vshrl.u32 %v304, 7
  %v306 = vsub.s32 1, %v305
  %v307 = vrot.slane %v298, %v306
  %v308 = vlaneseq
  %v309 = vshrl.u32 %v308, 7
  %v310 = vsub.s32 2, %v309
  %v311 = vrot.slane %v298, %v310
  %v312 = vlaneseq
  %v313 = vshrl.u32 %v312, 7
  %v314 = vsub.s32 3, %v313
  %v315 = vrot.slane %v298, %v314
  %v320 = vadd.f32 %v294, %v303
  %v321 = vadd.f32 %v295, %v307
  %v322 = vadd.f32 %v296, %v311
  %v323 = vadd.f32 %v297, %v315
  %v324 = vtanh.pop %v320
  %v325 = vtanh.pop %v321
  %v326 = vtanh.pop %v322
  %v327 = vtanh.pop %v323
  %v328 = vmul.f32 %v324, %v49
  %v329 = vmul.f32 %v325, %v50
  %v330 = vmul.f32 %v326, %v51
  %v331 = vmul.f32 %v327, %v52
  %v332 = vadd.f32 %v328, %v53
  %v333 = vadd.f32 %v329, %v54
  %v334 = vadd.f32 %v330, %v55
  %v335 = vadd.f32 %v331, %v56
  %v336 = vmul.f32 %v333, 0.0
  %v337 = vmul.f32 %v332, %v334
  %v338 = vadd.f32 %v336, %v337
  %v339 = vtanh.pop %v338
  %v340 = vmul.f32 %v335, %v339
  %341 = vset.pattern.permute.xlu0 1
  %342 = vperm.xlu0 %341, %v31
  %v343 = vpop.permute.xlu0 %342
  %v345 = vmul.f32 %v343, %v67
  %v346 = vmul.f32 %v343, %v71
  %v347 = vmul.f32 %v343, %v75
  %v348 = vmul.f32 %v343, %v79
  %349 = vmatprep.subr.mxu0 %v149
  %350 = vmatpush1.msra.mxu0 %v148
  %351 = vmatprep.subr.mxu0 %v145
  %352 = vmatpush1.msra.mxu0 %v144
  %353 = vmatprep.subr.mxu0 %v141
  %354 = vmatpush1.msra.mxu0 %v140
  %355 = vmatprep.subr.mxu0 %v137
  %356 = vmatpush1.msra.mxu0 %v136
  %357 = vmatprep.subr.mxu0 %v133
  %358 = vmatpush1.msra.mxu0 %v132
  %359 = vmatprep.subr.mxu0 %v129
  %360 = vmatpush1.msra.mxu0 %v128
  %361 = vmatprep.subr.mxu0 %v125
  %362 = vmatpush1.msra.mxu0 %v124
  %363 = vmatprep.subr.mxu0 %v121
  %364 = vmatpush1.msra.mxu0 %v120
  %365 = vmatprep.subr.mxu0 %v117
  %366 = vmatpush1.msra.mxu0 %v116
  %367 = vmatprep.subr.mxu0 %v113
  %368 = vmatpush1.msra.mxu0 %v112
  %369 = vmatprep.subr.mxu0 %v109
  %370 = vmatpush1.msra.mxu0 %v108
  %371 = vmatprep.subr.mxu0 %v105
  %372 = vmatpush1.msra.mxu0 %v104
  %373 = vmatprep.subr.mxu0 %v101
  %374 = vmatpush1.msra.mxu0 %v100
  %375 = vmatprep.subr.mxu0 %v97
  %376 = vmatpush1.msra.mxu0 %v96
  %377 = vmatprep.subr.mxu0 %v93
  %378 = vmatpush1.msra.mxu0 %v92
  %379 = vmatprep.subr.mxu0 %v89
  %380 = vmatpush1.msra.mxu0 %v88
  %381 = vmatprep.subr.mxu0 0.0
  %382 = vmatpush2.msra.mxu0 0.0
  %383 = vmatprep.subr.mxu0 0.0
  %384 = vmatpush2.msra.mxu0 0.0
  %385 = vmatprep.subr.mxu0 0.0
  %386 = vmatpush2.msra.mxu0 0.0
  %387 = vmatprep.subr.mxu0 0.0
  %388 = vmatpush2.msra.mxu0 0.0
  %389 = vmatprep.subr.mxu0 0.0
  %390 = vmatpush2.msra.mxu0 0.0
  %391 = vmatprep.subr.mxu0 0.0
  %392 = vmatpush2.msra.mxu0 0.0
  %393 = vmatprep.subr.mxu0 0.0
  %394 = vmatpush2.msra.mxu0 0.0
  %395 = vmatprep.subr.mxu0 0.0
  %396 = vmatpush2.msra.mxu0 0.0
  %397 = vmatprep.subr.mxu0 0.0
  %398 = vmatpush2.msra.mxu0 0.0
  %399 = vmatprep.subr.mxu0 0.0
  %400 = vmatpush2.msra.mxu0 0.0
  %401 = vmatprep.subr.mxu0 0.0
  %402 = vmatpush2.msra.mxu0 0.0
  %403 = vmatprep.subr.mxu0 0.0
  %404 = vmatpush2.msra.mxu0 0.0
  %405 = vmatprep.subr.mxu0 0.0
  %406 = vmatpush2.msra.mxu0 0.0
  %407 = vmatprep.subr.mxu0 0.0
  %408 = vmatpush2.msra.mxu0 0.0
  %409 = vmatprep.subr.mxu0 0.0
  %410 = vmatpush2.msra.mxu0 0.0
  %411 = vmatprep.subr.mxu0 0.0
  %412 = vmatpush2.msra.mxu0 0.0
  %413 = vmatprep.mubr.f32.mxu0 0.0
  %414 = vmatmul.mubr.f32.gmra.mxu0 %v340
  %v415 = vpop.f32.mrf.mxu0
  %v416 = vadd.f32 0.0, %v415
  %v417 = vpop.f32.mrf.mxu0
  %v418 = vadd.f32 0.0, %v417
  %419 = vdwg.mxu0
  %420 = vmatprep.subr.mxu0 %v151
  %421 = vmatpush1.msra.mxu0 %v150
  %422 = vmatprep.subr.mxu0 %v147
  %423 = vmatpush1.msra.mxu0 %v146
  %424 = vmatprep.subr.mxu0 %v143
  %425 = vmatpush1.msra.mxu0 %v142
  %426 = vmatprep.subr.mxu0 %v139
  %427 = vmatpush1.msra.mxu0 %v138
  %428 = vmatprep.subr.mxu0 %v135
  %429 = vmatpush1.msra.mxu0 %v134
  %430 = vmatprep.subr.mxu0 %v131
  %431 = vmatpush1.msra.mxu0 %v130
  %432 = vmatprep.subr.mxu0 %v127
  %433 = vmatpush1.msra.mxu0 %v126
  %434 = vmatprep.subr.mxu0 %v123
  %435 = vmatpush1.msra.mxu0 %v122
  %436 = vmatprep.subr.mxu0 %v119
  %437 = vmatpush1.msra.mxu0 %v118
  %438 = vmatprep.subr.mxu0 %v115
  %439 = vmatpush1.msra.mxu0 %v114
  %440 = vmatprep.subr.mxu0 %v111
  %441 = vmatpush1.msra.mxu0 %v110
  %442 = vmatprep.subr.mxu0 %v107
  %443 = vmatpush1.msra.mxu0 %v106
  %444 = vmatprep.subr.mxu0 %v103
  %445 = vmatpush1.msra.mxu0 %v102
  %446 = vmatprep.subr.mxu0 %v99
  %447 = vmatpush1.msra.mxu0 %v98
  %448 = vmatprep.subr.mxu0 %v95
  %449 = vmatpush1.msra.mxu0 %v94
  %450 = vmatprep.subr.mxu0 %v91
  %451 = vmatpush1.msra.mxu0 %v90
  %452 = vmatprep.subr.mxu0 0.0
  %453 = vmatpush2.msra.mxu0 0.0
  %454 = vmatprep.subr.mxu0 0.0
  %455 = vmatpush2.msra.mxu0 0.0
  %456 = vmatprep.subr.mxu0 0.0
  %457 = vmatpush2.msra.mxu0 0.0
  %458 = vmatprep.subr.mxu0 0.0
  %459 = vmatpush2.msra.mxu0 0.0
  %460 = vmatprep.subr.mxu0 0.0
  %461 = vmatpush2.msra.mxu0 0.0
  %462 = vmatprep.subr.mxu0 0.0
  %463 = vmatpush2.msra.mxu0 0.0
  %464 = vmatprep.subr.mxu0 0.0
  %465 = vmatpush2.msra.mxu0 0.0
  %466 = vmatprep.subr.mxu0 0.0
  %467 = vmatpush2.msra.mxu0 0.0
  %468 = vmatprep.subr.mxu0 0.0
  %469 = vmatpush2.msra.mxu0 0.0
  %470 = vmatprep.subr.mxu0 0.0
  %471 = vmatpush2.msra.mxu0 0.0
  %472 = vmatprep.subr.mxu0 0.0
  %473 = vmatpush2.msra.mxu0 0.0
  %474 = vmatprep.subr.mxu0 0.0
  %475 = vmatpush2.msra.mxu0 0.0
  %476 = vmatprep.subr.mxu0 0.0
  %477 = vmatpush2.msra.mxu0 0.0
  %478 = vmatprep.subr.mxu0 0.0
  %479 = vmatpush2.msra.mxu0 0.0
  %480 = vmatprep.subr.mxu0 0.0
  %481 = vmatpush2.msra.mxu0 0.0
  %482 = vmatprep.subr.mxu0 0.0
  %483 = vmatpush2.msra.mxu0 0.0
  %484 = vmatprep.mubr.f32.mxu0 0.0
  %485 = vmatmul.mubr.f32.gmra.mxu0 %v340
  %v486 = vpop.f32.mrf.mxu0
  %v487 = vadd.f32 0.0, %v486
  %v488 = vpop.f32.mrf.mxu0
  %v489 = vadd.f32 0.0, %v488
  %490 = vdwg.mxu0
  %v491 = vadd.f32 %v345, %v416
  %v492 = vadd.f32 %v346, %v418
  %v493 = vadd.f32 %v347, %v487
  %v494 = vadd.f32 %v348, %v489
  %v495 = vadd.f32 %v491, %v303
  %v496 = vadd.f32 %v492, %v307
  %v497 = vadd.f32 %v493, %v311
  %v498 = vadd.f32 %v494, %v315
  %v499 = vtanh.pop %v495
  %v500 = vtanh.pop %v496
  %v501 = vtanh.pop %v497
  %v502 = vtanh.pop %v498
  %v503 = vmul.f32 %v499, %v49
  %v504 = vmul.f32 %v500, %v50
  %v505 = vmul.f32 %v501, %v51
  %v506 = vmul.f32 %v502, %v52
  %v507 = vadd.f32 %v503, %v53
  %v508 = vadd.f32 %v504, %v54
  %v509 = vadd.f32 %v505, %v55
  %v510 = vadd.f32 %v506, %v56
  %v511 = vmul.f32 %v508, %v338
  %v512 = vmul.f32 %v507, %v509
  %v513 = vadd.f32 %v511, %v512
  %v514 = vtanh.pop %v513
  %v515 = vmul.f32 %v510, %v514
  %v516 = vld [vmem:[%s3] sm:$0xff]
  %v517 = vld [vmem:[%s3 + $0x8] sm:$0xff]
  %v518 = vld [vmem:[%s3 + $0x10] sm:$0xff]
  %v519 = vld [vmem:[%s3 + $0x18] sm:$0xff]
  %v520 = vld [vmem:[%s3 + $0x20] sm:$0xff]
  %v521 = vld [vmem:[%s3 + $0x28] sm:$0xff]
  %v522 = vld [vmem:[%s3 + $0x30] sm:$0xff]
  %v523 = vld [vmem:[%s3 + $0x38] sm:$0xff]
  %v524 = vld [vmem:[%s3 + $0x40] sm:$0xff]
  %v525 = vld [vmem:[%s3 + $0x48] sm:$0xff]
  %v526 = vld [vmem:[%s3 + $0x50] sm:$0xff]
  %v527 = vld [vmem:[%s3 + $0x58] sm:$0xff]
  %v528 = vld [vmem:[%s3 + $0x60] sm:$0xff]
  %v529 = vld [vmem:[%s3 + $0x68] sm:$0xff]
  %v530 = vld [vmem:[%s3 + $0x70] sm:$0xff]
  %v531 = vld [vmem:[%s3 + $0x78] sm:$0xff]
  %v532 = vld [vmem:[%s3 + $0x80] sm:$0xff]
  %v533 = vld [vmem:[%s3 + $0x88] sm:$0xff]
  %v534 = vld [vmem:[%s3 + $0x90] sm:$0xff]
  %v535 = vld [vmem:[%s3 + $0x98] sm:$0xff]
  %v536 = vld [vmem:[%s3 + $0xa0] sm:$0xff]
  %v537 = vld [vmem:[%s3 + $0xa8] sm:$0xff]
  %v538 = vld [vmem:[%s3 + $0xb0] sm:$0xff]
  %v539 = vld [vmem:[%s3 + $0xb8] sm:$0xff]
  %v540 = vld [vmem:[%s3 + $0xc0] sm:$0xff]
  %v541 = vld [vmem:[%s3 + $0xc8] sm:$0xff]
  %v542 = vld [vmem:[%s3 + $0xd0] sm:$0xff]
  %v543 = vld [vmem:[%s3 + $0xd8] sm:$0xff]
  %v544 = vld [vmem:[%s3 + $0xe0] sm:$0xff]
  %v545 = vld [vmem:[%s3 + $0xe8] sm:$0xff]
  %v546 = vld [vmem:[%s3 + $0xf0] sm:$0xff]
  %v547 = vld [vmem:[%s3 + $0xf8] sm:$0xff]
  %v548 = vld [vmem:[%s3 + $0x100] sm:$0xff]
  %v549 = vld [vmem:[%s3 + $0x108] sm:$0xff]
  %v550 = vld [vmem:[%s3 + $0x110] sm:$0xff]
  %v551 = vld [vmem:[%s3 + $0x118] sm:$0xff]
  %v552 = vld [vmem:[%s3 + $0x120] sm:$0xff]
  %v553 = vld [vmem:[%s3 + $0x128] sm:$0xff]
  %v554 = vld [vmem:[%s3 + $0x130] sm:$0xff]
  %v555 = vld [vmem:[%s3 + $0x138] sm:$0xff]
  %v556 = vld [vmem:[%s3 + $0x140] sm:$0xff]
  %v557 = vld [vmem:[%s3 + $0x148] sm:$0xff]
  %v558 = vld [vmem:[%s3 + $0x150] sm:$0xff]
  %v559 = vld [vmem:[%s3 + $0x158] sm:$0xff]
  %v560 = vld [vmem:[%s3 + $0x160] sm:$0xff]
  %v561 = vld [vmem:[%s3 + $0x168] sm:$0xff]
  %v562 = vld [vmem:[%s3 + $0x170] sm:$0xff]
  %v563 = vld [vmem:[%s3 + $0x178] sm:$0xff]
  %v564 = vld [vmem:[%s3 + $0x180] sm:$0xff]
  %v565 = vld [vmem:[%s3 + $0x188] sm:$0xff]
  %v566 = vld [vmem:[%s3 + $0x190] sm:$0xff]
  %v567 = vld [vmem:[%s3 + $0x198] sm:$0xff]
  %v568 = vld [vmem:[%s3 + $0x1a0] sm:$0xff]
  %v569 = vld [vmem:[%s3 + $0x1a8] sm:$0xff]
  %v570 = vld [vmem:[%s3 + $0x1b0] sm:$0xff]
  %v571 = vld [vmem:[%s3 + $0x1b8] sm:$0xff]
  %v572 = vld [vmem:[%s3 + $0x1c0] sm:$0xff]
  %v573 = vld [vmem:[%s3 + $0x1c8] sm:$0xff]
  %v574 = vld [vmem:[%s3 + $0x1d0] sm:$0xff]
  %v575 = vld [vmem:[%s3 + $0x1d8] sm:$0xff]
  %v576 = vld [vmem:[%s3 + $0x1e0] sm:$0xff]
  %v577 = vld [vmem:[%s3 + $0x1e8] sm:$0xff]
  %v578 = vld [vmem:[%s3 + $0x1f0] sm:$0xff]
  %v579 = vld [vmem:[%s3 + $0x1f8] sm:$0xff]
  %v580 = vld [vmem:[%s3 + $0x200] sm:$0xff]
  %v581 = vld [vmem:[%s3 + $0x208] sm:$0xff]
  %v582 = vld [vmem:[%s3 + $0x210] sm:$0xff]
  %v583 = vld [vmem:[%s3 + $0x218] sm:$0xff]
  %v584 = vld [vmem:[%s3 + $0x220] sm:$0xff]
  %v585 = vld [vmem:[%s3 + $0x228] sm:$0xff]
  %v586 = vld [vmem:[%s3 + $0x230] sm:$0xff]
  %v587 = vld [vmem:[%s3 + $0x238] sm:$0xff]
  %v588 = vld [vmem:[%s3 + $0x240] sm:$0xff]
  %v589 = vld [vmem:[%s3 + $0x248] sm:$0xff]
  %v590 = vld [vmem:[%s3 + $0x250] sm:$0xff]
  %v591 = vld [vmem:[%s3 + $0x258] sm:$0xff]
  %v592 = vld [vmem:[%s3 + $0x260] sm:$0xff]
  %v593 = vld [vmem:[%s3 + $0x268] sm:$0xff]
  %v594 = vld [vmem:[%s3 + $0x270] sm:$0xff]
  %v595 = vld [vmem:[%s3 + $0x278] sm:$0xff]
  %v596 = vld [vmem:[%s3 + $0x280] sm:$0xff]
  %v597 = vld [vmem:[%s3 + $0x288] sm:$0xff]
  %v598 = vld [vmem:[%s3 + $0x290] sm:$0xff]
  %v599 = vld [vmem:[%s3 + $0x298] sm:$0xff]
  %v600 = vld [vmem:[%s3 + $0x2a0] sm:$0xff]
  %v601 = vld [vmem:[%s3 + $0x2a8] sm:$0xff]
  %v602 = vld [vmem:[%s3 + $0x2b0] sm:$0xff]
  %v603 = vld [vmem:[%s3 + $0x2b8] sm:$0xff]
  %v604 = vld [vmem:[%s3 + $0x2c0] sm:$0xff]
  %v605 = vld [vmem:[%s3 + $0x2c8] sm:$0xff]
  %v606 = vld [vmem:[%s3 + $0x2d0] sm:$0xff]
  %v607 = vld [vmem:[%s3 + $0x2d8] sm:$0xff]
  %v608 = vld [vmem:[%s3 + $0x2e0] sm:$0xff]
  %v609 = vld [vmem:[%s3 + $0x2e8] sm:$0xff]
  %v610 = vld [vmem:[%s3 + $0x2f0] sm:$0xff]
  %v611 = vld [vmem:[%s3 + $0x2f8] sm:$0xff]
  %v612 = vld [vmem:[%s3 + $0x300] sm:$0xff]
  %v613 = vld [vmem:[%s3 + $0x308] sm:$0xff]
  %v614 = vld [vmem:[%s3 + $0x310] sm:$0xff]
  %v615 = vld [vmem:[%s3 + $0x318] sm:$0xff]
  %v616 = vld [vmem:[%s3 + $0x320] sm:$0xff]
  %v617 = vld [vmem:[%s3 + $0x328] sm:$0xff]
  %v618 = vld [vmem:[%s3 + $0x330] sm:$0xff]
  %v619 = vld [vmem:[%s3 + $0x338] sm:$0xff]
  %v620 = vld [vmem:[%s3 + $0x340] sm:$0xff]
  %v621 = vld [vmem:[%s3 + $0x348] sm:$0xff]
  %v622 = vld [vmem:[%s3 + $0x350] sm:$0xff]
  %v623 = vld [vmem:[%s3 + $0x358] sm:$0xff]
  %v624 = vld [vmem:[%s3 + $0x360] sm:$0xff]
  %v625 = vld [vmem:[%s3 + $0x368] sm:$0xff]
  %v626 = vld [vmem:[%s3 + $0x370] sm:$0xff]
  %v627 = vld [vmem:[%s3 + $0x378] sm:$0xff]
  %v628 = vld [vmem:[%s3 + $0x380] sm:$0xff]
  %v629 = vld [vmem:[%s3 + $0x388] sm:$0xff]
  %v630 = vld [vmem:[%s3 + $0x390] sm:$0xff]
  %v631 = vld [vmem:[%s3 + $0x398] sm:$0xff]
  %v632 = vld [vmem:[%s3 + $0x3a0] sm:$0xff]
  %v633 = vld [vmem:[%s3 + $0x3a8] sm:$0xff]
  %v634 = vld [vmem:[%s3 + $0x3b0] sm:$0xff]
  %v635 = vld [vmem:[%s3 + $0x3b8] sm:$0xff]
  %v636 = vld [vmem:[%s3 + $0x3c0] sm:$0xff]
  %v637 = vld [vmem:[%s3 + $0x3c8] sm:$0xff]
  %v638 = vld [vmem:[%s3 + $0x3d0] sm:$0xff]
  %v639 = vld [vmem:[%s3 + $0x3d8] sm:$0xff]
  %v640 = vld [vmem:[%s3 + $0x3e0] sm:$0xff]
  %v641 = vld [vmem:[%s3 + $0x3e8] sm:$0xff]
  %v642 = vld [vmem:[%s3 + $0x3f0] sm:$0xff]
  %v643 = vld [vmem:[%s3 + $0x3f8] sm:$0xff]
  %s644 = scalar_lea.vmem %s5, 4
  %v645 = vld [vmem:[%s644] sm:$0xf]
  %v647 = vlaneseq
  %v648 = vshrl.u32 %v647, 7
  %v649 = vsub.s32 0, %v648
  %v650 = vrot.slane %v645, %v649
  %v651 = vlaneseq
  %v652 = vshrl.u32 %v651, 7
  %v653 = vsub.s32 1, %v652
  %v654 = vrot.slane %v645, %v653
  %v655 = vlaneseq
  %v656 = vshrl.u32 %v655, 7
  %v657 = vsub.s32 2, %v656
  %v658 = vrot.slane %v645, %v657
  %v659 = vlaneseq
  %v660 = vshrl.u32 %v659, 7
  %v661 = vsub.s32 3, %v660
  %v662 = vrot.slane %v645, %v661
  %667 = vmatprep.subr.mxu0 %v577
  %668 = vmatpush1.msra.mxu0 %v576
  %669 = vmatprep.subr.mxu0 %v573
  %670 = vmatpush1.msra.mxu0 %v572
  %671 = vmatprep.subr.mxu0 %v569
  %672 = vmatpush1.msra.mxu0 %v568
  %673 = vmatprep.subr.mxu0 %v565
  %674 = vmatpush1.msra.mxu0 %v564
  %675 = vmatprep.subr.mxu0 %v561
  %676 = vmatpush1.msra.mxu0 %v560
  %677 = vmatprep.subr.mxu0 %v557
  %678 = vmatpush1.msra.mxu0 %v556
  %679 = vmatprep.subr.mxu0 %v553
  %680 = vmatpush1.msra.mxu0 %v552
  %681 = vmatprep.subr.mxu0 %v549
  %682 = vmatpush1.msra.mxu0 %v548
  %683 = vmatprep.subr.mxu0 %v545
  %684 = vmatpush1.msra.mxu0 %v544
  %685 = vmatprep.subr.mxu0 %v541
  %686 = vmatpush1.msra.mxu0 %v540
  %687 = vmatprep.subr.mxu0 %v537
  %688 = vmatpush1.msra.mxu0 %v536
  %689 = vmatprep.subr.mxu0 %v533
  %690 = vmatpush1.msra.mxu0 %v532
  %691 = vmatprep.subr.mxu0 %v529
  %692 = vmatpush1.msra.mxu0 %v528
  %693 = vmatprep.subr.mxu0 %v525
  %694 = vmatpush1.msra.mxu0 %v524
  %695 = vmatprep.subr.mxu0 %v521
  %696 = vmatpush1.msra.mxu0 %v520
  %697 = vmatprep.subr.mxu0 %v517
  %698 = vmatpush1.msra.mxu0 %v516
  %699 = vmatprep.subr.mxu0 %v641
  %700 = vmatpush2.msra.mxu0 %v640
  %701 = vmatprep.subr.mxu0 %v637
  %702 = vmatpush2.msra.mxu0 %v636
  %703 = vmatprep.subr.mxu0 %v633
  %704 = vmatpush2.msra.mxu0 %v632
  %705 = vmatprep.subr.mxu0 %v629
  %706 = vmatpush2.msra.mxu0 %v628
  %707 = vmatprep.subr.mxu0 %v625
  %708 = vmatpush2.msra.mxu0 %v624
  %709 = vmatprep.subr.mxu0 %v621
  %710 = vmatpush2.msra.mxu0 %v620
  %711 = vmatprep.subr.mxu0 %v617
  %712 = vmatpush2.msra.mxu0 %v616
  %713 = vmatprep.subr.mxu0 %v613
  %714 = vmatpush2.msra.mxu0 %v612
  %715 = vmatprep.subr.mxu0 %v609
  %716 = vmatpush2.msra.mxu0 %v608
  %717 = vmatprep.subr.mxu0 %v605
  %718 = vmatpush2.msra.mxu0 %v604
  %719 = vmatprep.subr.mxu0 %v601
  %720 = vmatpush2.msra.mxu0 %v600
  %721 = vmatprep.subr.mxu0 %v597
  %722 = vmatpush2.msra.mxu0 %v596
  %723 = vmatprep.subr.mxu0 %v593
  %724 = vmatpush2.msra.mxu0 %v592
  %725 = vmatprep.subr.mxu0 %v589
  %726 = vmatpush2.msra.mxu0 %v588
  %727 = vmatprep.subr.mxu0 %v585
  %728 = vmatpush2.msra.mxu0 %v584
  %729 = vmatprep.subr.mxu0 %v581
  %730 = vmatpush2.msra.mxu0 %v580
  %731 = vmatprep.mubr.f32.mxu0 0.0
  %732 = vmatmul.mubr.f32.gmra.mxu0 %v340
  %v733 = vpop.f32.mrf.mxu0
  %v734 = vadd.f32 %v650, %v733
  %v735 = vpop.f32.mrf.mxu0
  %v736 = vadd.f32 %v654, %v735
  %737 = vdwg.mxu0
  %738 = vmatprep.subr.mxu0 %v579
  %739 = vmatpush1.msra.mxu0 %v578
  %740 = vmatprep.subr.mxu0 %v575
  %741 = vmatpush1.msra.mxu0 %v574
  %742 = vmatprep.subr.mxu0 %v571
  %743 = vmatpush1.msra.mxu0 %v570
  %744 = vmatprep.subr.mxu0 %v567
  %745 = vmatpush1.msra.mxu0 %v566
  %746 = vmatprep.subr.mxu0 %v563
  %747 = vmatpush1.msra.mxu0 %v562
  %748 = vmatprep.subr.mxu0 %v559
  %749 = vmatpush1.msra.mxu0 %v558
  %750 = vmatprep.subr.mxu0 %v555
  %751 = vmatpush1.msra.mxu0 %v554
  %752 = vmatprep.subr.mxu0 %v551
  %753 = vmatpush1.msra.mxu0 %v550
  %754 = vmatprep.subr.mxu0 %v547
  %755 = vmatpush1.msra.mxu0 %v546
  %756 = vmatprep.subr.mxu0 %v543
  %757 = vmatpush1.msra.mxu0 %v542
  %758 = vmatprep.subr.mxu0 %v539
  %759 = vmatpush1.msra.mxu0 %v538
  %760 = vmatprep.subr.mxu0 %v535
  %761 = vmatpush1.msra.mxu0 %v534
  %762 = vmatprep.subr.mxu0 %v531
  %763 = vmatpush1.msra.mxu0 %v530
  %764 = vmatprep.subr.mxu0 %v527
  %765 = vmatpush1.msra.mxu0 %v526
  %766 = vmatprep.subr.mxu0 %v523
  %767 = vmatpush1.msra.mxu0 %v522
  %768 = vmatprep.subr.mxu0 %v519
  %769 = vmatpush1.msra.mxu0 %v518
  %770 = vmatprep.subr.mxu0 %v643
  %771 = vmatpush2.msra.mxu0 %v642
  %772 = vmatprep.subr.mxu0 %v639
  %773 = vmatpush2.msra.mxu0 %v638
  %774 = vmatprep.subr.mxu0 %v635
  %775 = vmatpush2.msra.mxu0 %v634
  %776 = vmatprep.subr.mxu0 %v631
  %777 = vmatpush2.msra.mxu0 %v630
  %778 = vmatprep.subr.mxu0 %v627
  %779 = vmatpush2.msra.mxu0 %v626
  %780 = vmatprep.subr.mxu0 %v623
  %781 = vmatpush2.msra.mxu0 %v622
  %782 = vmatprep.subr.mxu0 %v619
  %783 = vmatpush2.msra.mxu0 %v618
  %784 = vmatprep.subr.mxu0 %v615
  %785 = vmatpush2.msra.mxu0 %v614
  %786 = vmatprep.subr.mxu0 %v611
  %787 = vmatpush2.msra.mxu0 %v610
  %788 = vmatprep.subr.mxu0 %v607
  %789 = vmatpush2.msra.mxu0 %v606
  %790 = vmatprep.subr.mxu0 %v603
  %791 = vmatpush2.msra.mxu0 %v602
  %792 = vmatprep.subr.mxu0 %v599
  %793 = vmatpush2.msra.mxu0 %v598
  %794 = vmatprep.subr.mxu0 %v595
  %795 = vmatpush2.msra.mxu0 %v594
  %796 = vmatprep.subr.mxu0 %v591
  %797 = vmatpush2.msra.mxu0 %v590
  %798 = vmatprep.subr.mxu0 %v587
  %799 = vmatpush2.msra.mxu0 %v586
  %800 = vmatprep.subr.mxu0 %v583
  %801 = vmatpush2.msra.mxu0 %v582
  %802 = vmatprep.mubr.f32.mxu0 0.0
  %803 = vmatmul.mubr.f32.gmra.mxu0 %v340
  %v804 = vpop.f32.mrf.mxu0
  %v805 = vadd.f32 %v658, %v804
  %v806 = vpop.f32.mrf.mxu0
  %v807 = vadd.f32 %v662, %v806
  %808 = vdwg.mxu0
  %v809 = vtanh.pop %v734
  %v810 = vtanh.pop %v736
  %v811 = vtanh.pop %v805
  %v812 = vtanh.pop %v807
  %v813 = vmul.f32 %v809, %v49
  %v814 = vmul.f32 %v810, %v50
  %v815 = vmul.f32 %v811, %v51
  %v816 = vmul.f32 %v812, %v52
  %v817 = vadd.f32 %v813, %v53
  %v818 = vadd.f32 %v814, %v54
  %v819 = vadd.f32 %v815, %v55
  %v820 = vadd.f32 %v816, %v56
  %v821 = vmul.f32 %v818, 0.0
  %v822 = vmul.f32 %v817, %v819
  %v823 = vadd.f32 %v821, %v822
  %v824 = vtanh.pop %v823
  %v825 = vmul.f32 %v820, %v824
  %826 = vset.pattern.permute.xlu0 2
  %827 = vperm.xlu0 %826, %v31
  %v828 = vpop.permute.xlu0 %827
  %v830 = vmul.f32 %v828, %v67
  %v831 = vmul.f32 %v828, %v71
  %v832 = vmul.f32 %v828, %v75
  %v833 = vmul.f32 %v828, %v79
  %834 = vmatprep.subr.mxu0 %v149
  %835 = vmatpush1.msra.mxu0 %v148
  %836 = vmatprep.subr.mxu0 %v145
  %837 = vmatpush1.msra.mxu0 %v144
  %838 = vmatprep.subr.mxu0 %v141
  %839 = vmatpush1.msra.mxu0 %v140
  %840 = vmatprep.subr.mxu0 %v137
  %841 = vmatpush1.msra.mxu0 %v136
  %842 = vmatprep.subr.mxu0 %v133
  %843 = vmatpush1.msra.mxu0 %v132
  %844 = vmatprep.subr.mxu0 %v129
  %845 = vmatpush1.msra.mxu0 %v128
  %846 = vmatprep.subr.mxu0 %v125
  %847 = vmatpush1.msra.mxu0 %v124
  %848 = vmatprep.subr.mxu0 %v121
  %849 = vmatpush1.msra.mxu0 %v120
  %850 = vmatprep.subr.mxu0 %v117
  %851 = vmatpush1.msra.mxu0 %v116
  %852 = vmatprep.subr.mxu0 %v113
  %853 = vmatpush1.msra.mxu0 %v112
  %854 = vmatprep.subr.mxu0 %v109
  %855 = vmatpush1.msra.mxu0 %v108
  %856 = vmatprep.subr.mxu0 %v105
  %857 = vmatpush1.msra.mxu0 %v104
  %858 = vmatprep.subr.mxu0 %v101
  %859 = vmatpush1.msra.mxu0 %v100
  %860 = vmatprep.subr.mxu0 %v97
  %861 = vmatpush1.msra.mxu0 %v96
  %862 = vmatprep.subr.mxu0 %v93
  %863 = vmatpush1.msra.mxu0 %v92
  %864 = vmatprep.subr.mxu0 %v89
  %865 = vmatpush1.msra.mxu0 %v88
  %866 = vmatprep.subr.mxu0 0.0
  %867 = vmatpush2.msra.mxu0 0.0
  %868 = vmatprep.subr.mxu0 0.0
  %869 = vmatpush2.msra.mxu0 0.0
  %870 = vmatprep.subr.mxu0 0.0
  %871 = vmatpush2.msra.mxu0 0.0
  %872 = vmatprep.subr.mxu0 0.0
  %873 = vmatpush2.msra.mxu0 0.0
  %874 = vmatprep.subr.mxu0 0.0
  %875 = vmatpush2.msra.mxu0 0.0
  %876 = vmatprep.subr.mxu0 0.0
  %877 = vmatpush2.msra.mxu0 0.0
  %878 = vmatprep.subr.mxu0 0.0
  %879 = vmatpush2.msra.mxu0 0.0
  %880 = vmatprep.subr.mxu0 0.0
  %881 = vmatpush2.msra.mxu0 0.0
  %882 = vmatprep.subr.mxu0 0.0
  %883 = vmatpush2.msra.mxu0 0.0
  %884 = vmatprep.subr.mxu0 0.0
  %885 = vmatpush2.msra.mxu0 0.0
  %886 = vmatprep.subr.mxu0 0.0
  %887 = vmatpush2.msra.mxu0 0.0
  %888 = vmatprep.subr.mxu0 0.0
  %889 = vmatpush2.msra.mxu0 0.0
  %890 = vmatprep.subr.mxu0 0.0
  %891 = vmatpush2.msra.mxu0 0.0
  %892 = vmatprep.subr.mxu0 0.0
  %893 = vmatpush2.msra.mxu0 0.0
  %894 = vmatprep.subr.mxu0 0.0
  %895 = vmatpush2.msra.mxu0 0.0
  %896 = vmatprep.subr.mxu0 0.0
  %897 = vmatpush2.msra.mxu0 0.0
  %898 = vmatprep.mubr.f32.mxu0 0.0
  %899 = vmatmul.mubr.f32.gmra.mxu0 %v515
  %v900 = vpop.f32.mrf.mxu0
  %v901 = vadd.f32 0.0, %v900
  %v902 = vpop.f32.mrf.mxu0
  %v903 = vadd.f32 0.0, %v902
  %904 = vdwg.mxu0
  %905 = vmatprep.subr.mxu0 %v151
  %906 = vmatpush1.msra.mxu0 %v150
  %907 = vmatprep.subr.mxu0 %v147
  %908 = vmatpush1.msra.mxu0 %v146
  %909 = vmatprep.subr.mxu0 %v143
  %910 = vmatpush1.msra.mxu0 %v142
  %911 = vmatprep.subr.mxu0 %v139
  %912 = vmatpush1.msra.mxu0 %v138
  %913 = vmatprep.subr.mxu0 %v135
  %914 = vmatpush1.msra.mxu0 %v134
  %915 = vmatprep.subr.mxu0 %v131
  %916 = vmatpush1.msra.mxu0 %v130
  %917 = vmatprep.subr.mxu0 %v127
  %918 = vmatpush1.msra.mxu0 %v126
  %919 = vmatprep.subr.mxu0 %v123
  %920 = vmatpush1.msra.mxu0 %v122
  %921 = vmatprep.subr.mxu0 %v119
  %922 = vmatpush1.msra.mxu0 %v118
  %923 = vmatprep.subr.mxu0 %v115
  %924 = vmatpush1.msra.mxu0 %v114
  %925 = vmatprep.subr.mxu0 %v111
  %926 = vmatpush1.msra.mxu0 %v110
  %927 = vmatprep.subr.mxu0 %v107
  %928 = vmatpush1.msra.mxu0 %v106
  %929 = vmatprep.subr.mxu0 %v103
  %930 = vmatpush1.msra.mxu0 %v102
  %931 = vmatprep.subr.mxu0 %v99
  %932 = vmatpush1.msra.mxu0 %v98
  %933 = vmatprep.subr.mxu0 %v95
  %934 = vmatpush1.msra.mxu0 %v94
  %935 = vmatprep.subr.mxu0 %v91
  %936 = vmatpush1.msra.mxu0 %v90
  %937 = vmatprep.subr.mxu0 0.0
  %938 = vmatpush2.msra.mxu0 0.0
  %939 = vmatprep.subr.mxu0 0.0
  %940 = vmatpush2.msra.mxu0 0.0
  %941 = vmatprep.subr.mxu0 0.0
  %942 = vmatpush2.msra.mxu0 0.0
  %943 = vmatprep.subr.mxu0 0.0
  %944 = vmatpush2.msra.mxu0 0.0
  %945 = vmatprep.subr.mxu0 0.0
  %946 = vmatpush2.msra.mxu0 0.0
  %947 = vmatprep.subr.mxu0 0.0
  %948 = vmatpush2.msra.mxu0 0.0
  %949 = vmatprep.subr.mxu0 0.0
  %950 = vmatpush2.msra.mxu0 0.0
  %951 = vmatprep.subr.mxu0 0.0
  %952 = vmatpush2.msra.mxu0 0.0
  %953 = vmatprep.subr.mxu0 0.0
  %954 = vmatpush2.msra.mxu0 0.0
  %955 = vmatprep.subr.mxu0 0.0
  %956 = vmatpush2.msra.mxu0 0.0
  %957 = vmatprep.subr.mxu0 0.0
  %958 = vmatpush2.msra.mxu0 0.0
  %959 = vmatprep.subr.mxu0 0.0
  %960 = vmatpush2.msra.mxu0 0.0
  %961 = vmatprep.subr.mxu0 0.0
  %962 = vmatpush2.msra.mxu0 0.0
  %963 = vmatprep.subr.mxu0 0.0
  %964 = vmatpush2.msra.mxu0 0.0
  %965 = vmatprep.subr.mxu0 0.0
  %966 = vmatpush2.msra.mxu0 0.0
  %967 = vmatprep.subr.mxu0 0.0
  %968 = vmatpush2.msra.mxu0 0.0
  %969 = vmatprep.mubr.f32.mxu0 0.0
  %970 = vmatmul.mubr.f32.gmra.mxu0 %v515
  %v971 = vpop.f32.mrf.mxu0
  %v972 = vadd.f32 0.0, %v971
  %v973 = vpop.f32.mrf.mxu0
  %v974 = vadd.f32 0.0, %v973
  %975 = vdwg.mxu0
  %v976 = vadd.f32 %v830, %v901
  %v977 = vadd.f32 %v831, %v903
  %v978 = vadd.f32 %v832, %v972
  %v979 = vadd.f32 %v833, %v974
  %v980 = vadd.f32 %v976, %v303
  %v981 = vadd.f32 %v977, %v307
  %v982 = vadd.f32 %v978, %v311
  %v983 = vadd.f32 %v979, %v315
  %v984 = vtanh.pop %v980
  %v985 = vtanh.pop %v981
  %v986 = vtanh.pop %v982
  %v987 = vtanh.pop %v983
  %v988 = vmul.f32 %v984, %v49
  %v989 = vmul.f32 %v985, %v50
  %v990 = vmul.f32 %v986, %v51
  %v991 = vmul.f32 %v987, %v52
  %v992 = vadd.f32 %v988, %v53
  %v993 = vadd.f32 %v989, %v54
  %v994 = vadd.f32 %v990, %v55
  %v995 = vadd.f32 %v991, %v56
  %v996 = vmul.f32 %v993, %v513
  %v997 = vmul.f32 %v992, %v994
  %v998 = vadd.f32 %v996, %v997
  %v999 = vtanh.pop %v998
  %v1000 = vmul.f32 %v995, %v999
  %1001 = vmatprep.subr.mxu0 %v577
  %1002 = vmatpush1.msra.mxu0 %v576
  %1003 = vmatprep.subr.mxu0 %v573
  %1004 = vmatpush1.msra.mxu0 %v572
  %1005 = vmatprep.subr.mxu0 %v569
  %1006 = vmatpush1.msra.mxu0 %v568
  %1007 = vmatprep.subr.mxu0 %v565
  %1008 = vmatpush1.msra.mxu0 %v564
  %1009 = vmatprep.subr.mxu0 %v561
  %1010 = vmatpush1.msra.mxu0 %v560
  %1011 = vmatprep.subr.mxu0 %v557
  %1012 = vmatpush1.msra.mxu0 %v556
  %1013 = vmatprep.subr.mxu0 %v553
  %1014 = vmatpush1.msra.mxu0 %v552
  %1015 = vmatprep.subr.mxu0 %v549
  %1016 = vmatpush1.msra.mxu0 %v548
  %1017 = vmatprep.subr.mxu0 %v545
  %1018 = vmatpush1.msra.mxu0 %v544
  %1019 = vmatprep.subr.mxu0 %v541
  %1020 = vmatpush1.msra.mxu0 %v540
  %1021 = vmatprep.subr.mxu0 %v537
  %1022 = vmatpush1.msra.mxu0 %v536
  %1023 = vmatprep.subr.mxu0 %v533
  %1024 = vmatpush1.msra.mxu0 %v532
  %1025 = vmatprep.subr.mxu0 %v529
  %1026 = vmatpush1.msra.mxu0 %v528
  %1027 = vmatprep.subr.mxu0 %v525
  %1028 = vmatpush1.msra.mxu0 %v524
  %1029 = vmatprep.subr.mxu0 %v521
  %1030 = vmatpush1.msra.mxu0 %v520
  %1031 = vmatprep.subr.mxu0 %v517
  %1032 = vmatpush1.msra.mxu0 %v516
  %1033 = vmatprep.subr.mxu0 %v641
  %1034 = vmatpush2.msra.mxu0 %v640
  %1035 = vmatprep.subr.mxu0 %v637
  %1036 = vmatpush2.msra.mxu0 %v636
  %1037 = vmatprep.subr.mxu0 %v633
  %1038 = vmatpush2.msra.mxu0 %v632
  %1039 = vmatprep.subr.mxu0 %v629
  %1040 = vmatpush2.msra.mxu0 %v628
  %1041 = vmatprep.subr.mxu0 %v625
  %1042 = vmatpush2.msra.mxu0 %v624
  %1043 = vmatprep.subr.mxu0 %v621
  %1044 = vmatpush2.msra.mxu0 %v620
  %1045 = vmatprep.subr.mxu0 %v617
  %1046 = vmatpush2.msra.mxu0 %v616
  %1047 = vmatprep.subr.mxu0 %v613
  %1048 = vmatpush2.msra.mxu0 %v612
  %1049 = vmatprep.subr.mxu0 %v609
  %1050 = vmatpush2.msra.mxu0 %v608
  %1051 = vmatprep.subr.mxu0 %v605
  %1052 = vmatpush2.msra.mxu0 %v604
  %1053 = vmatprep.subr.mxu0 %v601
  %1054 = vmatpush2.msra.mxu0 %v600
  %1055 = vmatprep.subr.mxu0 %v597
  %1056 = vmatpush2.msra.mxu0 %v596
  %1057 = vmatprep.subr.mxu0 %v593
  %1058 = vmatpush2.msra.mxu0 %v592
  %1059 = vmatprep.subr.mxu0 %v589
  %1060 = vmatpush2.msra.mxu0 %v588
  %1061 = vmatprep.subr.mxu0 %v585
  %1062 = vmatpush2.msra.mxu0 %v584
  %1063 = vmatprep.subr.mxu0 %v581
  %1064 = vmatpush2.msra.mxu0 %v580
  %1065 = vmatprep.mubr.f32.mxu0 %v825
  %1066 = vmatmul.mubr.f32.gmra.mxu0 %v515
  %v1067 = vpop.f32.mrf.mxu0
  %v1068 = vadd.f32 %v650, %v1067
  %v1069 = vpop.f32.mrf.mxu0
  %v1070 = vadd.f32 %v654, %v1069
  %1071 = vdwg.mxu0
  %1072 = vmatprep.subr.mxu0 %v579
  %1073 = vmatpush1.msra.mxu0 %v578
  %1074 = vmatprep.subr.mxu0 %v575
  %1075 = vmatpush1.msra.mxu0 %v574
  %1076 = vmatprep.subr.mxu0 %v571
  %1077 = vmatpush1.msra.mxu0 %v570
  %1078 = vmatprep.subr.mxu0 %v567
  %1079 = vmatpush1.msra.mxu0 %v566
  %1080 = vmatprep.subr.mxu0 %v563
  %1081 = vmatpush1.msra.mxu0 %v562
  %1082 = vmatprep.subr.mxu0 %v559
  %1083 = vmatpush1.msra.mxu0 %v558
  %1084 = vmatprep.subr.mxu0 %v555
  %1085 = vmatpush1.msra.mxu0 %v554
  %1086 = vmatprep.subr.mxu0 %v551
  %1087 = vmatpush1.msra.mxu0 %v550
  %1088 = vmatprep.subr.mxu0 %v547
  %1089 = vmatpush1.msra.mxu0 %v546
  %1090 = vmatprep.subr.mxu0 %v543
  %1091 = vmatpush1.msra.mxu0 %v542
  %1092 = vmatprep.subr.mxu0 %v539
  %1093 = vmatpush1.msra.mxu0 %v538
  %1094 = vmatprep.subr.mxu0 %v535
  %1095 = vmatpush1.msra.mxu0 %v534
  %1096 = vmatprep.subr.mxu0 %v531
  %1097 = vmatpush1.msra.mxu0 %v530
  %1098 = vmatprep.subr.mxu0 %v527
  %1099 = vmatpush1.msra.mxu0 %v526
  %1100 = vmatprep.subr.mxu0 %v523
  %1101 = vmatpush1.msra.mxu0 %v522
  %1102 = vmatprep.subr.mxu0 %v519
  %1103 = vmatpush1.msra.mxu0 %v518
  %1104 = vmatprep.subr.mxu0 %v643
  %1105 = vmatpush2.msra.mxu0 %v642
  %1106 = vmatprep.subr.mxu0 %v639
  %1107 = vmatpush2.msra.mxu0 %v638
  %1108 = vmatprep.subr.mxu0 %v635
  %1109 = vmatpush2.msra.mxu0 %v634
  %1110 = vmatprep.subr.mxu0 %v631
  %1111 = vmatpush2.msra.mxu0 %v630
  %1112 = vmatprep.subr.mxu0 %v627
  %1113 = vmatpush2.msra.mxu0 %v626
  %1114 = vmatprep.subr.mxu0 %v623
  %1115 = vmatpush2.msra.mxu0 %v622
  %1116 = vmatprep.subr.mxu0 %v619
  %1117 = vmatpush2.msra.mxu0 %v618
  %1118 = vmatprep.subr.mxu0 %v615
  %1119 = vmatpush2.msra.mxu0 %v614
  %1120 = vmatprep.subr.mxu0 %v611
  %1121 = vmatpush2.msra.mxu0 %v610
  %1122 = vmatprep.subr.mxu0 %v607
  %1123 = vmatpush2.msra.mxu0 %v606
  %1124 = vmatprep.subr.mxu0 %v603
  %1125 = vmatpush2.msra.mxu0 %v602
  %1126 = vmatprep.subr.mxu0 %v599
  %1127 = vmatpush2.msra.mxu0 %v598
  %1128 = vmatprep.subr.mxu0 %v595
  %1129 = vmatpush2.msra.mxu0 %v594
  %1130 = vmatprep.subr.mxu0 %v591
  %1131 = vmatpush2.msra.mxu0 %v590
  %1132 = vmatprep.subr.mxu0 %v587
  %1133 = vmatpush2.msra.mxu0 %v586
  %1134 = vmatprep.subr.mxu0 %v583
  %1135 = vmatpush2.msra.mxu0 %v582
  %1136 = vmatprep.mubr.f32.mxu0 %v825
  %1137 = vmatmul.mubr.f32.gmra.mxu0 %v515
  %v1138 = vpop.f32.mrf.mxu0
  %v1139 = vadd.f32 %v658, %v1138
  %v1140 = vpop.f32.mrf.mxu0
  %v1141 = vadd.f32 %v662, %v1140
  %1142 = vdwg.mxu0
  %v1143 = vtanh.pop %v1068
  %v1144 = vtanh.pop %v1070
  %v1145 = vtanh.pop %v1139
  %v1146 = vtanh.pop %v1141
  %v1147 = vmul.f32 %v1143, %v49
  %v1148 = vmul.f32 %v1144, %v50
  %v1149 = vmul.f32 %v1145, %v51
  %v1150 = vmul.f32 %v1146, %v52
  %v1151 = vadd.f32 %v1147, %v53
  %v1152 = vadd.f32 %v1148, %v54
  %v1153 = vadd.f32 %v1149, %v55
  %v1154 = vadd.f32 %v1150, %v56
  %v1155 = vmul.f32 %v1152, %v823
  %v1156 = vmul.f32 %v1151, %v1153
  %v1157 = vadd.f32 %v1155, %v1156
  %v1158 = vtanh.pop %v1157
  %v1159 = vmul.f32 %v1154, %v1158
  %v1160 = vld [vmem:[%s4] sm:$0xff]
  %v1161 = vld [vmem:[%s4 + $0x8] sm:$0xff]
  %v1162 = vld [vmem:[%s4 + $0x10] sm:$0xff]
  %v1163 = vld [vmem:[%s4 + $0x18] sm:$0xff]
  %v1164 = vld [vmem:[%s4 + $0x20] sm:$0xff]
  %v1165 = vld [vmem:[%s4 + $0x28] sm:$0xff]
  %v1166 = vld [vmem:[%s4 + $0x30] sm:$0xff]
  %v1167 = vld [vmem:[%s4 + $0x38] sm:$0xff]
  %v1168 = vld [vmem:[%s4 + $0x40] sm:$0xff]
  %v1169 = vld [vmem:[%s4 + $0x48] sm:$0xff]
  %v1170 = vld [vmem:[%s4 + $0x50] sm:$0xff]
  %v1171 = vld [vmem:[%s4 + $0x58] sm:$0xff]
  %v1172 = vld [vmem:[%s4 + $0x60] sm:$0xff]
  %v1173 = vld [vmem:[%s4 + $0x68] sm:$0xff]
  %v1174 = vld [vmem:[%s4 + $0x70] sm:$0xff]
  %v1175 = vld [vmem:[%s4 + $0x78] sm:$0xff]
  %v1176 = vld [vmem:[%s4 + $0x80] sm:$0xff]
  %v1177 = vld [vmem:[%s4 + $0x88] sm:$0xff]
  %v1178 = vld [vmem:[%s4 + $0x90] sm:$0xff]
  %v1179 = vld [vmem:[%s4 + $0x98] sm:$0xff]
  %v1180 = vld [vmem:[%s4 + $0xa0] sm:$0xff]
  %v1181 = vld [vmem:[%s4 + $0xa8] sm:$0xff]
  %v1182 = vld [vmem:[%s4 + $0xb0] sm:$0xff]
  %v1183 = vld [vmem:[%s4 + $0xb8] sm:$0xff]
  %v1184 = vld [vmem:[%s4 + $0xc0] sm:$0xff]
  %v1185 = vld [vmem:[%s4 + $0xc8] sm:$0xff]
  %v1186 = vld [vmem:[%s4 + $0xd0] sm:$0xff]
  %v1187 = vld [vmem:[%s4 + $0xd8] sm:$0xff]
  %v1188 = vld [vmem:[%s4 + $0xe0] sm:$0xff]
  %v1189 = vld [vmem:[%s4 + $0xe8] sm:$0xff]
  %v1190 = vld [vmem:[%s4 + $0xf0] sm:$0xff]
  %v1191 = vld [vmem:[%s4 + $0xf8] sm:$0xff]
  %v1192 = vld [vmem:[%s4 + $0x100] sm:$0xff]
  %v1193 = vld [vmem:[%s4 + $0x108] sm:$0xff]
  %v1194 = vld [vmem:[%s4 + $0x110] sm:$0xff]
  %v1195 = vld [vmem:[%s4 + $0x118] sm:$0xff]
  %v1196 = vld [vmem:[%s4 + $0x120] sm:$0xff]
  %v1197 = vld [vmem:[%s4 + $0x128] sm:$0xff]
  %v1198 = vld [vmem:[%s4 + $0x130] sm:$0xff]
  %v1199 = vld [vmem:[%s4 + $0x138] sm:$0xff]
  %v1200 = vld [vmem:[%s4 + $0x140] sm:$0xff]
  %v1201 = vld [vmem:[%s4 + $0x148] sm:$0xff]
  %v1202 = vld [vmem:[%s4 + $0x150] sm:$0xff]
  %v1203 = vld [vmem:[%s4 + $0x158] sm:$0xff]
  %v1204 = vld [vmem:[%s4 + $0x160] sm:$0xff]
  %v1205 = vld [vmem:[%s4 + $0x168] sm:$0xff]
  %v1206 = vld [vmem:[%s4 + $0x170] sm:$0xff]
  %v1207 = vld [vmem:[%s4 + $0x178] sm:$0xff]
  %v1208 = vld [vmem:[%s4 + $0x180] sm:$0xff]
  %v1209 = vld [vmem:[%s4 + $0x188] sm:$0xff]
  %v1210 = vld [vmem:[%s4 + $0x190] sm:$0xff]
  %v1211 = vld [vmem:[%s4 + $0x198] sm:$0xff]
  %v1212 = vld [vmem:[%s4 + $0x1a0] sm:$0xff]
  %v1213 = vld [vmem:[%s4 + $0x1a8] sm:$0xff]
  %v1214 = vld [vmem:[%s4 + $0x1b0] sm:$0xff]
  %v1215 = vld [vmem:[%s4 + $0x1b8] sm:$0xff]
  %v1216 = vld [vmem:[%s4 + $0x1c0] sm:$0xff]
  %v1217 = vld [vmem:[%s4 + $0x1c8] sm:$0xff]
  %v1218 = vld [vmem:[%s4 + $0x1d0] sm:$0xff]
  %v1219 = vld [vmem:[%s4 + $0x1d8] sm:$0xff]
  %v1220 = vld [vmem:[%s4 + $0x1e0] sm:$0xff]
  %v1221 = vld [vmem:[%s4 + $0x1e8] sm:$0xff]
  %v1222 = vld [vmem:[%s4 + $0x1f0] sm:$0xff]
  %v1223 = vld [vmem:[%s4 + $0x1f8] sm:$0xff]
  %v1224 = vld [vmem:[%s4 + $0x200] sm:$0xff]
  %v1225 = vld [vmem:[%s4 + $0x208] sm:$0xff]
  %v1226 = vld [vmem:[%s4 + $0x210] sm:$0xff]
  %v1227 = vld [vmem:[%s4 + $0x218] sm:$0xff]
  %v1228 = vld [vmem:[%s4 + $0x220] sm:$0xff]
  %v1229 = vld [vmem:[%s4 + $0x228] sm:$0xff]
  %v1230 = vld [vmem:[%s4 + $0x230] sm:$0xff]
  %v1231 = vld [vmem:[%s4 + $0x238] sm:$0xff]
  %v1232 = vld [vmem:[%s4 + $0x240] sm:$0xff]
  %v1233 = vld [vmem:[%s4 + $0x248] sm:$0xff]
  %v1234 = vld [vmem:[%s4 + $0x250] sm:$0xff]
  %v1235 = vld [vmem:[%s4 + $0x258] sm:$0xff]
  %v1236 = vld [vmem:[%s4 + $0x260] sm:$0xff]
  %v1237 = vld [vmem:[%s4 + $0x268] sm:$0xff]
  %v1238 = vld [vmem:[%s4 + $0x270] sm:$0xff]
  %v1239 = vld [vmem:[%s4 + $0x278] sm:$0xff]
  %v1240 = vld [vmem:[%s4 + $0x280] sm:$0xff]
  %v1241 = vld [vmem:[%s4 + $0x288] sm:$0xff]
  %v1242 = vld [vmem:[%s4 + $0x290] sm:$0xff]
  %v1243 = vld [vmem:[%s4 + $0x298] sm:$0xff]
  %v1244 = vld [vmem:[%s4 + $0x2a0] sm:$0xff]
  %v1245 = vld [vmem:[%s4 + $0x2a8] sm:$0xff]
  %v1246 = vld [vmem:[%s4 + $0x2b0] sm:$0xff]
  %v1247 = vld [vmem:[%s4 + $0x2b8] sm:$0xff]
  %v1248 = vld [vmem:[%s4 + $0x2c0] sm:$0xff]
  %v1249 = vld [vmem:[%s4 + $0x2c8] sm:$0xff]
  %v1250 = vld [vmem:[%s4 + $0x2d0] sm:$0xff]
  %v1251 = vld [vmem:[%s4 + $0x2d8] sm:$0xff]
  %v1252 = vld [vmem:[%s4 + $0x2e0] sm:$0xff]
  %v1253 = vld [vmem:[%s4 + $0x2e8] sm:$0xff]
  %v1254 = vld [vmem:[%s4 + $0x2f0] sm:$0xff]
  %v1255 = vld [vmem:[%s4 + $0x2f8] sm:$0xff]
  %v1256 = vld [vmem:[%s4 + $0x300] sm:$0xff]
  %v1257 = vld [vmem:[%s4 + $0x308] sm:$0xff]
  %v1258 = vld [vmem:[%s4 + $0x310] sm:$0xff]
  %v1259 = vld [vmem:[%s4 + $0x318] sm:$0xff]
  %v1260 = vld [vmem:[%s4 + $0x320] sm:$0xff]
  %v1261 = vld [vmem:[%s4 + $0x328] sm:$0xff]
  %v1262 = vld [vmem:[%s4 + $0x330] sm:$0xff]
  %v1263 = vld [vmem:[%s4 + $0x338] sm:$0xff]
  %v1264 = vld [vmem:[%s4 + $0x340] sm:$0xff]
  %v1265 = vld [vmem:[%s4 + $0x348] sm:$0xff]
  %v1266 = vld [vmem:[%s4 + $0x350] sm:$0xff]
  %v1267 = vld [vmem:[%s4 + $0x358] sm:$0xff]
  %v1268 = vld [vmem:[%s4 + $0x360] sm:$0xff]
  %v1269 = vld [vmem:[%s4 + $0x368] sm:$0xff]
  %v1270 = vld [vmem:[%s4 + $0x370] sm:$0xff]
  %v1271 = vld [vmem:[%s4 + $0x378] sm:$0xff]
  %v1272 = vld [vmem:[%s4 + $0x380] sm:$0xff]
  %v1273 = vld [vmem:[%s4 + $0x388] sm:$0xff]
  %v1274 = vld [vmem:[%s4 + $0x390] sm:$0xff]
  %v1275 = vld [vmem:[%s4 + $0x398] sm:$0xff]
  %v1276 = vld [vmem:[%s4 + $0x3a0] sm:$0xff]
  %v1277 = vld [vmem:[%s4 + $0x3a8] sm:$0xff]
  %v1278 = vld [vmem:[%s4 + $0x3b0] sm:$0xff]
  %v1279 = vld [vmem:[%s4 + $0x3b8] sm:$0xff]
  %v1280 = vld [vmem:[%s4 + $0x3c0] sm:$0xff]
  %v1281 = vld [vmem:[%s4 + $0x3c8] sm:$0xff]
  %v1282 = vld [vmem:[%s4 + $0x3d0] sm:$0xff]
  %v1283 = vld [vmem:[%s4 + $0x3d8] sm:$0xff]
  %v1284 = vld [vmem:[%s4 + $0x3e0] sm:$0xff]
  %v1285 = vld [vmem:[%s4 + $0x3e8] sm:$0xff]
  %v1286 = vld [vmem:[%s4 + $0x3f0] sm:$0xff]
  %v1287 = vld [vmem:[%s4 + $0x3f8] sm:$0xff]
  %s1288 = scalar_lea.vmem %s5, 8
  %v1289 = vld [vmem:[%s1288] sm:$0xf]
  %v1291 = vlaneseq
  %v1292 = vshrl.u32 %v1291, 7
  %v1293 = vsub.s32 0, %v1292
  %v1294 = vrot.slane %v1289, %v1293
  %v1295 = vlaneseq
  %v1296 = vshrl.u32 %v1295, 7
  %v1297 = vsub.s32 1, %v1296
  %v1298 = vrot.slane %v1289, %v1297
  %v1299 = vlaneseq
  %v1300 = vshrl.u32 %v1299, 7
  %v1301 = vsub.s32 2, %v1300
  %v1302 = vrot.slane %v1289, %v1301
  %v1303 = vlaneseq
  %v1304 = vshrl.u32 %v1303, 7
  %v1305 = vsub.s32 3, %v1304
  %v1306 = vrot.slane %v1289, %v1305
  %1311 = vmatprep.subr.mxu0 %v1221
  %1312 = vmatpush1.msra.mxu0 %v1220
  %1313 = vmatprep.subr.mxu0 %v1217
  %1314 = vmatpush1.msra.mxu0 %v1216
  %1315 = vmatprep.subr.mxu0 %v1213
  %1316 = vmatpush1.msra.mxu0 %v1212
  %1317 = vmatprep.subr.mxu0 %v1209
  %1318 = vmatpush1.msra.mxu0 %v1208
  %1319 = vmatprep.subr.mxu0 %v1205
  %1320 = vmatpush1.msra.mxu0 %v1204
  %1321 = vmatprep.subr.mxu0 %v1201
  %1322 = vmatpush1.msra.mxu0 %v1200
  %1323 = vmatprep.subr.mxu0 %v1197
  %1324 = vmatpush1.msra.mxu0 %v1196
  %1325 = vmatprep.subr.mxu0 %v1193
  %1326 = vmatpush1.msra.mxu0 %v1192
  %1327 = vmatprep.subr.mxu0 %v1189
  %1328 = vmatpush1.msra.mxu0 %v1188
  %1329 = vmatprep.subr.mxu0 %v1185
  %1330 = vmatpush1.msra.mxu0 %v1184
  %1331 = vmatprep.subr.mxu0 %v1181
  %1332 = vmatpush1.msra.mxu0 %v1180
  %1333 = vmatprep.subr.mxu0 %v1177
  %1334 = vmatpush1.msra.mxu0 %v1176
  %1335 = vmatprep.subr.mxu0 %v1173
  %1336 = vmatpush1.msra.mxu0 %v1172
  %1337 = vmatprep.subr.mxu0 %v1169
  %1338 = vmatpush1.msra.mxu0 %v1168
  %1339 = vmatprep.subr.mxu0 %v1165
  %1340 = vmatpush1.msra.mxu0 %v1164
  %1341 = vmatprep.subr.mxu0 %v1161
  %1342 = vmatpush1.msra.mxu0 %v1160
  %1343 = vmatprep.subr.mxu0 %v1285
  %1344 = vmatpush2.msra.mxu0 %v1284
  %1345 = vmatprep.subr.mxu0 %v1281
  %1346 = vmatpush2.msra.mxu0 %v1280
  %1347 = vmatprep.subr.mxu0 %v1277
  %1348 = vmatpush2.msra.mxu0 %v1276
  %1349 = vmatprep.subr.mxu0 %v1273
  %1350 = vmatpush2.msra.mxu0 %v1272
  %1351 = vmatprep.subr.mxu0 %v1269
  %1352 = vmatpush2.msra.mxu0 %v1268
  %1353 = vmatprep.subr.mxu0 %v1265
  %1354 = vmatpush2.msra.mxu0 %v1264
  %1355 = vmatprep.subr.mxu0 %v1261
  %1356 = vmatpush2.msra.mxu0 %v1260
  %1357 = vmatprep.subr.mxu0 %v1257
  %1358 = vmatpush2.msra.mxu0 %v1256
  %1359 = vmatprep.subr.mxu0 %v1253
  %1360 = vmatpush2.msra.mxu0 %v1252
  %1361 = vmatprep.subr.mxu0 %v1249
  %1362 = vmatpush2.msra.mxu0 %v1248
  %1363 = vmatprep.subr.mxu0 %v1245
  %1364 = vmatpush2.msra.mxu0 %v1244
  %1365 = vmatprep.subr.mxu0 %v1241
  %1366 = vmatpush2.msra.mxu0 %v1240
  %1367 = vmatprep.subr.mxu0 %v1237
  %1368 = vmatpush2.msra.mxu0 %v1236
  %1369 = vmatprep.subr.mxu0 %v1233
  %1370 = vmatpush2.msra.mxu0 %v1232
  %1371 = vmatprep.subr.mxu0 %v1229
  %1372 = vmatpush2.msra.mxu0 %v1228
  %1373 = vmatprep.subr.mxu0 %v1225
  %1374 = vmatpush2.msra.mxu0 %v1224
  %1375 = vmatprep.mubr.f32.mxu0 0.0
  %1376 = vmatmul.mubr.f32.gmra.mxu0 %v825
  %v1377 = vpop.f32.mrf.mxu0
  %v1378 = vadd.f32 %v1294, %v1377
  %v1379 = vpop.f32.mrf.mxu0
  %v1380 = vadd.f32 %v1298, %v1379
  %1381 = vdwg.mxu0
  %1382 = vmatprep.subr.mxu0 %v1223
  %1383 = vmatpush1.msra.mxu0 %v1222
  %1384 = vmatprep.subr.mxu0 %v1219
  %1385 = vmatpush1.msra.mxu0 %v1218
  %1386 = vmatprep.subr.mxu0 %v1215
  %1387 = vmatpush1.msra.mxu0 %v1214
  %1388 = vmatprep.subr.mxu0 %v1211
  %1389 = vmatpush1.msra.mxu0 %v1210
  %1390 = vmatprep.subr.mxu0 %v1207
  %1391 = vmatpush1.msra.mxu0 %v1206
  %1392 = vmatprep.subr.mxu0 %v1203
  %1393 = vmatpush1.msra.mxu0 %v1202
  %1394 = vmatprep.subr.mxu0 %v1199
  %1395 = vmatpush1.msra.mxu0 %v1198
  %1396 = vmatprep.subr.mxu0 %v1195
  %1397 = vmatpush1.msra.mxu0 %v1194
  %1398 = vmatprep.subr.mxu0 %v1191
  %1399 = vmatpush1.msra.mxu0 %v1190
  %1400 = vmatprep.subr.mxu0 %v1187
  %1401 = vmatpush1.msra.mxu0 %v1186
  %1402 = vmatprep.subr.mxu0 %v1183
  %1403 = vmatpush1.msra.mxu0 %v1182
  %1404 = vmatprep.subr.mxu0 %v1179
  %1405 = vmatpush1.msra.mxu0 %v1178
  %1406 = vmatprep.subr.mxu0 %v1175
  %1407 = vmatpush1.msra.mxu0 %v1174
  %1408 = vmatprep.subr.mxu0 %v1171
  %1409 = vmatpush1.msra.mxu0 %v1170
  %1410 = vmatprep.subr.mxu0 %v1167
  %1411 = vmatpush1.msra.mxu0 %v1166
  %1412 = vmatprep.subr.mxu0 %v1163
  %1413 = vmatpush1.msra.mxu0 %v1162
  %1414 = vmatprep.subr.mxu0 %v1287
  %1415 = vmatpush2.msra.mxu0 %v1286
  %1416 = vmatprep.subr.mxu0 %v1283
  %1417 = vmatpush2.msra.mxu0 %v1282
  %1418 = vmatprep.subr.mxu0 %v1279
  %1419 = vmatpush2.msra.mxu0 %v1278
  %1420 = vmatprep.subr.mxu0 %v1275
  %1421 = vmatpush2.msra.mxu0 %v1274
  %1422 = vmatprep.subr.mxu0 %v1271
  %1423 = vmatpush2.msra.mxu0 %v1270
  %1424 = vmatprep.subr.mxu0 %v1267
  %1425 = vmatpush2.msra.mxu0 %v1266
  %1426 = vmatprep.subr.mxu0 %v1263
  %1427 = vmatpush2.msra.mxu0 %v1262
  %1428 = vmatprep.subr.mxu0 %v1259
  %1429 = vmatpush2.msra.mxu0 %v1258
  %1430 = vmatprep.subr.mxu0 %v1255
  %1431 = vmatpush2.msra.mxu0 %v1254
  %1432 = vmatprep.subr.mxu0 %v1251
  %1433 = vmatpush2.msra.mxu0 %v1250
  %1434 = vmatprep.subr.mxu0 %v1247
  %1435 = vmatpush2.msra.mxu0 %v1246
  %1436 = vmatprep.subr.mxu0 %v1243
  %1437 = vmatpush2.msra.mxu0 %v1242
  %1438 = vmatprep.subr.mxu0 %v1239
  %1439 = vmatpush2.msra.mxu0 %v1238
  %1440 = vmatprep.subr.mxu0 %v1235
  %1441 = vmatpush2.msra.mxu0 %v1234
  %1442 = vmatprep.subr.mxu0 %v1231
  %1443 = vmatpush2.msra.mxu0 %v1230
  %1444 = vmatprep.subr.mxu0 %v1227
  %1445 = vmatpush2.msra.mxu0 %v1226
  %1446 = vmatprep.mubr.f32.mxu0 0.0
  %1447 = vmatmul.mubr.f32.gmra.mxu0 %v825
  %v1448 = vpop.f32.mrf.mxu0
  %v1449 = vadd.f32 %v1302, %v1448
  %v1450 = vpop.f32.mrf.mxu0
  %v1451 = vadd.f32 %v1306, %v1450
  %1452 = vdwg.mxu0
  %v1453 = vtanh.pop %v1378
  %v1454 = vtanh.pop %v1380
  %v1455 = vtanh.pop %v1449
  %v1456 = vtanh.pop %v1451
  %v1457 = vmul.f32 %v1453, %v49
  %v1458 = vmul.f32 %v1454, %v50
  %v1459 = vmul.f32 %v1455, %v51
  %v1460 = vmul.f32 %v1456, %v52
  %v1461 = vadd.f32 %v1457, %v53
  %v1462 = vadd.f32 %v1458, %v54
  %v1463 = vadd.f32 %v1459, %v55
  %v1464 = vadd.f32 %v1460, %v56
  %v1465 = vmul.f32 %v1462, 0.0
  %v1466 = vmul.f32 %v1461, %v1463
  %v1467 = vadd.f32 %v1465, %v1466
  %v1468 = vtanh.pop %v1467
  %v1469 = vmul.f32 %v1464, %v1468
  %1470 = vset.pattern.permute.xlu0 3
  %1471 = vperm.xlu0 %1470, %v31
  %v1472 = vpop.permute.xlu0 %1471
  %v1474 = vmul.f32 %v1472, %v67
  %v1475 = vmul.f32 %v1472, %v71
  %v1476 = vmul.f32 %v1472, %v75
  %v1477 = vmul.f32 %v1472, %v79
  %1478 = vmatprep.subr.mxu0 %v149
  %1479 = vmatpush1.msra.mxu0 %v148
  %1480 = vmatprep.subr.mxu0 %v145
  %1481 = vmatpush1.msra.mxu0 %v144
  %1482 = vmatprep.subr.mxu0 %v141
  %1483 = vmatpush1.msra.mxu0 %v140
  %1484 = vmatprep.subr.mxu0 %v137
  %1485 = vmatpush1.msra.mxu0 %v136
  %1486 = vmatprep.subr.mxu0 %v133
  %1487 = vmatpush1.msra.mxu0 %v132
  %1488 = vmatprep.subr.mxu0 %v129
  %1489 = vmatpush1.msra.mxu0 %v128
  %1490 = vmatprep.subr.mxu0 %v125
  %1491 = vmatpush1.msra.mxu0 %v124
  %1492 = vmatprep.subr.mxu0 %v121
  %1493 = vmatpush1.msra.mxu0 %v120
  %1494 = vmatprep.subr.mxu0 %v117
  %1495 = vmatpush1.msra.mxu0 %v116
  %1496 = vmatprep.subr.mxu0 %v113
  %1497 = vmatpush1.msra.mxu0 %v112
  %1498 = vmatprep.subr.mxu0 %v109
  %1499 = vmatpush1.msra.mxu0 %v108
  %1500 = vmatprep.subr.mxu0 %v105
  %1501 = vmatpush1.msra.mxu0 %v104
  %1502 = vmatprep.subr.mxu0 %v101
  %1503 = vmatpush1.msra.mxu0 %v100
  %1504 = vmatprep.subr.mxu0 %v97
  %1505 = vmatpush1.msra.mxu0 %v96
  %1506 = vmatprep.subr.mxu0 %v93
  %1507 = vmatpush1.msra.mxu0 %v92
  %1508 = vmatprep.subr.mxu0 %v89
  %1509 = vmatpush1.msra.mxu0 %v88
  %1510 = vmatprep.subr.mxu0 0.0
  %1511 = vmatpush2.msra.mxu0 0.0
  %1512 = vmatprep.subr.mxu0 0.0
  %1513 = vmatpush2.msra.mxu0 0.0
  %1514 = vmatprep.subr.mxu0 0.0
  %1515 = vmatpush2.msra.mxu0 0.0
  %1516 = vmatprep.subr.mxu0 0.0
  %1517 = vmatpush2.msra.mxu0 0.0
  %1518 = vmatprep.subr.mxu0 0.0
  %1519 = vmatpush2.msra.mxu0 0.0
  %1520 = vmatprep.subr.mxu0 0.0
  %1521 = vmatpush2.msra.mxu0 0.0
  %1522 = vmatprep.subr.mxu0 0.0
  %1523 = vmatpush2.msra.mxu0 0.0
  %1524 = vmatprep.subr.mxu0 0.0
  %1525 = vmatpush2.msra.mxu0 0.0
  %1526 = vmatprep.subr.mxu0 0.0
  %1527 = vmatpush2.msra.mxu0 0.0
  %1528 = vmatprep.subr.mxu0 0.0
  %1529 = vmatpush2.msra.mxu0 0.0
  %1530 = vmatprep.subr.mxu0 0.0
  %1531 = vmatpush2.msra.mxu0 0.0
  %1532 = vmatprep.subr.mxu0 0.0
  %1533 = vmatpush2.msra.mxu0 0.0
  %1534 = vmatprep.subr.mxu0 0.0
  %1535 = vmatpush2.msra.mxu0 0.0
  %1536 = vmatprep.subr.mxu0 0.0
  %1537 = vmatpush2.msra.mxu0 0.0
  %1538 = vmatprep.subr.mxu0 0.0
  %1539 = vmatpush2.msra.mxu0 0.0
  %1540 = vmatprep.subr.mxu0 0.0
  %1541 = vmatpush2.msra.mxu0 0.0
  %1542 = vmatprep.mubr.f32.mxu0 0.0
  %1543 = vmatmul.mubr.f32.gmra.mxu0 %v1000
  %v1544 = vpop.f32.mrf.mxu0
  %v1545 = vadd.f32 0.0, %v1544
  %v1546 = vpop.f32.mrf.mxu0
  %v1547 = vadd.f32 0.0, %v1546
  %1548 = vdwg.mxu0
  %1549 = vmatprep.subr.mxu0 %v151
  %1550 = vmatpush1.msra.mxu0 %v150
  %1551 = vmatprep.subr.mxu0 %v147
  %1552 = vmatpush1.msra.mxu0 %v146
  %1553 = vmatprep.subr.mxu0 %v143
  %1554 = vmatpush1.msra.mxu0 %v142
  %1555 = vmatprep.subr.mxu0 %v139
  %1556 = vmatpush1.msra.mxu0 %v138
  %1557 = vmatprep.subr.mxu0 %v135
  %1558 = vmatpush1.msra.mxu0 %v134
  %1559 = vmatprep.subr.mxu0 %v131
  %1560 = vmatpush1.msra.mxu0 %v130
  %1561 = vmatprep.subr.mxu0 %v127
  %1562 = vmatpush1.msra.mxu0 %v126
  %1563 = vmatprep.subr.mxu0 %v123
  %1564 = vmatpush1.msra.mxu0 %v122
  %1565 = vmatprep.subr.mxu0 %v119
  %1566 = vmatpush1.msra.mxu0 %v118
  %1567 = vmatprep.subr.mxu0 %v115
  %1568 = vmatpush1.msra.mxu0 %v114
  %1569 = vmatprep.subr.mxu0 %v111
  %1570 = vmatpush1.msra.mxu0 %v110
  %1571 = vmatprep.subr.mxu0 %v107
  %1572 = vmatpush1.msra.mxu0 %v106
  %1573 = vmatprep.subr.mxu0 %v103
  %1574 = vmatpush1.msra.mxu0 %v102
  %1575 = vmatprep.subr.mxu0 %v99
  %1576 = vmatpush1.msra.mxu0 %v98
  %1577 = vmatprep.subr.mxu0 %v95
  %1578 = vmatpush1.msra.mxu0 %v94
  %1579 = vmatprep.subr.mxu0 %v91
  %1580 = vmatpush1.msra.mxu0 %v90
  %1581 = vmatprep.subr.mxu0 0.0
  %1582 = vmatpush2.msra.mxu0 0.0
  %1583 = vmatprep.subr.mxu0 0.0
  %1584 = vmatpush2.msra.mxu0 0.0
  %1585 = vmatprep.subr.mxu0 0.0
  %1586 = vmatpush2.msra.mxu0 0.0
  %1587 = vmatprep.subr.mxu0 0.0
  %1588 = vmatpush2.msra.mxu0 0.0
  %1589 = vmatprep.subr.mxu0 0.0
  %1590 = vmatpush2.msra.mxu0 0.0
  %1591 = vmatprep.subr.mxu0 0.0
  %1592 = vmatpush2.msra.mxu0 0.0
  %1593 = vmatprep.subr.mxu0 0.0
  %1594 = vmatpush2.msra.mxu0 0.0
  %1595 = vmatprep.subr.mxu0 0.0
  %1596 = vmatpush2.msra.mxu0 0.0
  %1597 = vmatprep.subr.mxu0 0.0
  %1598 = vmatpush2.msra.mxu0 0.0
  %1599 = vmatprep.subr.mxu0 0.0
  %1600 = vmatpush2.msra.mxu0 0.0
  %1601 = vmatprep.subr.mxu0 0.0
  %1602 = vmatpush2.msra.mxu0 0.0
  %1603 = vmatprep.subr.mxu0 0.0
  %1604 = vmatpush2.msra.mxu0 0.0
  %1605 = vmatprep.subr.mxu0 0.0
  %1606 = vmatpush2.msra.mxu0 0.0
  %1607 = vmatprep.subr.mxu0 0.0
  %1608 = vmatpush2.msra.mxu0 0.0
  %1609 = vmatprep.subr.mxu0 0.0
  %1610 = vmatpush2.msra.mxu0 0.0
  %1611 = vmatprep.subr.mxu0 0.0
  %1612 = vmatpush2.msra.mxu0 0.0
  %1613 = vmatprep.mubr.f32.mxu0 0.0
  %1614 = vmatmul.mubr.f32.gmra.mxu0 %v1000
  %v1615 = vpop.f32.mrf.mxu0
  %v1616 = vadd.f32 0.0, %v1615
  %v1617 = vpop.f32.mrf.mxu0
  %v1618 = vadd.f32 0.0, %v1617
  %1619 = vdwg.mxu0
  %v1620 = vadd.f32 %v1474, %v1545
  %v1621 = vadd.f32 %v1475, %v1547
  %v1622 = vadd.f32 %v1476, %v1616
  %v1623 = vadd.f32 %v1477, %v1618
  %v1624 = vadd.f32 %v1620, %v303
  %v1625 = vadd.f32 %v1621, %v307
  %v1626 = vadd.f32 %v1622, %v311
  %v1627 = vadd.f32 %v1623, %v315
  %v1628 = vtanh.pop %v1624
  %v1629 = vtanh.pop %v1625
  %v1630 = vtanh.pop %v1626
  %v1631 = vtanh.pop %v1627
  %v1632 = vmul.f32 %v1628, %v49
  %v1633 = vmul.f32 %v1629, %v50
  %v1634 = vmul.f32 %v1630, %v51
  %v1635 = vmul.f32 %v1631, %v52
  %v1636 = vadd.f32 %v1632, %v53
  %v1637 = vadd.f32 %v1633, %v54
  %v1638 = vadd.f32 %v1634, %v55
  %v1639 = vadd.f32 %v1635, %v56
  %v1640 = vmul.f32 %v1637, %v998
  %v1641 = vmul.f32 %v1636, %v1638
  %v1642 = vadd.f32 %v1640, %v1641
  %v1643 = vtanh.pop %v1642
  %v1644 = vmul.f32 %v1639, %v1643
  %1645 = vmatprep.subr.mxu0 %v577
  %1646 = vmatpush1.msra.mxu0 %v576
  %1647 = vmatprep.subr.mxu0 %v573
  %1648 = vmatpush1.msra.mxu0 %v572
  %1649 = vmatprep.subr.mxu0 %v569
  %1650 = vmatpush1.msra.mxu0 %v568
  %1651 = vmatprep.subr.mxu0 %v565
  %1652 = vmatpush1.msra.mxu0 %v564
  %1653 = vmatprep.subr.mxu0 %v561
  %1654 = vmatpush1.msra.mxu0 %v560
  %1655 = vmatprep.subr.mxu0 %v557
  %1656 = vmatpush1.msra.mxu0 %v556
  %1657 = vmatprep.subr.mxu0 %v553
  %1658 = vmatpush1.msra.mxu0 %v552
  %1659 = vmatprep.subr.mxu0 %v549
  %1660 = vmatpush1.msra.mxu0 %v548
  %1661 = vmatprep.subr.mxu0 %v545
  %1662 = vmatpush1.msra.mxu0 %v544
  %1663 = vmatprep.subr.mxu0 %v541
  %1664 = vmatpush1.msra.mxu0 %v540
  %1665 = vmatprep.subr.mxu0 %v537
  %1666 = vmatpush1.msra.mxu0 %v536
  %1667 = vmatprep.subr.mxu0 %v533
  %1668 = vmatpush1.msra.mxu0 %v532
  %1669 = vmatprep.subr.mxu0 %v529
  %1670 = vmatpush1.msra.mxu0 %v528
  %1671 = vmatprep.subr.mxu0 %v525
  %1672 = vmatpush1.msra.mxu0 %v524
  %1673 = vmatprep.subr.mxu0 %v521
  %1674 = vmatpush1.msra.mxu0 %v520
  %1675 = vmatprep.subr.mxu0 %v517
  %1676 = vmatpush1.msra.mxu0 %v516
  %1677 = vmatprep.subr.mxu0 %v641
  %1678 = vmatpush2.msra.mxu0 %v640
  %1679 = vmatprep.subr.mxu0 %v637
  %1680 = vmatpush2.msra.mxu0 %v636
  %1681 = vmatprep.subr.mxu0 %v633
  %1682 = vmatpush2.msra.mxu0 %v632
  %1683 = vmatprep.subr.mxu0 %v629
  %1684 = vmatpush2.msra.mxu0 %v628
  %1685 = vmatprep.subr.mxu0 %v625
  %1686 = vmatpush2.msra.mxu0 %v624
  %1687 = vmatprep.subr.mxu0 %v621
  %1688 = vmatpush2.msra.mxu0 %v620
  %1689 = vmatprep.subr.mxu0 %v617
  %1690 = vmatpush2.msra.mxu0 %v616
  %1691 = vmatprep.subr.mxu0 %v613
  %1692 = vmatpush2.msra.mxu0 %v612
  %1693 = vmatprep.subr.mxu0 %v609
  %1694 = vmatpush2.msra.mxu0 %v608
  %1695 = vmatprep.subr.mxu0 %v605
  %1696 = vmatpush2.msra.mxu0 %v604
  %1697 = vmatprep.subr.mxu0 %v601
  %1698 = vmatpush2.msra.mxu0 %v600
  %1699 = vmatprep.subr.mxu0 %v597
  %1700 = vmatpush2.msra.mxu0 %v596
  %1701 = vmatprep.subr.mxu0 %v593
  %1702 = vmatpush2.msra.mxu0 %v592
  %1703 = vmatprep.subr.mxu0 %v589
  %1704 = vmatpush2.msra.mxu0 %v588
  %1705 = vmatprep.subr.mxu0 %v585
  %1706 = vmatpush2.msra.mxu0 %v584
  %1707 = vmatprep.subr.mxu0 %v581
  %1708 = vmatpush2.msra.mxu0 %v580
  %1709 = vmatprep.mubr.f32.mxu0 %v1159
  %1710 = vmatmul.mubr.f32.gmra.mxu0 %v1000
  %v1711 = vpop.f32.mrf.mxu0
  %v1712 = vadd.f32 %v650, %v1711
  %v1713 = vpop.f32.mrf.mxu0
  %v1714 = vadd.f32 %v654, %v1713
  %1715 = vdwg.mxu0
  %1716 = vmatprep.subr.mxu0 %v579
  %1717 = vmatpush1.msra.mxu0 %v578
  %1718 = vmatprep.subr.mxu0 %v575
  %1719 = vmatpush1.msra.mxu0 %v574
  %1720 = vmatprep.subr.mxu0 %v571
  %1721 = vmatpush1.msra.mxu0 %v570
  %1722 = vmatprep.subr.mxu0 %v567
  %1723 = vmatpush1.msra.mxu0 %v566
  %1724 = vmatprep.subr.mxu0 %v563
  %1725 = vmatpush1.msra.mxu0 %v562
  %1726 = vmatprep.subr.mxu0 %v559
  %1727 = vmatpush1.msra.mxu0 %v558
  %1728 = vmatprep.subr.mxu0 %v555
  %1729 = vmatpush1.msra.mxu0 %v554
  %1730 = vmatprep.subr.mxu0 %v551
  %1731 = vmatpush1.msra.mxu0 %v550
  %1732 = vmatprep.subr.mxu0 %v547
  %1733 = vmatpush1.msra.mxu0 %v546
  %1734 = vmatprep.subr.mxu0 %v543
  %1735 = vmatpush1.msra.mxu0 %v542
  %1736 = vmatprep.subr.mxu0 %v539
  %1737 = vmatpush1.msra.mxu0 %v538
  %1738 = vmatprep.subr.mxu0 %v535
  %1739 = vmatpush1.msra.mxu0 %v534
  %1740 = vmatprep.subr.mxu0 %v531
  %1741 = vmatpush1.msra.mxu0 %v530
  %1742 = vmatprep.subr.mxu0 %v527
  %1743 = vmatpush1.msra.mxu0 %v526
  %1744 = vmatprep.subr.mxu0 %v523
  %1745 = vmatpush1.msra.mxu0 %v522
  %1746 = vmatprep.subr.mxu0 %v519
  %1747 = vmatpush1.msra.mxu0 %v518
  %1748 = vmatprep.subr.mxu0 %v643
  %1749 = vmatpush2.msra.mxu0 %v642
  %1750 = vmatprep.subr.mxu0 %v639
  %1751 = vmatpush2.msra.mxu0 %v638
  %1752 = vmatprep.subr.mxu0 %v635
  %1753 = vmatpush2.msra.mxu0 %v634
  %1754 = vmatprep.subr.mxu0 %v631
  %1755 = vmatpush2.msra.mxu0 %v630
  %1756 = vmatprep.subr.mxu0 %v627
  %1757 = vmatpush2.msra.mxu0 %v626
  %1758 = vmatprep.subr.mxu0 %v623
  %1759 = vmatpush2.msra.mxu0 %v622
  %1760 = vmatprep.subr.mxu0 %v619
  %1761 = vmatpush2.msra.mxu0 %v618
  %1762 = vmatprep.subr.mxu0 %v615
  %1763 = vmatpush2.msra.mxu0 %v614
  %1764 = vmatprep.subr.mxu0 %v611
  %1765 = vmatpush2.msra.mxu0 %v610
  %1766 = vmatprep.subr.mxu0 %v607
  %1767 = vmatpush2.msra.mxu0 %v606
  %1768 = vmatprep.subr.mxu0 %v603
  %1769 = vmatpush2.msra.mxu0 %v602
  %1770 = vmatprep.subr.mxu0 %v599
  %1771 = vmatpush2.msra.mxu0 %v598
  %1772 = vmatprep.subr.mxu0 %v595
  %1773 = vmatpush2.msra.mxu0 %v594
  %1774 = vmatprep.subr.mxu0 %v591
  %1775 = vmatpush2.msra.mxu0 %v590
  %1776 = vmatprep.subr.mxu0 %v587
  %1777 = vmatpush2.msra.mxu0 %v586
  %1778 = vmatprep.subr.mxu0 %v583
  %1779 = vmatpush2.msra.mxu0 %v582
  %1780 = vmatprep.mubr.f32.mxu0 %v1159
  %1781 = vmatmul.mubr.f32.gmra.mxu0 %v1000
  %v1782 = vpop.f32.mrf.mxu0
  %v1783 = vadd.f32 %v658, %v1782
  %v1784 = vpop.f32.mrf.mxu0
  %v1785 = vadd.f32 %v662, %v1784
  %1786 = vdwg.mxu0
  %v1787 = vtanh.pop %v1712
  %v1788 = vtanh.pop %v1714
  %v1789 = vtanh.pop %v1783
  %v1790 = vtanh.pop %v1785
  %v1791 = vmul.f32 %v1787, %v49
  %v1792 = vmul.f32 %v1788, %v50
  %v1793 = vmul.f32 %v1789, %v51
  %v1794 = vmul.f32 %v1790, %v52
  %v1795 = vadd.f32 %v1791, %v53
  %v1796 = vadd.f32 %v1792, %v54
  %v1797 = vadd.f32 %v1793, %v55
  %v1798 = vadd.f32 %v1794, %v56
  %v1799 = vmul.f32 %v1796, %v1157
  %v1800 = vmul.f32 %v1795, %v1797
  %v1801 = vadd.f32 %v1799, %v1800
  %v1802 = vtanh.pop %v1801
  %v1803 = vmul.f32 %v1798, %v1802
  %1804 = vmatprep.subr.mxu0 %v1221
  %1805 = vmatpush1.msra.mxu0 %v1220
  %1806 = vmatprep.subr.mxu0 %v1217
  %1807 = vmatpush1.msra.mxu0 %v1216
  %1808 = vmatprep.subr.mxu0 %v1213
  %1809 = vmatpush1.msra.mxu0 %v1212
  %1810 = vmatprep.subr.mxu0 %v1209
  %1811 = vmatpush1.msra.mxu0 %v1208
  %1812 = vmatprep.subr.mxu0 %v1205
  %1813 = vmatpush1.msra.mxu0 %v1204
  %1814 = vmatprep.subr.mxu0 %v1201
  %1815 = vmatpush1.msra.mxu0 %v1200
  %1816 = vmatprep.subr.mxu0 %v1197
  %1817 = vmatpush1.msra.mxu0 %v1196
  %1818 = vmatprep.subr.mxu0 %v1193
  %1819 = vmatpush1.msra.mxu0 %v1192
  %1820 = vmatprep.subr.mxu0 %v1189
  %1821 = vmatpush1.msra.mxu0 %v1188
  %1822 = vmatprep.subr.mxu0 %v1185
  %1823 = vmatpush1.msra.mxu0 %v1184
  %1824 = vmatprep.subr.mxu0 %v1181
  %1825 = vmatpush1.msra.mxu0 %v1180
  %1826 = vmatprep.subr.mxu0 %v1177
  %1827 = vmatpush1.msra.mxu0 %v1176
  %1828 = vmatprep.subr.mxu0 %v1173
  %1829 = vmatpush1.msra.mxu0 %v1172
  %1830 = vmatprep.subr.mxu0 %v1169
  %1831 = vmatpush1.msra.mxu0 %v1168
  %1832 = vmatprep.subr.mxu0 %v1165
  %1833 = vmatpush1.msra.mxu0 %v1164
  %1834 = vmatprep.subr.mxu0 %v1161
  %1835 = vmatpush1.msra.mxu0 %v1160
  %1836 = vmatprep.subr.mxu0 %v1285
  %1837 = vmatpush2.msra.mxu0 %v1284
  %1838 = vmatprep.subr.mxu0 %v1281
  %1839 = vmatpush2.msra.mxu0 %v1280
  %1840 = vmatprep.subr.mxu0 %v1277
  %1841 = vmatpush2.msra.mxu0 %v1276
  %1842 = vmatprep.subr.mxu0 %v1273
  %1843 = vmatpush2.msra.mxu0 %v1272
  %1844 = vmatprep.subr.mxu0 %v1269
  %1845 = vmatpush2.msra.mxu0 %v1268
  %1846 = vmatprep.subr.mxu0 %v1265
  %1847 = vmatpush2.msra.mxu0 %v1264
  %1848 = vmatprep.subr.mxu0 %v1261
  %1849 = vmatpush2.msra.mxu0 %v1260
  %1850 = vmatprep.subr.mxu0 %v1257
  %1851 = vmatpush2.msra.mxu0 %v1256
  %1852 = vmatprep.subr.mxu0 %v1253
  %1853 = vmatpush2.msra.mxu0 %v1252
  %1854 = vmatprep.subr.mxu0 %v1249
  %1855 = vmatpush2.msra.mxu0 %v1248
  %1856 = vmatprep.subr.mxu0 %v1245
  %1857 = vmatpush2.msra.mxu0 %v1244
  %1858 = vmatprep.subr.mxu0 %v1241
  %1859 = vmatpush2.msra.mxu0 %v1240
  %1860 = vmatprep.subr.mxu0 %v1237
  %1861 = vmatpush2.msra.mxu0 %v1236
  %1862 = vmatprep.subr.mxu0 %v1233
  %1863 = vmatpush2.msra.mxu0 %v1232
  %1864 = vmatprep.subr.mxu0 %v1229
  %1865 = vmatpush2.msra.mxu0 %v1228
  %1866 = vmatprep.subr.mxu0 %v1225
  %1867 = vmatpush2.msra.mxu0 %v1224
  %1868 = vmatprep.mubr.f32.mxu0 %v1469
  %1869 = vmatmul.mubr.f32.gmra.mxu0 %v1159
  %v1870 = vpop.f32.mrf.mxu0
  %v1871 = vadd.f32 %v1294, %v1870
  %v1872 = vpop.f32.mrf.mxu0
  %v1873 = vadd.f32 %v1298, %v1872
  %1874 = vdwg.mxu0
  %1875 = vmatprep.subr.mxu0 %v1223
  %1876 = vmatpush1.msra.mxu0 %v1222
  %1877 = vmatprep.subr.mxu0 %v1219
  %1878 = vmatpush1.msra.mxu0 %v1218
  %1879 = vmatprep.subr.mxu0 %v1215
  %1880 = vmatpush1.msra.mxu0 %v1214
  %1881 = vmatprep.subr.mxu0 %v1211
  %1882 = vmatpush1.msra.mxu0 %v1210
  %1883 = vmatprep.subr.mxu0 %v1207
  %1884 = vmatpush1.msra.mxu0 %v1206
  %1885 = vmatprep.subr.mxu0 %v1203
  %1886 = vmatpush1.msra.mxu0 %v1202
  %1887 = vmatprep.subr.mxu0 %v1199
  %1888 = vmatpush1.msra.mxu0 %v1198
  %1889 = vmatprep.subr.mxu0 %v1195
  %1890 = vmatpush1.msra.mxu0 %v1194
  %1891 = vmatprep.subr.mxu0 %v1191
  %1892 = vmatpush1.msra.mxu0 %v1190
  %1893 = vmatprep.subr.mxu0 %v1187
  %1894 = vmatpush1.msra.mxu0 %v1186
  %1895 = vmatprep.subr.mxu0 %v1183
  %1896 = vmatpush1.msra.mxu0 %v1182
  %1897 = vmatprep.subr.mxu0 %v1179
  %1898 = vmatpush1.msra.mxu0 %v1178
  %1899 = vmatprep.subr.mxu0 %v1175
  %1900 = vmatpush1.msra.mxu0 %v1174
  %1901 = vmatprep.subr.mxu0 %v1171
  %1902 = vmatpush1.msra.mxu0 %v1170
  %1903 = vmatprep.subr.mxu0 %v1167
  %1904 = vmatpush1.msra.mxu0 %v1166
  %1905 = vmatprep.subr.mxu0 %v1163
  %1906 = vmatpush1.msra.mxu0 %v1162
  %1907 = vmatprep.subr.mxu0 %v1287
  %1908 = vmatpush2.msra.mxu0 %v1286
  %1909 = vmatprep.subr.mxu0 %v1283
  %1910 = vmatpush2.msra.mxu0 %v1282
  %1911 = vmatprep.subr.mxu0 %v1279
  %1912 = vmatpush2.msra.mxu0 %v1278
  %1913 = vmatprep.subr.mxu0 %v1275
  %1914 = vmatpush2.msra.mxu0 %v1274
  %1915 = vmatprep.subr.mxu0 %v1271
  %1916 = vmatpush2.msra.mxu0 %v1270
  %1917 = vmatprep.subr.mxu0 %v1267
  %1918 = vmatpush2.msra.mxu0 %v1266
  %1919 = vmatprep.subr.mxu0 %v1263
  %1920 = vmatpush2.msra.mxu0 %v1262
  %1921 = vmatprep.subr.mxu0 %v1259
  %1922 = vmatpush2.msra.mxu0 %v1258
  %1923 = vmatprep.subr.mxu0 %v1255
  %1924 = vmatpush2.msra.mxu0 %v1254
  %1925 = vmatprep.subr.mxu0 %v1251
  %1926 = vmatpush2.msra.mxu0 %v1250
  %1927 = vmatprep.subr.mxu0 %v1247
  %1928 = vmatpush2.msra.mxu0 %v1246
  %1929 = vmatprep.subr.mxu0 %v1243
  %1930 = vmatpush2.msra.mxu0 %v1242
  %1931 = vmatprep.subr.mxu0 %v1239
  %1932 = vmatpush2.msra.mxu0 %v1238
  %1933 = vmatprep.subr.mxu0 %v1235
  %1934 = vmatpush2.msra.mxu0 %v1234
  %1935 = vmatprep.subr.mxu0 %v1231
  %1936 = vmatpush2.msra.mxu0 %v1230
  %1937 = vmatprep.subr.mxu0 %v1227
  %1938 = vmatpush2.msra.mxu0 %v1226
  %1939 = vmatprep.mubr.f32.mxu0 %v1469
  %1940 = vmatmul.mubr.f32.gmra.mxu0 %v1159
  %v1941 = vpop.f32.mrf.mxu0
  %v1942 = vadd.f32 %v1302, %v1941
  %v1943 = vpop.f32.mrf.mxu0
  %v1944 = vadd.f32 %v1306, %v1943
  %1945 = vdwg.mxu0
  %v1946 = vtanh.pop %v1871
  %v1947 = vtanh.pop %v1873
  %v1948 = vtanh.pop %v1942
  %v1949 = vtanh.pop %v1944
  %v1950 = vmul.f32 %v1946, %v49
  %v1951 = vmul.f32 %v1947, %v50
  %v1952 = vmul.f32 %v1948, %v51
  %v1953 = vmul.f32 %v1949, %v52
  %v1954 = vadd.f32 %v1950, %v53
  %v1955 = vadd.f32 %v1951, %v54
  %v1956 = vadd.f32 %v1952, %v55
  %v1957 = vadd.f32 %v1953, %v56
  %v1958 = vmul.f32 %v1955, %v1467
  %v1959 = vmul.f32 %v1954, %v1956
  %v1960 = vadd.f32 %v1958, %v1959
  %v1961 = vtanh.pop %v1960
  %v1962 = vmul.f32 %v1957, %v1961
  %1963 = vset.pattern.permute.xlu0 4
  %1964 = vperm.xlu0 %1963, %v31
  %v1965 = vpop.permute.xlu0 %1964
  %v1967 = vmul.f32 %v1965, %v67
  %v1968 = vmul.f32 %v1965, %v71
  %v1969 = vmul.f32 %v1965, %v75
  %v1970 = vmul.f32 %v1965, %v79
  %1971 = vmatprep.subr.mxu0 %v149
  %1972 = vmatpush1.msra.mxu0 %v148
  %1973 = vmatprep.subr.mxu0 %v145
  %1974 = vmatpush1.msra.mxu0 %v144
  %1975 = vmatprep.subr.mxu0 %v141
  %1976 = vmatpush1.msra.mxu0 %v140
  %1977 = vmatprep.subr.mxu0 %v137
  %1978 = vmatpush1.msra.mxu0 %v136
  %1979 = vmatprep.subr.mxu0 %v133
  %1980 = vmatpush1.msra.mxu0 %v132
  %1981 = vmatprep.subr.mxu0 %v129
  %1982 = vmatpush1.msra.mxu0 %v128
  %1983 = vmatprep.subr.mxu0 %v125
  %1984 = vmatpush1.msra.mxu0 %v124
  %1985 = vmatprep.subr.mxu0 %v121
  %1986 = vmatpush1.msra.mxu0 %v120
  %1987 = vmatprep.subr.mxu0 %v117
  %1988 = vmatpush1.msra.mxu0 %v116
  %1989 = vmatprep.subr.mxu0 %v113
  %1990 = vmatpush1.msra.mxu0 %v112
  %1991 = vmatprep.subr.mxu0 %v109
  %1992 = vmatpush1.msra.mxu0 %v108
  %1993 = vmatprep.subr.mxu0 %v105
  %1994 = vmatpush1.msra.mxu0 %v104
  %1995 = vmatprep.subr.mxu0 %v101
  %1996 = vmatpush1.msra.mxu0 %v100
  %1997 = vmatprep.subr.mxu0 %v97
  %1998 = vmatpush1.msra.mxu0 %v96
  %1999 = vmatprep.subr.mxu0 %v93
  %2000 = vmatpush1.msra.mxu0 %v92
  %2001 = vmatprep.subr.mxu0 %v89
  %2002 = vmatpush1.msra.mxu0 %v88
  %2003 = vmatprep.subr.mxu0 0.0
  %2004 = vmatpush2.msra.mxu0 0.0
  %2005 = vmatprep.subr.mxu0 0.0
  %2006 = vmatpush2.msra.mxu0 0.0
  %2007 = vmatprep.subr.mxu0 0.0
  %2008 = vmatpush2.msra.mxu0 0.0
  %2009 = vmatprep.subr.mxu0 0.0
  %2010 = vmatpush2.msra.mxu0 0.0
  %2011 = vmatprep.subr.mxu0 0.0
  %2012 = vmatpush2.msra.mxu0 0.0
  %2013 = vmatprep.subr.mxu0 0.0
  %2014 = vmatpush2.msra.mxu0 0.0
  %2015 = vmatprep.subr.mxu0 0.0
  %2016 = vmatpush2.msra.mxu0 0.0
  %2017 = vmatprep.subr.mxu0 0.0
  %2018 = vmatpush2.msra.mxu0 0.0
  %2019 = vmatprep.subr.mxu0 0.0
  %2020 = vmatpush2.msra.mxu0 0.0
  %2021 = vmatprep.subr.mxu0 0.0
  %2022 = vmatpush2.msra.mxu0 0.0
  %2023 = vmatprep.subr.mxu0 0.0
  %2024 = vmatpush2.msra.mxu0 0.0
  %2025 = vmatprep.subr.mxu0 0.0
  %2026 = vmatpush2.msra.mxu0 0.0
  %2027 = vmatprep.subr.mxu0 0.0
  %2028 = vmatpush2.msra.mxu0 0.0
  %2029 = vmatprep.subr.mxu0 0.0
  %2030 = vmatpush2.msra.mxu0 0.0
  %2031 = vmatprep.subr.mxu0 0.0
  %2032 = vmatpush2.msra.mxu0 0.0
  %2033 = vmatprep.subr.mxu0 0.0
  %2034 = vmatpush2.msra.mxu0 0.0
  %2035 = vmatprep.mubr.f32.mxu0 0.0
  %2036 = vmatmul.mubr.f32.gmra.mxu0 %v1644
  %v2037 = vpop.f32.mrf.mxu0
  %v2038 = vadd.f32 0.0, %v2037
  %v2039 = vpop.f32.mrf.mxu0
  %v2040 = vadd.f32 0.0, %v2039
  %2041 = vdwg.mxu0
  %2042 = vmatprep.subr.mxu0 %v151
  %2043 = vmatpush1.msra.mxu0 %v150
  %2044 = vmatprep.subr.mxu0 %v147
  %2045 = vmatpush1.msra.mxu0 %v146
  %2046 = vmatprep.subr.mxu0 %v143
  %2047 = vmatpush1.msra.mxu0 %v142
  %2048 = vmatprep.subr.mxu0 %v139
  %2049 = vmatpush1.msra.mxu0 %v138
  %2050 = vmatprep.subr.mxu0 %v135
  %2051 = vmatpush1.msra.mxu0 %v134
  %2052 = vmatprep.subr.mxu0 %v131
  %2053 = vmatpush1.msra.mxu0 %v130
  %2054 = vmatprep.subr.mxu0 %v127
  %2055 = vmatpush1.msra.mxu0 %v126
  %2056 = vmatprep.subr.mxu0 %v123
  %2057 = vmatpush1.msra.mxu0 %v122
  %2058 = vmatprep.subr.mxu0 %v119
  %2059 = vmatpush1.msra.mxu0 %v118
  %2060 = vmatprep.subr.mxu0 %v115
  %2061 = vmatpush1.msra.mxu0 %v114
  %2062 = vmatprep.subr.mxu0 %v111
  %2063 = vmatpush1.msra.mxu0 %v110
  %2064 = vmatprep.subr.mxu0 %v107
  %2065 = vmatpush1.msra.mxu0 %v106
  %2066 = vmatprep.subr.mxu0 %v103
  %2067 = vmatpush1.msra.mxu0 %v102
  %2068 = vmatprep.subr.mxu0 %v99
  %2069 = vmatpush1.msra.mxu0 %v98
  %2070 = vmatprep.subr.mxu0 %v95
  %2071 = vmatpush1.msra.mxu0 %v94
  %2072 = vmatprep.subr.mxu0 %v91
  %2073 = vmatpush1.msra.mxu0 %v90
  %2074 = vmatprep.subr.mxu0 0.0
  %2075 = vmatpush2.msra.mxu0 0.0
  %2076 = vmatprep.subr.mxu0 0.0
  %2077 = vmatpush2.msra.mxu0 0.0
  %2078 = vmatprep.subr.mxu0 0.0
  %2079 = vmatpush2.msra.mxu0 0.0
  %2080 = vmatprep.subr.mxu0 0.0
  %2081 = vmatpush2.msra.mxu0 0.0
  %2082 = vmatprep.subr.mxu0 0.0
  %2083 = vmatpush2.msra.mxu0 0.0
  %2084 = vmatprep.subr.mxu0 0.0
  %2085 = vmatpush2.msra.mxu0 0.0
  %2086 = vmatprep.subr.mxu0 0.0
  %2087 = vmatpush2.msra.mxu0 0.0
  %2088 = vmatprep.subr.mxu0 0.0
  %2089 = vmatpush2.msra.mxu0 0.0
  %2090 = vmatprep.subr.mxu0 0.0
  %2091 = vmatpush2.msra.mxu0 0.0
  %2092 = vmatprep.subr.mxu0 0.0
  %2093 = vmatpush2.msra.mxu0 0.0
  %2094 = vmatprep.subr.mxu0 0.0
  %2095 = vmatpush2.msra.mxu0 0.0
  %2096 = vmatprep.subr.mxu0 0.0
  %2097 = vmatpush2.msra.mxu0 0.0
  %2098 = vmatprep.subr.mxu0 0.0
  %2099 = vmatpush2.msra.mxu0 0.0
  %2100 = vmatprep.subr.mxu0 0.0
  %2101 = vmatpush2.msra.mxu0 0.0
  %2102 = vmatprep.subr.mxu0 0.0
  %2103 = vmatpush2.msra.mxu0 0.0
  %2104 = vmatprep.subr.mxu0 0.0
  %2105 = vmatpush2.msra.mxu0 0.0
  %2106 = vmatprep.mubr.f32.mxu0 0.0
  %2107 = vmatmul.mubr.f32.gmra.mxu0 %v1644
  %v2108 = vpop.f32.mrf.mxu0
  %v2109 = vadd.f32 0.0, %v2108
  %v2110 = vpop.f32.mrf.mxu0
  %v2111 = vadd.f32 0.0, %v2110
  %2112 = vdwg.mxu0
  %v2113 = vadd.f32 %v1967, %v2038
  %v2114 = vadd.f32 %v1968, %v2040
  %v2115 = vadd.f32 %v1969, %v2109
  %v2116 = vadd.f32 %v1970, %v2111
  %v2117 = vadd.f32 %v2113, %v303
  %v2118 = vadd.f32 %v2114, %v307
  %v2119 = vadd.f32 %v2115, %v311
  %v2120 = vadd.f32 %v2116, %v315
  %v2121 = vtanh.pop %v2117
  %v2122 = vtanh.pop %v2118
  %v2123 = vtanh.pop %v2119
  %v2124 = vtanh.pop %v2120
  %v2125 = vmul.f32 %v2121, %v49
  %v2126 = vmul.f32 %v2122, %v50
  %v2127 = vmul.f32 %v2123, %v51
  %v2128 = vmul.f32 %v2124, %v52
  %v2129 = vadd.f32 %v2125, %v53
  %v2130 = vadd.f32 %v2126, %v54
  %v2131 = vadd.f32 %v2127, %v55
  %v2132 = vadd.f32 %v2128, %v56
  %v2133 = vmul.f32 %v2130, %v1642
  %v2134 = vmul.f32 %v2129, %v2131
  %v2135 = vadd.f32 %v2133, %v2134
  %v2136 = vtanh.pop %v2135
  %v2137 = vmul.f32 %v2132, %v2136
  %2138 = vmatprep.subr.mxu0 %v577
  %2139 = vmatpush1.msra.mxu0 %v576
  %2140 = vmatprep.subr.mxu0 %v573
  %2141 = vmatpush1.msra.mxu0 %v572
  %2142 = vmatprep.subr.mxu0 %v569
  %2143 = vmatpush1.msra.mxu0 %v568
  %2144 = vmatprep.subr.mxu0 %v565
  %2145 = vmatpush1.msra.mxu0 %v564
  %2146 = vmatprep.subr.mxu0 %v561
  %2147 = vmatpush1.msra.mxu0 %v560
  %2148 = vmatprep.subr.mxu0 %v557
  %2149 = vmatpush1.msra.mxu0 %v556
  %2150 = vmatprep.subr.mxu0 %v553
  %2151 = vmatpush1.msra.mxu0 %v552
  %2152 = vmatprep.subr.mxu0 %v549
  %2153 = vmatpush1.msra.mxu0 %v548
  %2154 = vmatprep.subr.mxu0 %v545
  %2155 = vmatpush1.msra.mxu0 %v544
  %2156 = vmatprep.subr.mxu0 %v541
  %2157 = vmatpush1.msra.mxu0 %v540
  %2158 = vmatprep.subr.mxu0 %v537
  %2159 = vmatpush1.msra.mxu0 %v536
  %2160 = vmatprep.subr.mxu0 %v533
  %2161 = vmatpush1.msra.mxu0 %v532
  %2162 = vmatprep.subr.mxu0 %v529
  %2163 = vmatpush1.msra.mxu0 %v528
  %2164 = vmatprep.subr.mxu0 %v525
  %2165 = vmatpush1.msra.mxu0 %v524
  %2166 = vmatprep.subr.mxu0 %v521
  %2167 = vmatpush1.msra.mxu0 %v520
  %2168 = vmatprep.subr.mxu0 %v517
  %2169 = vmatpush1.msra.mxu0 %v516
  %2170 = vmatprep.subr.mxu0 %v641
  %2171 = vmatpush2.msra.mxu0 %v640
  %2172 = vmatprep.subr.mxu0 %v637
  %2173 = vmatpush2.msra.mxu0 %v636
  %2174 = vmatprep.subr.mxu0 %v633
  %2175 = vmatpush2.msra.mxu0 %v632
  %2176 = vmatprep.subr.mxu0 %v629
  %2177 = vmatpush2.msra.mxu0 %v628
  %2178 = vmatprep.subr.mxu0 %v625
  %2179 = vmatpush2.msra.mxu0 %v624
  %2180 = vmatprep.subr.mxu0 %v621
  %2181 = vmatpush2.msra.mxu0 %v620
  %2182 = vmatprep.subr.mxu0 %v617
  %2183 = vmatpush2.msra.mxu0 %v616
  %2184 = vmatprep.subr.mxu0 %v613
  %2185 = vmatpush2.msra.mxu0 %v612
  %2186 = vmatprep.subr.mxu0 %v609
  %2187 = vmatpush2.msra.mxu0 %v608
  %2188 = vmatprep.subr.mxu0 %v605
  %2189 = vmatpush2.msra.mxu0 %v604
  %2190 = vmatprep.subr.mxu0 %v601
  %2191 = vmatpush2.msra.mxu0 %v600
  %2192 = vmatprep.subr.mxu0 %v597
  %2193 = vmatpush2.msra.mxu0 %v596
  %2194 = vmatprep.subr.mxu0 %v593
  %2195 = vmatpush2.msra.mxu0 %v592
  %2196 = vmatprep.subr.mxu0 %v589
  %2197 = vmatpush2.msra.mxu0 %v588
  %2198 = vmatprep.subr.mxu0 %v585
  %2199 = vmatpush2.msra.mxu0 %v584
  %2200 = vmatprep.subr.mxu0 %v581
  %2201 = vmatpush2.msra.mxu0 %v580
  %2202 = vmatprep.mubr.f32.mxu0 %v1803
  %2203 = vmatmul.mubr.f32.gmra.mxu0 %v1644
  %v2204 = vpop.f32.mrf.mxu0
  %v2205 = vadd.f32 %v650, %v2204
  %v2206 = vpop.f32.mrf.mxu0
  %v2207 = vadd.f32 %v654, %v2206
  %2208 = vdwg.mxu0
  %2209 = vmatprep.subr.mxu0 %v579
  %2210 = vmatpush1.msra.mxu0 %v578
  %2211 = vmatprep.subr.mxu0 %v575
  %2212 = vmatpush1.msra.mxu0 %v574
  %2213 = vmatprep.subr.mxu0 %v571
  %2214 = vmatpush1.msra.mxu0 %v570
  %2215 = vmatprep.subr.mxu0 %v567
  %2216 = vmatpush1.msra.mxu0 %v566
  %2217 = vmatprep.subr.mxu0 %v563
  %2218 = vmatpush1.msra.mxu0 %v562
  %2219 = vmatprep.subr.mxu0 %v559
  %2220 = vmatpush1.msra.mxu0 %v558
  %2221 = vmatprep.subr.mxu0 %v555
  %2222 = vmatpush1.msra.mxu0 %v554
  %2223 = vmatprep.subr.mxu0 %v551
  %2224 = vmatpush1.msra.mxu0 %v550
  %2225 = vmatprep.subr.mxu0 %v547
  %2226 = vmatpush1.msra.mxu0 %v546
  %2227 = vmatprep.subr.mxu0 %v543
  %2228 = vmatpush1.msra.mxu0 %v542
  %2229 = vmatprep.subr.mxu0 %v539
  %2230 = vmatpush1.msra.mxu0 %v538
  %2231 = vmatprep.subr.mxu0 %v535
  %2232 = vmatpush1.msra.mxu0 %v534
  %2233 = vmatprep.subr.mxu0 %v531
  %2234 = vmatpush1.msra.mxu0 %v530
  %2235 = vmatprep.subr.mxu0 %v527
  %2236 = vmatpush1.msra.mxu0 %v526
  %2237 = vmatprep.subr.mxu0 %v523
  %2238 = vmatpush1.msra.mxu0 %v522
  %2239 = vmatprep.subr.mxu0 %v519
  %2240 = vmatpush1.msra.mxu0 %v518
  %2241 = vmatprep.subr.mxu0 %v643
  %2242 = vmatpush2.msra.mxu0 %v642
  %2243 = vmatprep.subr.mxu0 %v639
  %2244 = vmatpush2.msra.mxu0 %v638
  %2245 = vmatprep.subr.mxu0 %v635
  %2246 = vmatpush2.msra.mxu0 %v634
  %2247 = vmatprep.subr.mxu0 %v631
  %2248 = vmatpush2.msra.mxu0 %v630
  %2249 = vmatprep.subr.mxu0 %v627
  %2250 = vmatpush2.msra.mxu0 %v626
  %2251 = vmatprep.subr.mxu0 %v623
  %2252 = vmatpush2.msra.mxu0 %v622
  %2253 = vmatprep.subr.mxu0 %v619
  %2254 = vmatpush2.msra.mxu0 %v618
  %2255 = vmatprep.subr.mxu0 %v615
  %2256 = vmatpush2.msra.mxu0 %v614
  %2257 = vmatprep.subr.mxu0 %v611
  %2258 = vmatpush2.msra.mxu0 %v610
  %2259 = vmatprep.subr.mxu0 %v607
  %2260 = vmatpush2.msra.mxu0 %v606
  %2261 = vmatprep.subr.mxu0 %v603
  %2262 = vmatpush2.msra.mxu0 %v602
  %2263 = vmatprep.subr.mxu0 %v599
  %2264 = vmatpush2.msra.mxu0 %v598
  %2265 = vmatprep.subr.mxu0 %v595
  %2266 = vmatpush2.msra.mxu0 %v594
  %2267 = vmatprep.subr.mxu0 %v591
  %2268 = vmatpush2.msra.mxu0 %v590
  %2269 = vmatprep.subr.mxu0 %v587
  %2270 = vmatpush2.msra.mxu0 %v586
  %2271 = vmatprep.subr.mxu0 %v583
  %2272 = vmatpush2.msra.mxu0 %v582
  %2273 = vmatprep.mubr.f32.mxu0 %v1803
  %2274 = vmatmul.mubr.f32.gmra.mxu0 %v1644
  %v2275 = vpop.f32.mrf.mxu0
  %v2276 = vadd.f32 %v658, %v2275
  %v2277 = vpop.f32.mrf.mxu0
  %v2278 = vadd.f32 %v662, %v2277
  %2279 = vdwg.mxu0
  %v2280 = vtanh.pop %v2205
  %v2281 = vtanh.pop %v2207
  %v2282 = vtanh.pop %v2276
  %v2283 = vtanh.pop %v2278
  %v2284 = vmul.f32 %v2280, %v49
  %v2285 = vmul.f32 %v2281, %v50
  %v2286 = vmul.f32 %v2282, %v51
  %v2287 = vmul.f32 %v2283, %v52
  %v2288 = vadd.f32 %v2284, %v53
  %v2289 = vadd.f32 %v2285, %v54
  %v2290 = vadd.f32 %v2286, %v55
  %v2291 = vadd.f32 %v2287, %v56
  %v2292 = vmul.f32 %v2289, %v1801
  %v2293 = vmul.f32 %v2288, %v2290
  %v2294 = vadd.f32 %v2292, %v2293
  %v2295 = vtanh.pop %v2294
  %v2296 = vmul.f32 %v2291, %v2295
  %2297 = vmatprep.subr.mxu0 %v1221
  %2298 = vmatpush1.msra.mxu0 %v1220
  %2299 = vmatprep.subr.mxu0 %v1217
  %2300 = vmatpush1.msra.mxu0 %v1216
  %2301 = vmatprep.subr.mxu0 %v1213
  %2302 = vmatpush1.msra.mxu0 %v1212
  %2303 = vmatprep.subr.mxu0 %v1209
  %2304 = vmatpush1.msra.mxu0 %v1208
  %2305 = vmatprep.subr.mxu0 %v1205
  %2306 = vmatpush1.msra.mxu0 %v1204
  %2307 = vmatprep.subr.mxu0 %v1201
  %2308 = vmatpush1.msra.mxu0 %v1200
  %2309 = vmatprep.subr.mxu0 %v1197
  %2310 = vmatpush1.msra.mxu0 %v1196
  %2311 = vmatprep.subr.mxu0 %v1193
  %2312 = vmatpush1.msra.mxu0 %v1192
  %2313 = vmatprep.subr.mxu0 %v1189
  %2314 = vmatpush1.msra.mxu0 %v1188
  %2315 = vmatprep.subr.mxu0 %v1185
  %2316 = vmatpush1.msra.mxu0 %v1184
  %2317 = vmatprep.subr.mxu0 %v1181
  %2318 = vmatpush1.msra.mxu0 %v1180
  %2319 = vmatprep.subr.mxu0 %v1177
  %2320 = vmatpush1.msra.mxu0 %v1176
  %2321 = vmatprep.subr.mxu0 %v1173
  %2322 = vmatpush1.msra.mxu0 %v1172
  %2323 = vmatprep.subr.mxu0 %v1169
  %2324 = vmatpush1.msra.mxu0 %v1168
  %2325 = vmatprep.subr.mxu0 %v1165
  %2326 = vmatpush1.msra.mxu0 %v1164
  %2327 = vmatprep.subr.mxu0 %v1161
  %2328 = vmatpush1.msra.mxu0 %v1160
  %2329 = vmatprep.subr.mxu0 %v1285
  %2330 = vmatpush2.msra.mxu0 %v1284
  %2331 = vmatprep.subr.mxu0 %v1281
  %2332 = vmatpush2.msra.mxu0 %v1280
  %2333 = vmatprep.subr.mxu0 %v1277
  %2334 = vmatpush2.msra.mxu0 %v1276
  %2335 = vmatprep.subr.mxu0 %v1273
  %2336 = vmatpush2.msra.mxu0 %v1272
  %2337 = vmatprep.subr.mxu0 %v1269
  %2338 = vmatpush2.msra.mxu0 %v1268
  %2339 = vmatprep.subr.mxu0 %v1265
  %2340 = vmatpush2.msra.mxu0 %v1264
  %2341 = vmatprep.subr.mxu0 %v1261
  %2342 = vmatpush2.msra.mxu0 %v1260
  %2343 = vmatprep.subr.mxu0 %v1257
  %2344 = vmatpush2.msra.mxu0 %v1256
  %2345 = vmatprep.subr.mxu0 %v1253
  %2346 = vmatpush2.msra.mxu0 %v1252
  %2347 = vmatprep.subr.mxu0 %v1249
  %2348 = vmatpush2.msra.mxu0 %v1248
  %2349 = vmatprep.subr.mxu0 %v1245
  %2350 = vmatpush2.msra.mxu0 %v1244
  %2351 = vmatprep.subr.mxu0 %v1241
  %2352 = vmatpush2.msra.mxu0 %v1240
  %2353 = vmatprep.subr.mxu0 %v1237
  %2354 = vmatpush2.msra.mxu0 %v1236
  %2355 = vmatprep.subr.mxu0 %v1233
  %2356 = vmatpush2.msra.mxu0 %v1232
  %2357 = vmatprep.subr.mxu0 %v1229
  %2358 = vmatpush2.msra.mxu0 %v1228
  %2359 = vmatprep.subr.mxu0 %v1225
  %2360 = vmatpush2.msra.mxu0 %v1224
  %2361 = vmatprep.mubr.f32.mxu0 %v1962
  %2362 = vmatmul.mubr.f32.gmra.mxu0 %v1803
  %v2363 = vpop.f32.mrf.mxu0
  %v2364 = vadd.f32 %v1294, %v2363
  %v2365 = vpop.f32.mrf.mxu0
  %v2366 = vadd.f32 %v1298, %v2365
  %2367 = vdwg.mxu0
  %2368 = vmatprep.subr.mxu0 %v1223
  %2369 = vmatpush1.msra.mxu0 %v1222
  %2370 = vmatprep.subr.mxu0 %v1219
  %2371 = vmatpush1.msra.mxu0 %v1218
  %2372 = vmatprep.subr.mxu0 %v1215
  %2373 = vmatpush1.msra.mxu0 %v1214
  %2374 = vmatprep.subr.mxu0 %v1211
  %2375 = vmatpush1.msra.mxu0 %v1210
  %2376 = vmatprep.subr.mxu0 %v1207
  %2377 = vmatpush1.msra.mxu0 %v1206
  %2378 = vmatprep.subr.mxu0 %v1203
  %2379 = vmatpush1.msra.mxu0 %v1202
  %2380 = vmatprep.subr.mxu0 %v1199
  %2381 = vmatpush1.msra.mxu0 %v1198
  %2382 = vmatprep.subr.mxu0 %v1195
  %2383 = vmatpush1.msra.mxu0 %v1194
  %2384 = vmatprep.subr.mxu0 %v1191
  %2385 = vmatpush1.msra.mxu0 %v1190
  %2386 = vmatprep.subr.mxu0 %v1187
  %2387 = vmatpush1.msra.mxu0 %v1186
  %2388 = vmatprep.subr.mxu0 %v1183
  %2389 = vmatpush1.msra.mxu0 %v1182
  %2390 = vmatprep.subr.mxu0 %v1179
  %2391 = vmatpush1.msra.mxu0 %v1178
  %2392 = vmatprep.subr.mxu0 %v1175
  %2393 = vmatpush1.msra.mxu0 %v1174
  %2394 = vmatprep.subr.mxu0 %v1171
  %2395 = vmatpush1.msra.mxu0 %v1170
  %2396 = vmatprep.subr.mxu0 %v1167
  %2397 = vmatpush1.msra.mxu0 %v1166
  %2398 = vmatprep.subr.mxu0 %v1163
  %2399 = vmatpush1.msra.mxu0 %v1162
  %2400 = vmatprep.subr.mxu0 %v1287
  %2401 = vmatpush2.msra.mxu0 %v1286
  %2402 = vmatprep.subr.mxu0 %v1283
  %2403 = vmatpush2.msra.mxu0 %v1282
  %2404 = vmatprep.subr.mxu0 %v1279
  %2405 = vmatpush2.msra.mxu0 %v1278
  %2406 = vmatprep.subr.mxu0 %v1275
  %2407 = vmatpush2.msra.mxu0 %v1274
  %2408 = vmatprep.subr.mxu0 %v1271
  %2409 = vmatpush2.msra.mxu0 %v1270
  %2410 = vmatprep.subr.mxu0 %v1267
  %2411 = vmatpush2.msra.mxu0 %v1266
  %2412 = vmatprep.subr.mxu0 %v1263
  %2413 = vmatpush2.msra.mxu0 %v1262
  %2414 = vmatprep.subr.mxu0 %v1259
  %2415 = vmatpush2.msra.mxu0 %v1258
  %2416 = vmatprep.subr.mxu0 %v1255
  %2417 = vmatpush2.msra.mxu0 %v1254
  %2418 = vmatprep.subr.mxu0 %v1251
  %2419 = vmatpush2.msra.mxu0 %v1250
  %2420 = vmatprep.subr.mxu0 %v1247
  %2421 = vmatpush2.msra.mxu0 %v1246
  %2422 = vmatprep.subr.mxu0 %v1243
  %2423 = vmatpush2.msra.mxu0 %v1242
  %2424 = vmatprep.subr.mxu0 %v1239
  %2425 = vmatpush2.msra.mxu0 %v1238
  %2426 = vmatprep.subr.mxu0 %v1235
  %2427 = vmatpush2.msra.mxu0 %v1234
  %2428 = vmatprep.subr.mxu0 %v1231
  %2429 = vmatpush2.msra.mxu0 %v1230
  %2430 = vmatprep.subr.mxu0 %v1227
  %2431 = vmatpush2.msra.mxu0 %v1226
  %2432 = vmatprep.mubr.f32.mxu0 %v1962
  %2433 = vmatmul.mubr.f32.gmra.mxu0 %v1803
  %v2434 = vpop.f32.mrf.mxu0
  %v2435 = vadd.f32 %v1302, %v2434
  %v2436 = vpop.f32.mrf.mxu0
  %v2437 = vadd.f32 %v1306, %v2436
  %2438 = vdwg.mxu0
  %v2439 = vtanh.pop %v2364
  %v2440 = vtanh.pop %v2366
  %v2441 = vtanh.pop %v2435
  %v2442 = vtanh.pop %v2437
  %v2443 = vmul.f32 %v2439, %v49
  %v2444 = vmul.f32 %v2440, %v50
  %v2445 = vmul.f32 %v2441, %v51
  %v2446 = vmul.f32 %v2442, %v52
  %v2447 = vadd.f32 %v2443, %v53
  %v2448 = vadd.f32 %v2444, %v54
  %v2449 = vadd.f32 %v2445, %v55
  %v2450 = vadd.f32 %v2446, %v56
  %v2451 = vmul.f32 %v2448, %v1960
  %v2452 = vmul.f32 %v2447, %v2449
  %v2453 = vadd.f32 %v2451, %v2452
  %v2454 = vtanh.pop %v2453
  %v2455 = vmul.f32 %v2450, %v2454
  %2456 = vset.pattern.permute.xlu0 5
  %2457 = vperm.xlu0 %2456, %v31
  %v2458 = vpop.permute.xlu0 %2457
  %v2460 = vmul.f32 %v2458, %v67
  %v2461 = vmul.f32 %v2458, %v71
  %v2462 = vmul.f32 %v2458, %v75
  %v2463 = vmul.f32 %v2458, %v79
  %2464 = vmatprep.subr.mxu0 %v149
  %2465 = vmatpush1.msra.mxu0 %v148
  %2466 = vmatprep.subr.mxu0 %v145
  %2467 = vmatpush1.msra.mxu0 %v144
  %2468 = vmatprep.subr.mxu0 %v141
  %2469 = vmatpush1.msra.mxu0 %v140
  %2470 = vmatprep.subr.mxu0 %v137
  %2471 = vmatpush1.msra.mxu0 %v136
  %2472 = vmatprep.subr.mxu0 %v133
  %2473 = vmatpush1.msra.mxu0 %v132
  %2474 = vmatprep.subr.mxu0 %v129
  %2475 = vmatpush1.msra.mxu0 %v128
  %2476 = vmatprep.subr.mxu0 %v125
  %2477 = vmatpush1.msra.mxu0 %v124
  %2478 = vmatprep.subr.mxu0 %v121
  %2479 = vmatpush1.msra.mxu0 %v120
  %2480 = vmatprep.subr.mxu0 %v117
  %2481 = vmatpush1.msra.mxu0 %v116
  %2482 = vmatprep.subr.mxu0 %v113
  %2483 = vmatpush1.msra.mxu0 %v112
  %2484 = vmatprep.subr.mxu0 %v109
  %2485 = vmatpush1.msra.mxu0 %v108
  %2486 = vmatprep.subr.mxu0 %v105
  %2487 = vmatpush1.msra.mxu0 %v104
  %2488 = vmatprep.subr.mxu0 %v101
  %2489 = vmatpush1.msra.mxu0 %v100
  %2490 = vmatprep.subr.mxu0 %v97
  %2491 = vmatpush1.msra.mxu0 %v96
  %2492 = vmatprep.subr.mxu0 %v93
  %2493 = vmatpush1.msra.mxu0 %v92
  %2494 = vmatprep.subr.mxu0 %v89
  %2495 = vmatpush1.msra.mxu0 %v88
  %2496 = vmatprep.subr.mxu0 0.0
  %2497 = vmatpush2.msra.mxu0 0.0
  %2498 = vmatprep.subr.mxu0 0.0
  %2499 = vmatpush2.msra.mxu0 0.0
  %2500 = vmatprep.subr.mxu0 0.0
  %2501 = vmatpush2.msra.mxu0 0.0
  %2502 = vmatprep.subr.mxu0 0.0
  %2503 = vmatpush2.msra.mxu0 0.0
  %2504 = vmatprep.subr.mxu0 0.0
  %2505 = vmatpush2.msra.mxu0 0.0
  %2506 = vmatprep.subr.mxu0 0.0
  %2507 = vmatpush2.msra.mxu0 0.0
  %2508 = vmatprep.subr.mxu0 0.0
  %2509 = vmatpush2.msra.mxu0 0.0
  %2510 = vmatprep.subr.mxu0 0.0
  %2511 = vmatpush2.msra.mxu0 0.0
  %2512 = vmatprep.subr.mxu0 0.0
  %2513 = vmatpush2.msra.mxu0 0.0
  %2514 = vmatprep.subr.mxu0 0.0
  %2515 = vmatpush2.msra.mxu0 0.0
  %2516 = vmatprep.subr.mxu0 0.0
  %2517 = vmatpush2.msra.mxu0 0.0
  %2518 = vmatprep.subr.mxu0 0.0
  %2519 = vmatpush2.msra.mxu0 0.0
  %2520 = vmatprep.subr.mxu0 0.0
  %2521 = vmatpush2.msra.mxu0 0.0
  %2522 = vmatprep.subr.mxu0 0.0
  %2523 = vmatpush2.msra.mxu0 0.0
  %2524 = vmatprep.subr.mxu0 0.0
  %2525 = vmatpush2.msra.mxu0 0.0
  %2526 = vmatprep.subr.mxu0 0.0
  %2527 = vmatpush2.msra.mxu0 0.0
  %2528 = vmatprep.mubr.f32.mxu0 0.0
  %2529 = vmatmul.mubr.f32.gmra.mxu0 %v2137
  %v2530 = vpop.f32.mrf.mxu0
  %v2531 = vadd.f32 0.0, %v2530
  %v2532 = vpop.f32.mrf.mxu0
  %v2533 = vadd.f32 0.0, %v2532
  %2534 = vdwg.mxu0
  %2535 = vmatprep.subr.mxu0 %v151
  %2536 = vmatpush1.msra.mxu0 %v150
  %2537 = vmatprep.subr.mxu0 %v147
  %2538 = vmatpush1.msra.mxu0 %v146
  %2539 = vmatprep.subr.mxu0 %v143
  %2540 = vmatpush1.msra.mxu0 %v142
  %2541 = vmatprep.subr.mxu0 %v139
  %2542 = vmatpush1.msra.mxu0 %v138
  %2543 = vmatprep.subr.mxu0 %v135
  %2544 = vmatpush1.msra.mxu0 %v134
  %2545 = vmatprep.subr.mxu0 %v131
  %2546 = vmatpush1.msra.mxu0 %v130
  %2547 = vmatprep.subr.mxu0 %v127
  %2548 = vmatpush1.msra.mxu0 %v126
  %2549 = vmatprep.subr.mxu0 %v123
  %2550 = vmatpush1.msra.mxu0 %v122
  %2551 = vmatprep.subr.mxu0 %v119
  %2552 = vmatpush1.msra.mxu0 %v118
  %2553 = vmatprep.subr.mxu0 %v115
  %2554 = vmatpush1.msra.mxu0 %v114
  %2555 = vmatprep.subr.mxu0 %v111
  %2556 = vmatpush1.msra.mxu0 %v110
  %2557 = vmatprep.subr.mxu0 %v107
  %2558 = vmatpush1.msra.mxu0 %v106
  %2559 = vmatprep.subr.mxu0 %v103
  %2560 = vmatpush1.msra.mxu0 %v102
  %2561 = vmatprep.subr.mxu0 %v99
  %2562 = vmatpush1.msra.mxu0 %v98
  %2563 = vmatprep.subr.mxu0 %v95
  %2564 = vmatpush1.msra.mxu0 %v94
  %2565 = vmatprep.subr.mxu0 %v91
  %2566 = vmatpush1.msra.mxu0 %v90
  %2567 = vmatprep.subr.mxu0 0.0
  %2568 = vmatpush2.msra.mxu0 0.0
  %2569 = vmatprep.subr.mxu0 0.0
  %2570 = vmatpush2.msra.mxu0 0.0
  %2571 = vmatprep.subr.mxu0 0.0
  %2572 = vmatpush2.msra.mxu0 0.0
  %2573 = vmatprep.subr.mxu0 0.0
  %2574 = vmatpush2.msra.mxu0 0.0
  %2575 = vmatprep.subr.mxu0 0.0
  %2576 = vmatpush2.msra.mxu0 0.0
  %2577 = vmatprep.subr.mxu0 0.0
  %2578 = vmatpush2.msra.mxu0 0.0
  %2579 = vmatprep.subr.mxu0 0.0
  %2580 = vmatpush2.msra.mxu0 0.0
  %2581 = vmatprep.subr.mxu0 0.0
  %2582 = vmatpush2.msra.mxu0 0.0
  %2583 = vmatprep.subr.mxu0 0.0
  %2584 = vmatpush2.msra.mxu0 0.0
  %2585 = vmatprep.subr.mxu0 0.0
  %2586 = vmatpush2.msra.mxu0 0.0
  %2587 = vmatprep.subr.mxu0 0.0
  %2588 = vmatpush2.msra.mxu0 0.0
  %2589 = vmatprep.subr.mxu0 0.0
  %2590 = vmatpush2.msra.mxu0 0.0
  %2591 = vmatprep.subr.mxu0 0.0
  %2592 = vmatpush2.msra.mxu0 0.0
  %2593 = vmatprep.subr.mxu0 0.0
  %2594 = vmatpush2.msra.mxu0 0.0
  %2595 = vmatprep.subr.mxu0 0.0
  %2596 = vmatpush2.msra.mxu0 0.0
  %2597 = vmatprep.subr.mxu0 0.0
  %2598 = vmatpush2.msra.mxu0 0.0
  %2599 = vmatprep.mubr.f32.mxu0 0.0
  %2600 = vmatmul.mubr.f32.gmra.mxu0 %v2137
  %v2601 = vpop.f32.mrf.mxu0
  %v2602 = vadd.f32 0.0, %v2601
  %v2603 = vpop.f32.mrf.mxu0
  %v2604 = vadd.f32 0.0, %v2603
  %2605 = vdwg.mxu0
  %v2606 = vadd.f32 %v2460, %v2531
  %v2607 = vadd.f32 %v2461, %v2533
  %v2608 = vadd.f32 %v2462, %v2602
  %v2609 = vadd.f32 %v2463, %v2604
  %v2610 = vadd.f32 %v2606, %v303
  %v2611 = vadd.f32 %v2607, %v307
  %v2612 = vadd.f32 %v2608, %v311
  %v2613 = vadd.f32 %v2609, %v315
  %v2614 = vtanh.pop %v2610
  %v2615 = vtanh.pop %v2611
  %v2616 = vtanh.pop %v2612
  %v2617 = vtanh.pop %v2613
  %v2618 = vmul.f32 %v2614, %v49
  %v2619 = vmul.f32 %v2615, %v50
  %v2620 = vmul.f32 %v2616, %v51
  %v2621 = vmul.f32 %v2617, %v52
  %v2622 = vadd.f32 %v2618, %v53
  %v2623 = vadd.f32 %v2619, %v54
  %v2624 = vadd.f32 %v2620, %v55
  %v2625 = vadd.f32 %v2621, %v56
  %v2626 = vmul.f32 %v2623, %v2135
  %v2627 = vmul.f32 %v2622, %v2624
  %v2628 = vadd.f32 %v2626, %v2627
  %v2629 = vtanh.pop %v2628
  %v2630 = vmul.f32 %v2625, %v2629
  %2631 = vmatprep.subr.mxu0 %v577
  %2632 = vmatpush1.msra.mxu0 %v576
  %2633 = vmatprep.subr.mxu0 %v573
  %2634 = vmatpush1.msra.mxu0 %v572
  %2635 = vmatprep.subr.mxu0 %v569
  %2636 = vmatpush1.msra.mxu0 %v568
  %2637 = vmatprep.subr.mxu0 %v565
  %2638 = vmatpush1.msra.mxu0 %v564
  %2639 = vmatprep.subr.mxu0 %v561
  %2640 = vmatpush1.msra.mxu0 %v560
  %2641 = vmatprep.subr.mxu0 %v557
  %2642 = vmatpush1.msra.mxu0 %v556
  %2643 = vmatprep.subr.mxu0 %v553
  %2644 = vmatpush1.msra.mxu0 %v552
  %2645 = vmatprep.subr.mxu0 %v549
  %2646 = vmatpush1.msra.mxu0 %v548
  %2647 = vmatprep.subr.mxu0 %v545
  %2648 = vmatpush1.msra.mxu0 %v544
  %2649 = vmatprep.subr.mxu0 %v541
  %2650 = vmatpush1.msra.mxu0 %v540
  %2651 = vmatprep.subr.mxu0 %v537
  %2652 = vmatpush1.msra.mxu0 %v536
  %2653 = vmatprep.subr.mxu0 %v533
  %2654 = vmatpush1.msra.mxu0 %v532
  %2655 = vmatprep.subr.mxu0 %v529
  %2656 = vmatpush1.msra.mxu0 %v528
  %2657 = vmatprep.subr.mxu0 %v525
  %2658 = vmatpush1.msra.mxu0 %v524
  %2659 = vmatprep.subr.mxu0 %v521
  %2660 = vmatpush1.msra.mxu0 %v520
  %2661 = vmatprep.subr.mxu0 %v517
  %2662 = vmatpush1.msra.mxu0 %v516
  %2663 = vmatprep.subr.mxu0 %v641
  %2664 = vmatpush2.msra.mxu0 %v640
  %2665 = vmatprep.subr.mxu0 %v637
  %2666 = vmatpush2.msra.mxu0 %v636
  %2667 = vmatprep.subr.mxu0 %v633
  %2668 = vmatpush2.msra.mxu0 %v632
  %2669 = vmatprep.subr.mxu0 %v629
  %2670 = vmatpush2.msra.mxu0 %v628
  %2671 = vmatprep.subr.mxu0 %v625
  %2672 = vmatpush2.msra.mxu0 %v624
  %2673 = vmatprep.subr.mxu0 %v621
  %2674 = vmatpush2.msra.mxu0 %v620
  %2675 = vmatprep.subr.mxu0 %v617
  %2676 = vmatpush2.msra.mxu0 %v616
  %2677 = vmatprep.subr.mxu0 %v613
  %2678 = vmatpush2.msra.mxu0 %v612
  %2679 = vmatprep.subr.mxu0 %v609
  %2680 = vmatpush2.msra.mxu0 %v608
  %2681 = vmatprep.subr.mxu0 %v605
  %2682 = vmatpush2.msra.mxu0 %v604
  %2683 = vmatprep.subr.mxu0 %v601
  %2684 = vmatpush2.msra.mxu0 %v600
  %2685 = vmatprep.subr.mxu0 %v597
  %2686 = vmatpush2.msra.mxu0 %v596
  %2687 = vmatprep.subr.mxu0 %v593
  %2688 = vmatpush2.msra.mxu0 %v592
  %2689 = vmatprep.subr.mxu0 %v589
  %2690 = vmatpush2.msra.mxu0 %v588
  %2691 = vmatprep.subr.mxu0 %v585
  %2692 = vmatpush2.msra.mxu0 %v584
  %2693 = vmatprep.subr.mxu0 %v581
  %2694 = vmatpush2.msra.mxu0 %v580
  %2695 = vmatprep.mubr.f32.mxu0 %v2296
  %2696 = vmatmul.mubr.f32.gmra.mxu0 %v2137
  %v2697 = vpop.f32.mrf.mxu0
  %v2698 = vadd.f32 %v650, %v2697
  %v2699 = vpop.f32.mrf.mxu0
  %v2700 = vadd.f32 %v654, %v2699
  %2701 = vdwg.mxu0
  %2702 = vmatprep.subr.mxu0 %v579
  %2703 = vmatpush1.msra.mxu0 %v578
  %2704 = vmatprep.subr.mxu0 %v575
  %2705 = vmatpush1.msra.mxu0 %v574
  %2706 = vmatprep.subr.mxu0 %v571
  %2707 = vmatpush1.msra.mxu0 %v570
  %2708 = vmatprep.subr.mxu0 %v567
  %2709 = vmatpush1.msra.mxu0 %v566
  %2710 = vmatprep.subr.mxu0 %v563
  %2711 = vmatpush1.msra.mxu0 %v562
  %2712 = vmatprep.subr.mxu0 %v559
  %2713 = vmatpush1.msra.mxu0 %v558
  %2714 = vmatprep.subr.mxu0 %v555
  %2715 = vmatpush1.msra.mxu0 %v554
  %2716 = vmatprep.subr.mxu0 %v551
  %2717 = vmatpush1.msra.mxu0 %v550
  %2718 = vmatprep.subr.mxu0 %v547
  %2719 = vmatpush1.msra.mxu0 %v546
  %2720 = vmatprep.subr.mxu0 %v543
  %2721 = vmatpush1.msra.mxu0 %v542
  %2722 = vmatprep.subr.mxu0 %v539
  %2723 = vmatpush1.msra.mxu0 %v538
  %2724 = vmatprep.subr.mxu0 %v535
  %2725 = vmatpush1.msra.mxu0 %v534
  %2726 = vmatprep.subr.mxu0 %v531
  %2727 = vmatpush1.msra.mxu0 %v530
  %2728 = vmatprep.subr.mxu0 %v527
  %2729 = vmatpush1.msra.mxu0 %v526
  %2730 = vmatprep.subr.mxu0 %v523
  %2731 = vmatpush1.msra.mxu0 %v522
  %2732 = vmatprep.subr.mxu0 %v519
  %2733 = vmatpush1.msra.mxu0 %v518
  %2734 = vmatprep.subr.mxu0 %v643
  %2735 = vmatpush2.msra.mxu0 %v642
  %2736 = vmatprep.subr.mxu0 %v639
  %2737 = vmatpush2.msra.mxu0 %v638
  %2738 = vmatprep.subr.mxu0 %v635
  %2739 = vmatpush2.msra.mxu0 %v634
  %2740 = vmatprep.subr.mxu0 %v631
  %2741 = vmatpush2.msra.mxu0 %v630
  %2742 = vmatprep.subr.mxu0 %v627
  %2743 = vmatpush2.msra.mxu0 %v626
  %2744 = vmatprep.subr.mxu0 %v623
  %2745 = vmatpush2.msra.mxu0 %v622
  %2746 = vmatprep.subr.mxu0 %v619
  %2747 = vmatpush2.msra.mxu0 %v618
  %2748 = vmatprep.subr.mxu0 %v615
  %2749 = vmatpush2.msra.mxu0 %v614
  %2750 = vmatprep.subr.mxu0 %v611
  %2751 = vmatpush2.msra.mxu0 %v610
  %2752 = vmatprep.subr.mxu0 %v607
  %2753 = vmatpush2.msra.mxu0 %v606
  %2754 = vmatprep.subr.mxu0 %v603
  %2755 = vmatpush2.msra.mxu0 %v602
  %2756 = vmatprep.subr.mxu0 %v599
  %2757 = vmatpush2.msra.mxu0 %v598
  %2758 = vmatprep.subr.mxu0 %v595
  %2759 = vmatpush2.msra.mxu0 %v594
  %2760 = vmatprep.subr.mxu0 %v591
  %2761 = vmatpush2.msra.mxu0 %v590
  %2762 = vmatprep.subr.mxu0 %v587
  %2763 = vmatpush2.msra.mxu0 %v586
  %2764 = vmatprep.subr.mxu0 %v583
  %2765 = vmatpush2.msra.mxu0 %v582
  %2766 = vmatprep.mubr.f32.mxu0 %v2296
  %2767 = vmatmul.mubr.f32.gmra.mxu0 %v2137
  %v2768 = vpop.f32.mrf.mxu0
  %v2769 = vadd.f32 %v658, %v2768
  %v2770 = vpop.f32.mrf.mxu0
  %v2771 = vadd.f32 %v662, %v2770
  %2772 = vdwg.mxu0
  %v2773 = vtanh.pop %v2698
  %v2774 = vtanh.pop %v2700
  %v2775 = vtanh.pop %v2769
  %v2776 = vtanh.pop %v2771
  %v2777 = vmul.f32 %v2773, %v49
  %v2778 = vmul.f32 %v2774, %v50
  %v2779 = vmul.f32 %v2775, %v51
  %v2780 = vmul.f32 %v2776, %v52
  %v2781 = vadd.f32 %v2777, %v53
  %v2782 = vadd.f32 %v2778, %v54
  %v2783 = vadd.f32 %v2779, %v55
  %v2784 = vadd.f32 %v2780, %v56
  %v2785 = vmul.f32 %v2782, %v2294
  %v2786 = vmul.f32 %v2781, %v2783
  %v2787 = vadd.f32 %v2785, %v2786
  %v2788 = vtanh.pop %v2787
  %v2789 = vmul.f32 %v2784, %v2788
  %2790 = vmatprep.subr.mxu0 %v1221
  %2791 = vmatpush1.msra.mxu0 %v1220
  %2792 = vmatprep.subr.mxu0 %v1217
  %2793 = vmatpush1.msra.mxu0 %v1216
  %2794 = vmatprep.subr.mxu0 %v1213
  %2795 = vmatpush1.msra.mxu0 %v1212
  %2796 = vmatprep.subr.mxu0 %v1209
  %2797 = vmatpush1.msra.mxu0 %v1208
  %2798 = vmatprep.subr.mxu0 %v1205
  %2799 = vmatpush1.msra.mxu0 %v1204
  %2800 = vmatprep.subr.mxu0 %v1201
  %2801 = vmatpush1.msra.mxu0 %v1200
  %2802 = vmatprep.subr.mxu0 %v1197
  %2803 = vmatpush1.msra.mxu0 %v1196
  %2804 = vmatprep.subr.mxu0 %v1193
  %2805 = vmatpush1.msra.mxu0 %v1192
  %2806 = vmatprep.subr.mxu0 %v1189
  %2807 = vmatpush1.msra.mxu0 %v1188
  %2808 = vmatprep.subr.mxu0 %v1185
  %2809 = vmatpush1.msra.mxu0 %v1184
  %2810 = vmatprep.subr.mxu0 %v1181
  %2811 = vmatpush1.msra.mxu0 %v1180
  %2812 = vmatprep.subr.mxu0 %v1177
  %2813 = vmatpush1.msra.mxu0 %v1176
  %2814 = vmatprep.subr.mxu0 %v1173
  %2815 = vmatpush1.msra.mxu0 %v1172
  %2816 = vmatprep.subr.mxu0 %v1169
  %2817 = vmatpush1.msra.mxu0 %v1168
  %2818 = vmatprep.subr.mxu0 %v1165
  %2819 = vmatpush1.msra.mxu0 %v1164
  %2820 = vmatprep.subr.mxu0 %v1161
  %2821 = vmatpush1.msra.mxu0 %v1160
  %2822 = vmatprep.subr.mxu0 %v1285
  %2823 = vmatpush2.msra.mxu0 %v1284
  %2824 = vmatprep.subr.mxu0 %v1281
  %2825 = vmatpush2.msra.mxu0 %v1280
  %2826 = vmatprep.subr.mxu0 %v1277
  %2827 = vmatpush2.msra.mxu0 %v1276
  %2828 = vmatprep.subr.mxu0 %v1273
  %2829 = vmatpush2.msra.mxu0 %v1272
  %2830 = vmatprep.subr.mxu0 %v1269
  %2831 = vmatpush2.msra.mxu0 %v1268
  %2832 = vmatprep.subr.mxu0 %v1265
  %2833 = vmatpush2.msra.mxu0 %v1264
  %2834 = vmatprep.subr.mxu0 %v1261
  %2835 = vmatpush2.msra.mxu0 %v1260
  %2836 = vmatprep.subr.mxu0 %v1257
  %2837 = vmatpush2.msra.mxu0 %v1256
  %2838 = vmatprep.subr.mxu0 %v1253
  %2839 = vmatpush2.msra.mxu0 %v1252
  %2840 = vmatprep.subr.mxu0 %v1249
  %2841 = vmatpush2.msra.mxu0 %v1248
  %2842 = vmatprep.subr.mxu0 %v1245
  %2843 = vmatpush2.msra.mxu0 %v1244
  %2844 = vmatprep.subr.mxu0 %v1241
  %2845 = vmatpush2.msra.mxu0 %v1240
  %2846 = vmatprep.subr.mxu0 %v1237
  %2847 = vmatpush2.msra.mxu0 %v1236
  %2848 = vmatprep.subr.mxu0 %v1233
  %2849 = vmatpush2.msra.mxu0 %v1232
  %2850 = vmatprep.subr.mxu0 %v1229
  %2851 = vmatpush2.msra.mxu0 %v1228
  %2852 = vmatprep.subr.mxu0 %v1225
  %2853 = vmatpush2.msra.mxu0 %v1224
  %2854 = vmatprep.mubr.f32.mxu0 %v2455
  %2855 = vmatmul.mubr.f32.gmra.mxu0 %v2296
  %v2856 = vpop.f32.mrf.mxu0
  %v2857 = vadd.f32 %v1294, %v2856
  %v2858 = vpop.f32.mrf.mxu0
  %v2859 = vadd.f32 %v1298, %v2858
  %2860 = vdwg.mxu0
  %2861 = vmatprep.subr.mxu0 %v1223
  %2862 = vmatpush1.msra.mxu0 %v1222
  %2863 = vmatprep.subr.mxu0 %v1219
  %2864 = vmatpush1.msra.mxu0 %v1218
  %2865 = vmatprep.subr.mxu0 %v1215
  %2866 = vmatpush1.msra.mxu0 %v1214
  %2867 = vmatprep.subr.mxu0 %v1211
  %2868 = vmatpush1.msra.mxu0 %v1210
  %2869 = vmatprep.subr.mxu0 %v1207
  %2870 = vmatpush1.msra.mxu0 %v1206
  %2871 = vmatprep.subr.mxu0 %v1203
  %2872 = vmatpush1.msra.mxu0 %v1202
  %2873 = vmatprep.subr.mxu0 %v1199
  %2874 = vmatpush1.msra.mxu0 %v1198
  %2875 = vmatprep.subr.mxu0 %v1195
  %2876 = vmatpush1.msra.mxu0 %v1194
  %2877 = vmatprep.subr.mxu0 %v1191
  %2878 = vmatpush1.msra.mxu0 %v1190
  %2879 = vmatprep.subr.mxu0 %v1187
  %2880 = vmatpush1.msra.mxu0 %v1186
  %2881 = vmatprep.subr.mxu0 %v1183
  %2882 = vmatpush1.msra.mxu0 %v1182
  %2883 = vmatprep.subr.mxu0 %v1179
  %2884 = vmatpush1.msra.mxu0 %v1178
  %2885 = vmatprep.subr.mxu0 %v1175
  %2886 = vmatpush1.msra.mxu0 %v1174
  %2887 = vmatprep.subr.mxu0 %v1171
  %2888 = vmatpush1.msra.mxu0 %v1170
  %2889 = vmatprep.subr.mxu0 %v1167
  %2890 = vmatpush1.msra.mxu0 %v1166
  %2891 = vmatprep.subr.mxu0 %v1163
  %2892 = vmatpush1.msra.mxu0 %v1162
  %2893 = vmatprep.subr.mxu0 %v1287
  %2894 = vmatpush2.msra.mxu0 %v1286
  %2895 = vmatprep.subr.mxu0 %v1283
  %2896 = vmatpush2.msra.mxu0 %v1282
  %2897 = vmatprep.subr.mxu0 %v1279
  %2898 = vmatpush2.msra.mxu0 %v1278
  %2899 = vmatprep.subr.mxu0 %v1275
  %2900 = vmatpush2.msra.mxu0 %v1274
  %2901 = vmatprep.subr.mxu0 %v1271
  %2902 = vmatpush2.msra.mxu0 %v1270
  %2903 = vmatprep.subr.mxu0 %v1267
  %2904 = vmatpush2.msra.mxu0 %v1266
  %2905 = vmatprep.subr.mxu0 %v1263
  %2906 = vmatpush2.msra.mxu0 %v1262
  %2907 = vmatprep.subr.mxu0 %v1259
  %2908 = vmatpush2.msra.mxu0 %v1258
  %2909 = vmatprep.subr.mxu0 %v1255
  %2910 = vmatpush2.msra.mxu0 %v1254
  %2911 = vmatprep.subr.mxu0 %v1251
  %2912 = vmatpush2.msra.mxu0 %v1250
  %2913 = vmatprep.subr.mxu0 %v1247
  %2914 = vmatpush2.msra.mxu0 %v1246
  %2915 = vmatprep.subr.mxu0 %v1243
  %2916 = vmatpush2.msra.mxu0 %v1242
  %2917 = vmatprep.subr.mxu0 %v1239
  %2918 = vmatpush2.msra.mxu0 %v1238
  %2919 = vmatprep.subr.mxu0 %v1235
  %2920 = vmatpush2.msra.mxu0 %v1234
  %2921 = vmatprep.subr.mxu0 %v1231
  %2922 = vmatpush2.msra.mxu0 %v1230
  %2923 = vmatprep.subr.mxu0 %v1227
  %2924 = vmatpush2.msra.mxu0 %v1226
  %2925 = vmatprep.mubr.f32.mxu0 %v2455
  %2926 = vmatmul.mubr.f32.gmra.mxu0 %v2296
  %v2927 = vpop.f32.mrf.mxu0
  %v2928 = vadd.f32 %v1302, %v2927
  %v2929 = vpop.f32.mrf.mxu0
  %v2930 = vadd.f32 %v1306, %v2929
  %2931 = vdwg.mxu0
  %v2932 = vtanh.pop %v2857
  %v2933 = vtanh.pop %v2859
  %v2934 = vtanh.pop %v2928
  %v2935 = vtanh.pop %v2930
  %v2936 = vmul.f32 %v2932, %v49
  %v2937 = vmul.f32 %v2933, %v50
  %v2938 = vmul.f32 %v2934, %v51
  %v2939 = vmul.f32 %v2935, %v52
  %v2940 = vadd.f32 %v2936, %v53
  %v2941 = vadd.f32 %v2937, %v54
  %v2942 = vadd.f32 %v2938, %v55
  %v2943 = vadd.f32 %v2939, %v56
  %v2944 = vmul.f32 %v2941, %v2453
  %v2945 = vmul.f32 %v2940, %v2942
  %v2946 = vadd.f32 %v2944, %v2945
  %v2947 = vtanh.pop %v2946
  %v2948 = vmul.f32 %v2943, %v2947
  %2949 = vset.pattern.permute.xlu0 6
  %2950 = vperm.xlu0 %2949, %v31
  %v2951 = vpop.permute.xlu0 %2950
  %v2953 = vmul.f32 %v2951, %v67
  %v2954 = vmul.f32 %v2951, %v71
  %v2955 = vmul.f32 %v2951, %v75
  %v2956 = vmul.f32 %v2951, %v79
  %2957 = vmatprep.subr.mxu0 %v149
  %2958 = vmatpush1.msra.mxu0 %v148
  %2959 = vmatprep.subr.mxu0 %v145
  %2960 = vmatpush1.msra.mxu0 %v144
  %2961 = vmatprep.subr.mxu0 %v141
  %2962 = vmatpush1.msra.mxu0 %v140
  %2963 = vmatprep.subr.mxu0 %v137
  %2964 = vmatpush1.msra.mxu0 %v136
  %2965 = vmatprep.subr.mxu0 %v133
  %2966 = vmatpush1.msra.mxu0 %v132
  %2967 = vmatprep.subr.mxu0 %v129
  %2968 = vmatpush1.msra.mxu0 %v128
  %2969 = vmatprep.subr.mxu0 %v125
  %2970 = vmatpush1.msra.mxu0 %v124
  %2971 = vmatprep.subr.mxu0 %v121
  %2972 = vmatpush1.msra.mxu0 %v120
  %2973 = vmatprep.subr.mxu0 %v117
  %2974 = vmatpush1.msra.mxu0 %v116
  %2975 = vmatprep.subr.mxu0 %v113
  %2976 = vmatpush1.msra.mxu0 %v112
  %2977 = vmatprep.subr.mxu0 %v109
  %2978 = vmatpush1.msra.mxu0 %v108
  %2979 = vmatprep.subr.mxu0 %v105
  %2980 = vmatpush1.msra.mxu0 %v104
  %2981 = vmatprep.subr.mxu0 %v101
  %2982 = vmatpush1.msra.mxu0 %v100
  %2983 = vmatprep.subr.mxu0 %v97
  %2984 = vmatpush1.msra.mxu0 %v96
  %2985 = vmatprep.subr.mxu0 %v93
  %2986 = vmatpush1.msra.mxu0 %v92
  %2987 = vmatprep.subr.mxu0 %v89
  %2988 = vmatpush1.msra.mxu0 %v88
  %2989 = vmatprep.subr.mxu0 0.0
  %2990 = vmatpush2.msra.mxu0 0.0
  %2991 = vmatprep.subr.mxu0 0.0
  %2992 = vmatpush2.msra.mxu0 0.0
  %2993 = vmatprep.subr.mxu0 0.0
  %2994 = vmatpush2.msra.mxu0 0.0
  %2995 = vmatprep.subr.mxu0 0.0
  %2996 = vmatpush2.msra.mxu0 0.0
  %2997 = vmatprep.subr.mxu0 0.0
  %2998 = vmatpush2.msra.mxu0 0.0
  %2999 = vmatprep.subr.mxu0 0.0
  %3000 = vmatpush2.msra.mxu0 0.0
  %3001 = vmatprep.subr.mxu0 0.0
  %3002 = vmatpush2.msra.mxu0 0.0
  %3003 = vmatprep.subr.mxu0 0.0
  %3004 = vmatpush2.msra.mxu0 0.0
  %3005 = vmatprep.subr.mxu0 0.0
  %3006 = vmatpush2.msra.mxu0 0.0
  %3007 = vmatprep.subr.mxu0 0.0
  %3008 = vmatpush2.msra.mxu0 0.0
  %3009 = vmatprep.subr.mxu0 0.0
  %3010 = vmatpush2.msra.mxu0 0.0
  %3011 = vmatprep.subr.mxu0 0.0
  %3012 = vmatpush2.msra.mxu0 0.0
  %3013 = vmatprep.subr.mxu0 0.0
  %3014 = vmatpush2.msra.mxu0 0.0
  %3015 = vmatprep.subr.mxu0 0.0
  %3016 = vmatpush2.msra.mxu0 0.0
  %3017 = vmatprep.subr.mxu0 0.0
  %3018 = vmatpush2.msra.mxu0 0.0
  %3019 = vmatprep.subr.mxu0 0.0
  %3020 = vmatpush2.msra.mxu0 0.0
  %3021 = vmatprep.mubr.f32.mxu0 0.0
  %3022 = vmatmul.mubr.f32.gmra.mxu0 %v2630
  %v3023 = vpop.f32.mrf.mxu0
  %v3024 = vadd.f32 0.0, %v3023
  %v3025 = vpop.f32.mrf.mxu0
  %v3026 = vadd.f32 0.0, %v3025
  %3027 = vdwg.mxu0
  %3028 = vmatprep.subr.mxu0 %v151
  %3029 = vmatpush1.msra.mxu0 %v150
  %3030 = vmatprep.subr.mxu0 %v147
  %3031 = vmatpush1.msra.mxu0 %v146
  %3032 = vmatprep.subr.mxu0 %v143
  %3033 = vmatpush1.msra.mxu0 %v142
  %3034 = vmatprep.subr.mxu0 %v139
  %3035 = vmatpush1.msra.mxu0 %v138
  %3036 = vmatprep.subr.mxu0 %v135
  %3037 = vmatpush1.msra.mxu0 %v134
  %3038 = vmatprep.subr.mxu0 %v131
  %3039 = vmatpush1.msra.mxu0 %v130
  %3040 = vmatprep.subr.mxu0 %v127
  %3041 = vmatpush1.msra.mxu0 %v126
  %3042 = vmatprep.subr.mxu0 %v123
  %3043 = vmatpush1.msra.mxu0 %v122
  %3044 = vmatprep.subr.mxu0 %v119
  %3045 = vmatpush1.msra.mxu0 %v118
  %3046 = vmatprep.subr.mxu0 %v115
  %3047 = vmatpush1.msra.mxu0 %v114
  %3048 = vmatprep.subr.mxu0 %v111
  %3049 = vmatpush1.msra.mxu0 %v110
  %3050 = vmatprep.subr.mxu0 %v107
  %3051 = vmatpush1.msra.mxu0 %v106
  %3052 = vmatprep.subr.mxu0 %v103
  %3053 = vmatpush1.msra.mxu0 %v102
  %3054 = vmatprep.subr.mxu0 %v99
  %3055 = vmatpush1.msra.mxu0 %v98
  %3056 = vmatprep.subr.mxu0 %v95
  %3057 = vmatpush1.msra.mxu0 %v94
  %3058 = vmatprep.subr.mxu0 %v91
  %3059 = vmatpush1.msra.mxu0 %v90
  %3060 = vmatprep.subr.mxu0 0.0
  %3061 = vmatpush2.msra.mxu0 0.0
  %3062 = vmatprep.subr.mxu0 0.0
  %3063 = vmatpush2.msra.mxu0 0.0
  %3064 = vmatprep.subr.mxu0 0.0
  %3065 = vmatpush2.msra.mxu0 0.0
  %3066 = vmatprep.subr.mxu0 0.0
  %3067 = vmatpush2.msra.mxu0 0.0
  %3068 = vmatprep.subr.mxu0 0.0
  %3069 = vmatpush2.msra.mxu0 0.0
  %3070 = vmatprep.subr.mxu0 0.0
  %3071 = vmatpush2.msra.mxu0 0.0
  %3072 = vmatprep.subr.mxu0 0.0
  %3073 = vmatpush2.msra.mxu0 0.0
  %3074 = vmatprep.subr.mxu0 0.0
  %3075 = vmatpush2.msra.mxu0 0.0
  %3076 = vmatprep.subr.mxu0 0.0
  %3077 = vmatpush2.msra.mxu0 0.0
  %3078 = vmatprep.subr.mxu0 0.0
  %3079 = vmatpush2.msra.mxu0 0.0
  %3080 = vmatprep.subr.mxu0 0.0
  %3081 = vmatpush2.msra.mxu0 0.0
  %3082 = vmatprep.subr.mxu0 0.0
  %3083 = vmatpush2.msra.mxu0 0.0
  %3084 = vmatprep.subr.mxu0 0.0
  %3085 = vmatpush2.msra.mxu0 0.0
  %3086 = vmatprep.subr.mxu0 0.0
  %3087 = vmatpush2.msra.mxu0 0.0
  %3088 = vmatprep.subr.mxu0 0.0
  %3089 = vmatpush2.msra.mxu0 0.0
  %3090 = vmatprep.subr.mxu0 0.0
  %3091 = vmatpush2.msra.mxu0 0.0
  %3092 = vmatprep.mubr.f32.mxu0 0.0
  %3093 = vmatmul.mubr.f32.gmra.mxu0 %v2630
  %v3094 = vpop.f32.mrf.mxu0
  %v3095 = vadd.f32 0.0, %v3094
  %v3096 = vpop.f32.mrf.mxu0
  %v3097 = vadd.f32 0.0, %v3096
  %3098 = vdwg.mxu0
  %v3099 = vadd.f32 %v2953, %v3024
  %v3100 = vadd.f32 %v2954, %v3026
  %v3101 = vadd.f32 %v2955, %v3095
  %v3102 = vadd.f32 %v2956, %v3097
  %v3103 = vadd.f32 %v3099, %v303
  %v3104 = vadd.f32 %v3100, %v307
  %v3105 = vadd.f32 %v3101, %v311
  %v3106 = vadd.f32 %v3102, %v315
  %v3107 = vtanh.pop %v3103
  %v3108 = vtanh.pop %v3104
  %v3109 = vtanh.pop %v3105
  %v3110 = vtanh.pop %v3106
  %v3111 = vmul.f32 %v3107, %v49
  %v3112 = vmul.f32 %v3108, %v50
  %v3113 = vmul.f32 %v3109, %v51
  %v3114 = vmul.f32 %v3110, %v52
  %v3115 = vadd.f32 %v3111, %v53
  %v3116 = vadd.f32 %v3112, %v54
  %v3117 = vadd.f32 %v3113, %v55
  %v3118 = vadd.f32 %v3114, %v56
  %v3119 = vmul.f32 %v3116, %v2628
  %v3120 = vmul.f32 %v3115, %v3117
  %v3121 = vadd.f32 %v3119, %v3120
  %v3122 = vtanh.pop %v3121
  %v3123 = vmul.f32 %v3118, %v3122
  %3124 = vmatprep.subr.mxu0 %v577
  %3125 = vmatpush1.msra.mxu0 %v576
  %3126 = vmatprep.subr.mxu0 %v573
  %3127 = vmatpush1.msra.mxu0 %v572
  %3128 = vmatprep.subr.mxu0 %v569
  %3129 = vmatpush1.msra.mxu0 %v568
  %3130 = vmatprep.subr.mxu0 %v565
  %3131 = vmatpush1.msra.mxu0 %v564
  %3132 = vmatprep.subr.mxu0 %v561
  %3133 = vmatpush1.msra.mxu0 %v560
  %3134 = vmatprep.subr.mxu0 %v557
  %3135 = vmatpush1.msra.mxu0 %v556
  %3136 = vmatprep.subr.mxu0 %v553
  %3137 = vmatpush1.msra.mxu0 %v552
  %3138 = vmatprep.subr.mxu0 %v549
  %3139 = vmatpush1.msra.mxu0 %v548
  %3140 = vmatprep.subr.mxu0 %v545
  %3141 = vmatpush1.msra.mxu0 %v544
  %3142 = vmatprep.subr.mxu0 %v541
  %3143 = vmatpush1.msra.mxu0 %v540
  %3144 = vmatprep.subr.mxu0 %v537
  %3145 = vmatpush1.msra.mxu0 %v536
  %3146 = vmatprep.subr.mxu0 %v533
  %3147 = vmatpush1.msra.mxu0 %v532
  %3148 = vmatprep.subr.mxu0 %v529
  %3149 = vmatpush1.msra.mxu0 %v528
  %3150 = vmatprep.subr.mxu0 %v525
  %3151 = vmatpush1.msra.mxu0 %v524
  %3152 = vmatprep.subr.mxu0 %v521
  %3153 = vmatpush1.msra.mxu0 %v520
  %3154 = vmatprep.subr.mxu0 %v517
  %3155 = vmatpush1.msra.mxu0 %v516
  %3156 = vmatprep.subr.mxu0 %v641
  %3157 = vmatpush2.msra.mxu0 %v640
  %3158 = vmatprep.subr.mxu0 %v637
  %3159 = vmatpush2.msra.mxu0 %v636
  %3160 = vmatprep.subr.mxu0 %v633
  %3161 = vmatpush2.msra.mxu0 %v632
  %3162 = vmatprep.subr.mxu0 %v629
  %3163 = vmatpush2.msra.mxu0 %v628
  %3164 = vmatprep.subr.mxu0 %v625
  %3165 = vmatpush2.msra.mxu0 %v624
  %3166 = vmatprep.subr.mxu0 %v621
  %3167 = vmatpush2.msra.mxu0 %v620
  %3168 = vmatprep.subr.mxu0 %v617
  %3169 = vmatpush2.msra.mxu0 %v616
  %3170 = vmatprep.subr.mxu0 %v613
  %3171 = vmatpush2.msra.mxu0 %v612
  %3172 = vmatprep.subr.mxu0 %v609
  %3173 = vmatpush2.msra.mxu0 %v608
  %3174 = vmatprep.subr.mxu0 %v605
  %3175 = vmatpush2.msra.mxu0 %v604
  %3176 = vmatprep.subr.mxu0 %v601
  %3177 = vmatpush2.msra.mxu0 %v600
  %3178 = vmatprep.subr.mxu0 %v597
  %3179 = vmatpush2.msra.mxu0 %v596
  %3180 = vmatprep.subr.mxu0 %v593
  %3181 = vmatpush2.msra.mxu0 %v592
  %3182 = vmatprep.subr.mxu0 %v589
  %3183 = vmatpush2.msra.mxu0 %v588
  %3184 = vmatprep.subr.mxu0 %v585
  %3185 = vmatpush2.msra.mxu0 %v584
  %3186 = vmatprep.subr.mxu0 %v581
  %3187 = vmatpush2.msra.mxu0 %v580
  %3188 = vmatprep.mubr.f32.mxu0 %v2789
  %3189 = vmatmul.mubr.f32.gmra.mxu0 %v2630
  %v3190 = vpop.f32.mrf.mxu0
  %v3191 = vadd.f32 %v650, %v3190
  %v3192 = vpop.f32.mrf.mxu0
  %v3193 = vadd.f32 %v654, %v3192
  %3194 = vdwg.mxu0
  %3195 = vmatprep.subr.mxu0 %v579
  %3196 = vmatpush1.msra.mxu0 %v578
  %3197 = vmatprep.subr.mxu0 %v575
  %3198 = vmatpush1.msra.mxu0 %v574
  %3199 = vmatprep.subr.mxu0 %v571
  %3200 = vmatpush1.msra.mxu0 %v570
  %3201 = vmatprep.subr.mxu0 %v567
  %3202 = vmatpush1.msra.mxu0 %v566
  %3203 = vmatprep.subr.mxu0 %v563
  %3204 = vmatpush1.msra.mxu0 %v562
  %3205 = vmatprep.subr.mxu0 %v559
  %3206 = vmatpush1.msra.mxu0 %v558
  %3207 = vmatprep.subr.mxu0 %v555
  %3208 = vmatpush1.msra.mxu0 %v554
  %3209 = vmatprep.subr.mxu0 %v551
  %3210 = vmatpush1.msra.mxu0 %v550
  %3211 = vmatprep.subr.mxu0 %v547
  %3212 = vmatpush1.msra.mxu0 %v546
  %3213 = vmatprep.subr.mxu0 %v543
  %3214 = vmatpush1.msra.mxu0 %v542
  %3215 = vmatprep.subr.mxu0 %v539
  %3216 = vmatpush1.msra.mxu0 %v538
  %3217 = vmatprep.subr.mxu0 %v535
  %3218 = vmatpush1.msra.mxu0 %v534
  %3219 = vmatprep.subr.mxu0 %v531
  %3220 = vmatpush1.msra.mxu0 %v530
  %3221 = vmatprep.subr.mxu0 %v527
  %3222 = vmatpush1.msra.mxu0 %v526
  %3223 = vmatprep.subr.mxu0 %v523
  %3224 = vmatpush1.msra.mxu0 %v522
  %3225 = vmatprep.subr.mxu0 %v519
  %3226 = vmatpush1.msra.mxu0 %v518
  %3227 = vmatprep.subr.mxu0 %v643
  %3228 = vmatpush2.msra.mxu0 %v642
  %3229 = vmatprep.subr.mxu0 %v639
  %3230 = vmatpush2.msra.mxu0 %v638
  %3231 = vmatprep.subr.mxu0 %v635
  %3232 = vmatpush2.msra.mxu0 %v634
  %3233 = vmatprep.subr.mxu0 %v631
  %3234 = vmatpush2.msra.mxu0 %v630
  %3235 = vmatprep.subr.mxu0 %v627
  %3236 = vmatpush2.msra.mxu0 %v626
  %3237 = vmatprep.subr.mxu0 %v623
  %3238 = vmatpush2.msra.mxu0 %v622
  %3239 = vmatprep.subr.mxu0 %v619
  %3240 = vmatpush2.msra.mxu0 %v618
  %3241 = vmatprep.subr.mxu0 %v615
  %3242 = vmatpush2.msra.mxu0 %v614
  %3243 = vmatprep.subr.mxu0 %v611
  %3244 = vmatpush2.msra.mxu0 %v610
  %3245 = vmatprep.subr.mxu0 %v607
  %3246 = vmatpush2.msra.mxu0 %v606
  %3247 = vmatprep.subr.mxu0 %v603
  %3248 = vmatpush2.msra.mxu0 %v602
  %3249 = vmatprep.subr.mxu0 %v599
  %3250 = vmatpush2.msra.mxu0 %v598
  %3251 = vmatprep.subr.mxu0 %v595
  %3252 = vmatpush2.msra.mxu0 %v594
  %3253 = vmatprep.subr.mxu0 %v591
  %3254 = vmatpush2.msra.mxu0 %v590
  %3255 = vmatprep.subr.mxu0 %v587
  %3256 = vmatpush2.msra.mxu0 %v586
  %3257 = vmatprep.subr.mxu0 %v583
  %3258 = vmatpush2.msra.mxu0 %v582
  %3259 = vmatprep.mubr.f32.mxu0 %v2789
  %3260 = vmatmul.mubr.f32.gmra.mxu0 %v2630
  %v3261 = vpop.f32.mrf.mxu0
  %v3262 = vadd.f32 %v658, %v3261
  %v3263 = vpop.f32.mrf.mxu0
  %v3264 = vadd.f32 %v662, %v3263
  %3265 = vdwg.mxu0
  %v3266 = vtanh.pop %v3191
  %v3267 = vtanh.pop %v3193
  %v3268 = vtanh.pop %v3262
  %v3269 = vtanh.pop %v3264
  %v3270 = vmul.f32 %v3266, %v49
  %v3271 = vmul.f32 %v3267, %v50
  %v3272 = vmul.f32 %v3268, %v51
  %v3273 = vmul.f32 %v3269, %v52
  %v3274 = vadd.f32 %v3270, %v53
  %v3275 = vadd.f32 %v3271, %v54
  %v3276 = vadd.f32 %v3272, %v55
  %v3277 = vadd.f32 %v3273, %v56
  %v3278 = vmul.f32 %v3275, %v2787
  %v3279 = vmul.f32 %v3274, %v3276
  %v3280 = vadd.f32 %v3278, %v3279
  %v3281 = vtanh.pop %v3280
  %v3282 = vmul.f32 %v3277, %v3281
  %3283 = vmatprep.subr.mxu0 %v1221
  %3284 = vmatpush1.msra.mxu0 %v1220
  %3285 = vmatprep.subr.mxu0 %v1217
  %3286 = vmatpush1.msra.mxu0 %v1216
  %3287 = vmatprep.subr.mxu0 %v1213
  %3288 = vmatpush1.msra.mxu0 %v1212
  %3289 = vmatprep.subr.mxu0 %v1209
  %3290 = vmatpush1.msra.mxu0 %v1208
  %3291 = vmatprep.subr.mxu0 %v1205
  %3292 = vmatpush1.msra.mxu0 %v1204
  %3293 = vmatprep.subr.mxu0 %v1201
  %3294 = vmatpush1.msra.mxu0 %v1200
  %3295 = vmatprep.subr.mxu0 %v1197
  %3296 = vmatpush1.msra.mxu0 %v1196
  %3297 = vmatprep.subr.mxu0 %v1193
  %3298 = vmatpush1.msra.mxu0 %v1192
  %3299 = vmatprep.subr.mxu0 %v1189
  %3300 = vmatpush1.msra.mxu0 %v1188
  %3301 = vmatprep.subr.mxu0 %v1185
  %3302 = vmatpush1.msra.mxu0 %v1184
  %3303 = vmatprep.subr.mxu0 %v1181
  %3304 = vmatpush1.msra.mxu0 %v1180
  %3305 = vmatprep.subr.mxu0 %v1177
  %3306 = vmatpush1.msra.mxu0 %v1176
  %3307 = vmatprep.subr.mxu0 %v1173
  %3308 = vmatpush1.msra.mxu0 %v1172
  %3309 = vmatprep.subr.mxu0 %v1169
  %3310 = vmatpush1.msra.mxu0 %v1168
  %3311 = vmatprep.subr.mxu0 %v1165
  %3312 = vmatpush1.msra.mxu0 %v1164
  %3313 = vmatprep.subr.mxu0 %v1161
  %3314 = vmatpush1.msra.mxu0 %v1160
  %3315 = vmatprep.subr.mxu0 %v1285
  %3316 = vmatpush2.msra.mxu0 %v1284
  %3317 = vmatprep.subr.mxu0 %v1281
  %3318 = vmatpush2.msra.mxu0 %v1280
  %3319 = vmatprep.subr.mxu0 %v1277
  %3320 = vmatpush2.msra.mxu0 %v1276
  %3321 = vmatprep.subr.mxu0 %v1273
  %3322 = vmatpush2.msra.mxu0 %v1272
  %3323 = vmatprep.subr.mxu0 %v1269
  %3324 = vmatpush2.msra.mxu0 %v1268
  %3325 = vmatprep.subr.mxu0 %v1265
  %3326 = vmatpush2.msra.mxu0 %v1264
  %3327 = vmatprep.subr.mxu0 %v1261
  %3328 = vmatpush2.msra.mxu0 %v1260
  %3329 = vmatprep.subr.mxu0 %v1257
  %3330 = vmatpush2.msra.mxu0 %v1256
  %3331 = vmatprep.subr.mxu0 %v1253
  %3332 = vmatpush2.msra.mxu0 %v1252
  %3333 = vmatprep.subr.mxu0 %v1249
  %3334 = vmatpush2.msra.mxu0 %v1248
  %3335 = vmatprep.subr.mxu0 %v1245
  %3336 = vmatpush2.msra.mxu0 %v1244
  %3337 = vmatprep.subr.mxu0 %v1241
  %3338 = vmatpush2.msra.mxu0 %v1240
  %3339 = vmatprep.subr.mxu0 %v1237
  %3340 = vmatpush2.msra.mxu0 %v1236
  %3341 = vmatprep.subr.mxu0 %v1233
  %3342 = vmatpush2.msra.mxu0 %v1232
  %3343 = vmatprep.subr.mxu0 %v1229
  %3344 = vmatpush2.msra.mxu0 %v1228
  %3345 = vmatprep.subr.mxu0 %v1225
  %3346 = vmatpush2.msra.mxu0 %v1224
  %3347 = vmatprep.mubr.f32.mxu0 %v2948
  %3348 = vmatmul.mubr.f32.gmra.mxu0 %v2789
  %v3349 = vpop.f32.mrf.mxu0
  %v3350 = vadd.f32 %v1294, %v3349
  %v3351 = vpop.f32.mrf.mxu0
  %v3352 = vadd.f32 %v1298, %v3351
  %3353 = vdwg.mxu0
  %3354 = vmatprep.subr.mxu0 %v1223
  %3355 = vmatpush1.msra.mxu0 %v1222
  %3356 = vmatprep.subr.mxu0 %v1219
  %3357 = vmatpush1.msra.mxu0 %v1218
  %3358 = vmatprep.subr.mxu0 %v1215
  %3359 = vmatpush1.msra.mxu0 %v1214
  %3360 = vmatprep.subr.mxu0 %v1211
  %3361 = vmatpush1.msra.mxu0 %v1210
  %3362 = vmatprep.subr.mxu0 %v1207
  %3363 = vmatpush1.msra.mxu0 %v1206
  %3364 = vmatprep.subr.mxu0 %v1203
  %3365 = vmatpush1.msra.mxu0 %v1202
  %3366 = vmatprep.subr.mxu0 %v1199
  %3367 = vmatpush1.msra.mxu0 %v1198
  %3368 = vmatprep.subr.mxu0 %v1195
  %3369 = vmatpush1.msra.mxu0 %v1194
  %3370 = vmatprep.subr.mxu0 %v1191
  %3371 = vmatpush1.msra.mxu0 %v1190
  %3372 = vmatprep.subr.mxu0 %v1187
  %3373 = vmatpush1.msra.mxu0 %v1186
  %3374 = vmatprep.subr.mxu0 %v1183
  %3375 = vmatpush1.msra.mxu0 %v1182
  %3376 = vmatprep.subr.mxu0 %v1179
  %3377 = vmatpush1.msra.mxu0 %v1178
  %3378 = vmatprep.subr.mxu0 %v1175
  %3379 = vmatpush1.msra.mxu0 %v1174
  %3380 = vmatprep.subr.mxu0 %v1171
  %3381 = vmatpush1.msra.mxu0 %v1170
  %3382 = vmatprep.subr.mxu0 %v1167
  %3383 = vmatpush1.msra.mxu0 %v1166
  %3384 = vmatprep.subr.mxu0 %v1163
  %3385 = vmatpush1.msra.mxu0 %v1162
  %3386 = vmatprep.subr.mxu0 %v1287
  %3387 = vmatpush2.msra.mxu0 %v1286
  %3388 = vmatprep.subr.mxu0 %v1283
  %3389 = vmatpush2.msra.mxu0 %v1282
  %3390 = vmatprep.subr.mxu0 %v1279
  %3391 = vmatpush2.msra.mxu0 %v1278
  %3392 = vmatprep.subr.mxu0 %v1275
  %3393 = vmatpush2.msra.mxu0 %v1274
  %3394 = vmatprep.subr.mxu0 %v1271
  %3395 = vmatpush2.msra.mxu0 %v1270
  %3396 = vmatprep.subr.mxu0 %v1267
  %3397 = vmatpush2.msra.mxu0 %v1266
  %3398 = vmatprep.subr.mxu0 %v1263
  %3399 = vmatpush2.msra.mxu0 %v1262
  %3400 = vmatprep.subr.mxu0 %v1259
  %3401 = vmatpush2.msra.mxu0 %v1258
  %3402 = vmatprep.subr.mxu0 %v1255
  %3403 = vmatpush2.msra.mxu0 %v1254
  %3404 = vmatprep.subr.mxu0 %v1251
  %3405 = vmatpush2.msra.mxu0 %v1250
  %3406 = vmatprep.subr.mxu0 %v1247
  %3407 = vmatpush2.msra.mxu0 %v1246
  %3408 = vmatprep.subr.mxu0 %v1243
  %3409 = vmatpush2.msra.mxu0 %v1242
  %3410 = vmatprep.subr.mxu0 %v1239
  %3411 = vmatpush2.msra.mxu0 %v1238
  %3412 = vmatprep.subr.mxu0 %v1235
  %3413 = vmatpush2.msra.mxu0 %v1234
  %3414 = vmatprep.subr.mxu0 %v1231
  %3415 = vmatpush2.msra.mxu0 %v1230
  %3416 = vmatprep.subr.mxu0 %v1227
  %3417 = vmatpush2.msra.mxu0 %v1226
  %3418 = vmatprep.mubr.f32.mxu0 %v2948
  %3419 = vmatmul.mubr.f32.gmra.mxu0 %v2789
  %v3420 = vpop.f32.mrf.mxu0
  %v3421 = vadd.f32 %v1302, %v3420
  %v3422 = vpop.f32.mrf.mxu0
  %v3423 = vadd.f32 %v1306, %v3422
  %3424 = vdwg.mxu0
  %v3425 = vtanh.pop %v3350
  %v3426 = vtanh.pop %v3352
  %v3427 = vtanh.pop %v3421
  %v3428 = vtanh.pop %v3423
  %v3429 = vmul.f32 %v3425, %v49
  %v3430 = vmul.f32 %v3426, %v50
  %v3431 = vmul.f32 %v3427, %v51
  %v3432 = vmul.f32 %v3428, %v52
  %v3433 = vadd.f32 %v3429, %v53
  %v3434 = vadd.f32 %v3430, %v54
  %v3435 = vadd.f32 %v3431, %v55
  %v3436 = vadd.f32 %v3432, %v56
  %v3437 = vmul.f32 %v3434, %v2946
  %v3438 = vmul.f32 %v3433, %v3435
  %v3439 = vadd.f32 %v3437, %v3438
  %v3440 = vtanh.pop %v3439
  %v3441 = vmul.f32 %v3436, %v3440
  %3442 = vset.pattern.permute.xlu0 7
  %3443 = vperm.xlu0 %3442, %v31
  %v3444 = vpop.permute.xlu0 %3443
  %v3446 = vmul.f32 %v3444, %v67
  %v3447 = vmul.f32 %v3444, %v71
  %v3448 = vmul.f32 %v3444, %v75
  %v3449 = vmul.f32 %v3444, %v79
  %3450 = vmatprep.subr.mxu0 %v149
  %3451 = vmatpush1.msra.mxu0 %v148
  %3452 = vmatprep.subr.mxu0 %v145
  %3453 = vmatpush1.msra.mxu0 %v144
  %3454 = vmatprep.subr.mxu0 %v141
  %3455 = vmatpush1.msra.mxu0 %v140
  %3456 = vmatprep.subr.mxu0 %v137
  %3457 = vmatpush1.msra.mxu0 %v136
  %3458 = vmatprep.subr.mxu0 %v133
  %3459 = vmatpush1.msra.mxu0 %v132
  %3460 = vmatprep.subr.mxu0 %v129
  %3461 = vmatpush1.msra.mxu0 %v128
  %3462 = vmatprep.subr.mxu0 %v125
  %3463 = vmatpush1.msra.mxu0 %v124
  %3464 = vmatprep.subr.mxu0 %v121
  %3465 = vmatpush1.msra.mxu0 %v120
  %3466 = vmatprep.subr.mxu0 %v117
  %3467 = vmatpush1.msra.mxu0 %v116
  %3468 = vmatprep.subr.mxu0 %v113
  %3469 = vmatpush1.msra.mxu0 %v112
  %3470 = vmatprep.subr.mxu0 %v109
  %3471 = vmatpush1.msra.mxu0 %v108
  %3472 = vmatprep.subr.mxu0 %v105
  %3473 = vmatpush1.msra.mxu0 %v104
  %3474 = vmatprep.subr.mxu0 %v101
  %3475 = vmatpush1.msra.mxu0 %v100
  %3476 = vmatprep.subr.mxu0 %v97
  %3477 = vmatpush1.msra.mxu0 %v96
  %3478 = vmatprep.subr.mxu0 %v93
  %3479 = vmatpush1.msra.mxu0 %v92
  %3480 = vmatprep.subr.mxu0 %v89
  %3481 = vmatpush1.msra.mxu0 %v88
  %3482 = vmatprep.subr.mxu0 0.0
  %3483 = vmatpush2.msra.mxu0 0.0
  %3484 = vmatprep.subr.mxu0 0.0
  %3485 = vmatpush2.msra.mxu0 0.0
  %3486 = vmatprep.subr.mxu0 0.0
  %3487 = vmatpush2.msra.mxu0 0.0
  %3488 = vmatprep.subr.mxu0 0.0
  %3489 = vmatpush2.msra.mxu0 0.0
  %3490 = vmatprep.subr.mxu0 0.0
  %3491 = vmatpush2.msra.mxu0 0.0
  %3492 = vmatprep.subr.mxu0 0.0
  %3493 = vmatpush2.msra.mxu0 0.0
  %3494 = vmatprep.subr.mxu0 0.0
  %3495 = vmatpush2.msra.mxu0 0.0
  %3496 = vmatprep.subr.mxu0 0.0
  %3497 = vmatpush2.msra.mxu0 0.0
  %3498 = vmatprep.subr.mxu0 0.0
  %3499 = vmatpush2.msra.mxu0 0.0
  %3500 = vmatprep.subr.mxu0 0.0
  %3501 = vmatpush2.msra.mxu0 0.0
  %3502 = vmatprep.subr.mxu0 0.0
  %3503 = vmatpush2.msra.mxu0 0.0
  %3504 = vmatprep.subr.mxu0 0.0
  %3505 = vmatpush2.msra.mxu0 0.0
  %3506 = vmatprep.subr.mxu0 0.0
  %3507 = vmatpush2.msra.mxu0 0.0
  %3508 = vmatprep.subr.mxu0 0.0
  %3509 = vmatpush2.msra.mxu0 0.0
  %3510 = vmatprep.subr.mxu0 0.0
  %3511 = vmatpush2.msra.mxu0 0.0
  %3512 = vmatprep.subr.mxu0 0.0
  %3513 = vmatpush2.msra.mxu0 0.0
  %3514 = vmatprep.mubr.f32.mxu0 0.0
  %3515 = vmatmul.mubr.f32.gmra.mxu0 %v3123
  %v3516 = vpop.f32.mrf.mxu0
  %v3517 = vadd.f32 0.0, %v3516
  %v3518 = vpop.f32.mrf.mxu0
  %v3519 = vadd.f32 0.0, %v3518
  %3520 = vdwg.mxu0
  %3521 = vmatprep.subr.mxu0 %v151
  %3522 = vmatpush1.msra.mxu0 %v150
  %3523 = vmatprep.subr.mxu0 %v147
  %3524 = vmatpush1.msra.mxu0 %v146
  %3525 = vmatprep.subr.mxu0 %v143
  %3526 = vmatpush1.msra.mxu0 %v142
  %3527 = vmatprep.subr.mxu0 %v139
  %3528 = vmatpush1.msra.mxu0 %v138
  %3529 = vmatprep.subr.mxu0 %v135
  %3530 = vmatpush1.msra.mxu0 %v134
  %3531 = vmatprep.subr.mxu0 %v131
  %3532 = vmatpush1.msra.mxu0 %v130
  %3533 = vmatprep.subr.mxu0 %v127
  %3534 = vmatpush1.msra.mxu0 %v126
  %3535 = vmatprep.subr.mxu0 %v123
  %3536 = vmatpush1.msra.mxu0 %v122
  %3537 = vmatprep.subr.mxu0 %v119
  %3538 = vmatpush1.msra.mxu0 %v118
  %3539 = vmatprep.subr.mxu0 %v115
  %3540 = vmatpush1.msra.mxu0 %v114
  %3541 = vmatprep.subr.mxu0 %v111
  %3542 = vmatpush1.msra.mxu0 %v110
  %3543 = vmatprep.subr.mxu0 %v107
  %3544 = vmatpush1.msra.mxu0 %v106
  %3545 = vmatprep.subr.mxu0 %v103
  %3546 = vmatpush1.msra.mxu0 %v102
  %3547 = vmatprep.subr.mxu0 %v99
  %3548 = vmatpush1.msra.mxu0 %v98
  %3549 = vmatprep.subr.mxu0 %v95
  %3550 = vmatpush1.msra.mxu0 %v94
  %3551 = vmatprep.subr.mxu0 %v91
  %3552 = vmatpush1.msra.mxu0 %v90
  %3553 = vmatprep.subr.mxu0 0.0
  %3554 = vmatpush2.msra.mxu0 0.0
  %3555 = vmatprep.subr.mxu0 0.0
  %3556 = vmatpush2.msra.mxu0 0.0
  %3557 = vmatprep.subr.mxu0 0.0
  %3558 = vmatpush2.msra.mxu0 0.0
  %3559 = vmatprep.subr.mxu0 0.0
  %3560 = vmatpush2.msra.mxu0 0.0
  %3561 = vmatprep.subr.mxu0 0.0
  %3562 = vmatpush2.msra.mxu0 0.0
  %3563 = vmatprep.subr.mxu0 0.0
  %3564 = vmatpush2.msra.mxu0 0.0
  %3565 = vmatprep.subr.mxu0 0.0
  %3566 = vmatpush2.msra.mxu0 0.0
  %3567 = vmatprep.subr.mxu0 0.0
  %3568 = vmatpush2.msra.mxu0 0.0
  %3569 = vmatprep.subr.mxu0 0.0
  %3570 = vmatpush2.msra.mxu0 0.0
  %3571 = vmatprep.subr.mxu0 0.0
  %3572 = vmatpush2.msra.mxu0 0.0
  %3573 = vmatprep.subr.mxu0 0.0
  %3574 = vmatpush2.msra.mxu0 0.0
  %3575 = vmatprep.subr.mxu0 0.0
  %3576 = vmatpush2.msra.mxu0 0.0
  %3577 = vmatprep.subr.mxu0 0.0
  %3578 = vmatpush2.msra.mxu0 0.0
  %3579 = vmatprep.subr.mxu0 0.0
  %3580 = vmatpush2.msra.mxu0 0.0
  %3581 = vmatprep.subr.mxu0 0.0
  %3582 = vmatpush2.msra.mxu0 0.0
  %3583 = vmatprep.subr.mxu0 0.0
  %3584 = vmatpush2.msra.mxu0 0.0
  %3585 = vmatprep.mubr.f32.mxu0 0.0
  %3586 = vmatmul.mubr.f32.gmra.mxu0 %v3123
  %v3587 = vpop.f32.mrf.mxu0
  %v3588 = vadd.f32 0.0, %v3587
  %v3589 = vpop.f32.mrf.mxu0
  %v3590 = vadd.f32 0.0, %v3589
  %3591 = vdwg.mxu0
  %v3592 = vadd.f32 %v3446, %v3517
  %v3593 = vadd.f32 %v3447, %v3519
  %v3594 = vadd.f32 %v3448, %v3588
  %v3595 = vadd.f32 %v3449, %v3590
  %v3596 = vadd.f32 %v3592, %v303
  %v3597 = vadd.f32 %v3593, %v307
  %v3598 = vadd.f32 %v3594, %v311
  %v3599 = vadd.f32 %v3595, %v315
  %v3600 = vtanh.pop %v3596
  %v3601 = vtanh.pop %v3597
  %v3602 = vtanh.pop %v3598
  %v3603 = vtanh.pop %v3599
  %v3604 = vmul.f32 %v3600, %v49
  %v3605 = vmul.f32 %v3601, %v50
  %v3606 = vmul.f32 %v3602, %v51
  %v3607 = vmul.f32 %v3603, %v52
  %v3608 = vadd.f32 %v3604, %v53
  %v3609 = vadd.f32 %v3605, %v54
  %v3610 = vadd.f32 %v3606, %v55
  %v3611 = vadd.f32 %v3607, %v56
  %v3612 = vmul.f32 %v3609, %v3121
  %v3613 = vmul.f32 %v3608, %v3610
  %v3614 = vadd.f32 %v3612, %v3613
  %v3615 = vtanh.pop %v3614
  %v3616 = vmul.f32 %v3611, %v3615
  %3617 = vmatprep.subr.mxu0 %v577
  %3618 = vmatpush1.msra.mxu0 %v576
  %3619 = vmatprep.subr.mxu0 %v573
  %3620 = vmatpush1.msra.mxu0 %v572
  %3621 = vmatprep.subr.mxu0 %v569
  %3622 = vmatpush1.msra.mxu0 %v568
  %3623 = vmatprep.subr.mxu0 %v565
  %3624 = vmatpush1.msra.mxu0 %v564
  %3625 = vmatprep.subr.mxu0 %v561
  %3626 = vmatpush1.msra.mxu0 %v560
  %3627 = vmatprep.subr.mxu0 %v557
  %3628 = vmatpush1.msra.mxu0 %v556
  %3629 = vmatprep.subr.mxu0 %v553
  %3630 = vmatpush1.msra.mxu0 %v552
  %3631 = vmatprep.subr.mxu0 %v549
  %3632 = vmatpush1.msra.mxu0 %v548
  %3633 = vmatprep.subr.mxu0 %v545
  %3634 = vmatpush1.msra.mxu0 %v544
  %3635 = vmatprep.subr.mxu0 %v541
  %3636 = vmatpush1.msra.mxu0 %v540
  %3637 = vmatprep.subr.mxu0 %v537
  %3638 = vmatpush1.msra.mxu0 %v536
  %3639 = vmatprep.subr.mxu0 %v533
  %3640 = vmatpush1.msra.mxu0 %v532
  %3641 = vmatprep.subr.mxu0 %v529
  %3642 = vmatpush1.msra.mxu0 %v528
  %3643 = vmatprep.subr.mxu0 %v525
  %3644 = vmatpush1.msra.mxu0 %v524
  %3645 = vmatprep.subr.mxu0 %v521
  %3646 = vmatpush1.msra.mxu0 %v520
  %3647 = vmatprep.subr.mxu0 %v517
  %3648 = vmatpush1.msra.mxu0 %v516
  %3649 = vmatprep.subr.mxu0 %v641
  %3650 = vmatpush2.msra.mxu0 %v640
  %3651 = vmatprep.subr.mxu0 %v637
  %3652 = vmatpush2.msra.mxu0 %v636
  %3653 = vmatprep.subr.mxu0 %v633
  %3654 = vmatpush2.msra.mxu0 %v632
  %3655 = vmatprep.subr.mxu0 %v629
  %3656 = vmatpush2.msra.mxu0 %v628
  %3657 = vmatprep.subr.mxu0 %v625
  %3658 = vmatpush2.msra.mxu0 %v624
  %3659 = vmatprep.subr.mxu0 %v621
  %3660 = vmatpush2.msra.mxu0 %v620
  %3661 = vmatprep.subr.mxu0 %v617
  %3662 = vmatpush2.msra.mxu0 %v616
  %3663 = vmatprep.subr.mxu0 %v613
  %3664 = vmatpush2.msra.mxu0 %v612
  %3665 = vmatprep.subr.mxu0 %v609
  %3666 = vmatpush2.msra.mxu0 %v608
  %3667 = vmatprep.subr.mxu0 %v605
  %3668 = vmatpush2.msra.mxu0 %v604
  %3669 = vmatprep.subr.mxu0 %v601
  %3670 = vmatpush2.msra.mxu0 %v600
  %3671 = vmatprep.subr.mxu0 %v597
  %3672 = vmatpush2.msra.mxu0 %v596
  %3673 = vmatprep.subr.mxu0 %v593
  %3674 = vmatpush2.msra.mxu0 %v592
  %3675 = vmatprep.subr.mxu0 %v589
  %3676 = vmatpush2.msra.mxu0 %v588
  %3677 = vmatprep.subr.mxu0 %v585
  %3678 = vmatpush2.msra.mxu0 %v584
  %3679 = vmatprep.subr.mxu0 %v581
  %3680 = vmatpush2.msra.mxu0 %v580
  %3681 = vmatprep.mubr.f32.mxu0 %v3282
  %3682 = vmatmul.mubr.f32.gmra.mxu0 %v3123
  %v3683 = vpop.f32.mrf.mxu0
  %v3684 = vadd.f32 %v650, %v3683
  %v3685 = vpop.f32.mrf.mxu0
  %v3686 = vadd.f32 %v654, %v3685
  %3687 = vdwg.mxu0
  %3688 = vmatprep.subr.mxu0 %v579
  %3689 = vmatpush1.msra.mxu0 %v578
  %3690 = vmatprep.subr.mxu0 %v575
  %3691 = vmatpush1.msra.mxu0 %v574
  %3692 = vmatprep.subr.mxu0 %v571
  %3693 = vmatpush1.msra.mxu0 %v570
  %3694 = vmatprep.subr.mxu0 %v567
  %3695 = vmatpush1.msra.mxu0 %v566
  %3696 = vmatprep.subr.mxu0 %v563
  %3697 = vmatpush1.msra.mxu0 %v562
  %3698 = vmatprep.subr.mxu0 %v559
  %3699 = vmatpush1.msra.mxu0 %v558
  %3700 = vmatprep.subr.mxu0 %v555
  %3701 = vmatpush1.msra.mxu0 %v554
  %3702 = vmatprep.subr.mxu0 %v551
  %3703 = vmatpush1.msra.mxu0 %v550
  %3704 = vmatprep.subr.mxu0 %v547
  %3705 = vmatpush1.msra.mxu0 %v546
  %3706 = vmatprep.subr.mxu0 %v543
  %3707 = vmatpush1.msra.mxu0 %v542
  %3708 = vmatprep.subr.mxu0 %v539
  %3709 = vmatpush1.msra.mxu0 %v538
  %3710 = vmatprep.subr.mxu0 %v535
  %3711 = vmatpush1.msra.mxu0 %v534
  %3712 = vmatprep.subr.mxu0 %v531
  %3713 = vmatpush1.msra.mxu0 %v530
  %3714 = vmatprep.subr.mxu0 %v527
  %3715 = vmatpush1.msra.mxu0 %v526
  %3716 = vmatprep.subr.mxu0 %v523
  %3717 = vmatpush1.msra.mxu0 %v522
  %3718 = vmatprep.subr.mxu0 %v519
  %3719 = vmatpush1.msra.mxu0 %v518
  %3720 = vmatprep.subr.mxu0 %v643
  %3721 = vmatpush2.msra.mxu0 %v642
  %3722 = vmatprep.subr.mxu0 %v639
  %3723 = vmatpush2.msra.mxu0 %v638
  %3724 = vmatprep.subr.mxu0 %v635
  %3725 = vmatpush2.msra.mxu0 %v634
  %3726 = vmatprep.subr.mxu0 %v631
  %3727 = vmatpush2.msra.mxu0 %v630
  %3728 = vmatprep.subr.mxu0 %v627
  %3729 = vmatpush2.msra.mxu0 %v626
  %3730 = vmatprep.subr.mxu0 %v623
  %3731 = vmatpush2.msra.mxu0 %v622
  %3732 = vmatprep.subr.mxu0 %v619
  %3733 = vmatpush2.msra.mxu0 %v618
  %3734 = vmatprep.subr.mxu0 %v615
  %3735 = vmatpush2.msra.mxu0 %v614
  %3736 = vmatprep.subr.mxu0 %v611
  %3737 = vmatpush2.msra.mxu0 %v610
  %3738 = vmatprep.subr.mxu0 %v607
  %3739 = vmatpush2.msra.mxu0 %v606
  %3740 = vmatprep.subr.mxu0 %v603
  %3741 = vmatpush2.msra.mxu0 %v602
  %3742 = vmatprep.subr.mxu0 %v599
  %3743 = vmatpush2.msra.mxu0 %v598
  %3744 = vmatprep.subr.mxu0 %v595
  %3745 = vmatpush2.msra.mxu0 %v594
  %3746 = vmatprep.subr.mxu0 %v591
  %3747 = vmatpush2.msra.mxu0 %v590
  %3748 = vmatprep.subr.mxu0 %v587
  %3749 = vmatpush2.msra.mxu0 %v586
  %3750 = vmatprep.subr.mxu0 %v583
  %3751 = vmatpush2.msra.mxu0 %v582
  %3752 = vmatprep.mubr.f32.mxu0 %v3282
  %3753 = vmatmul.mubr.f32.gmra.mxu0 %v3123
  %v3754 = vpop.f32.mrf.mxu0
  %v3755 = vadd.f32 %v658, %v3754
  %v3756 = vpop.f32.mrf.mxu0
  %v3757 = vadd.f32 %v662, %v3756
  %3758 = vdwg.mxu0
  %v3759 = vtanh.pop %v3684
  %v3760 = vtanh.pop %v3686
  %v3761 = vtanh.pop %v3755
  %v3762 = vtanh.pop %v3757
  %v3763 = vmul.f32 %v3759, %v49
  %v3764 = vmul.f32 %v3760, %v50
  %v3765 = vmul.f32 %v3761, %v51
  %v3766 = vmul.f32 %v3762, %v52
  %v3767 = vadd.f32 %v3763, %v53
  %v3768 = vadd.f32 %v3764, %v54
  %v3769 = vadd.f32 %v3765, %v55
  %v3770 = vadd.f32 %v3766, %v56
  %v3771 = vmul.f32 %v3768, %v3280
  %v3772 = vmul.f32 %v3767, %v3769
  %v3773 = vadd.f32 %v3771, %v3772
  %v3774 = vtanh.pop %v3773
  %v3775 = vmul.f32 %v3770, %v3774
  %3776 = vmatprep.subr.mxu0 %v1221
  %3777 = vmatpush1.msra.mxu0 %v1220
  %3778 = vmatprep.subr.mxu0 %v1217
  %3779 = vmatpush1.msra.mxu0 %v1216
  %3780 = vmatprep.subr.mxu0 %v1213
  %3781 = vmatpush1.msra.mxu0 %v1212
  %3782 = vmatprep.subr.mxu0 %v1209
  %3783 = vmatpush1.msra.mxu0 %v1208
  %3784 = vmatprep.subr.mxu0 %v1205
  %3785 = vmatpush1.msra.mxu0 %v1204
  %3786 = vmatprep.subr.mxu0 %v1201
  %3787 = vmatpush1.msra.mxu0 %v1200
  %3788 = vmatprep.subr.mxu0 %v1197
  %3789 = vmatpush1.msra.mxu0 %v1196
  %3790 = vmatprep.subr.mxu0 %v1193
  %3791 = vmatpush1.msra.mxu0 %v1192
  %3792 = vmatprep.subr.mxu0 %v1189
  %3793 = vmatpush1.msra.mxu0 %v1188
  %3794 = vmatprep.subr.mxu0 %v1185
  %3795 = vmatpush1.msra.mxu0 %v1184
  %3796 = vmatprep.subr.mxu0 %v1181
  %3797 = vmatpush1.msra.mxu0 %v1180
  %3798 = vmatprep.subr.mxu0 %v1177
  %3799 = vmatpush1.msra.mxu0 %v1176
  %3800 = vmatprep.subr.mxu0 %v1173
  %3801 = vmatpush1.msra.mxu0 %v1172
  %3802 = vmatprep.subr.mxu0 %v1169
  %3803 = vmatpush1.msra.mxu0 %v1168
  %3804 = vmatprep.subr.mxu0 %v1165
  %3805 = vmatpush1.msra.mxu0 %v1164
  %3806 = vmatprep.subr.mxu0 %v1161
  %3807 = vmatpush1.msra.mxu0 %v1160
  %3808 = vmatprep.subr.mxu0 %v1285
  %3809 = vmatpush2.msra.mxu0 %v1284
  %3810 = vmatprep.subr.mxu0 %v1281
  %3811 = vmatpush2.msra.mxu0 %v1280
  %3812 = vmatprep.subr.mxu0 %v1277
  %3813 = vmatpush2.msra.mxu0 %v1276
  %3814 = vmatprep.subr.mxu0 %v1273
  %3815 = vmatpush2.msra.mxu0 %v1272
  %3816 = vmatprep.subr.mxu0 %v1269
  %3817 = vmatpush2.msra.mxu0 %v1268
  %3818 = vmatprep.subr.mxu0 %v1265
  %3819 = vmatpush2.msra.mxu0 %v1264
  %3820 = vmatprep.subr.mxu0 %v1261
  %3821 = vmatpush2.msra.mxu0 %v1260
  %3822 = vmatprep.subr.mxu0 %v1257
  %3823 = vmatpush2.msra.mxu0 %v1256
  %3824 = vmatprep.subr.mxu0 %v1253
  %3825 = vmatpush2.msra.mxu0 %v1252
  %3826 = vmatprep.subr.mxu0 %v1249
  %3827 = vmatpush2.msra.mxu0 %v1248
  %3828 = vmatprep.subr.mxu0 %v1245
  %3829 = vmatpush2.msra.mxu0 %v1244
  %3830 = vmatprep.subr.mxu0 %v1241
  %3831 = vmatpush2.msra.mxu0 %v1240
  %3832 = vmatprep.subr.mxu0 %v1237
  %3833 = vmatpush2.msra.mxu0 %v1236
  %3834 = vmatprep.subr.mxu0 %v1233
  %3835 = vmatpush2.msra.mxu0 %v1232
  %3836 = vmatprep.subr.mxu0 %v1229
  %3837 = vmatpush2.msra.mxu0 %v1228
  %3838 = vmatprep.subr.mxu0 %v1225
  %3839 = vmatpush2.msra.mxu0 %v1224
  %3840 = vmatprep.mubr.f32.mxu0 %v3441
  %3841 = vmatmul.mubr.f32.gmra.mxu0 %v3282
  %v3842 = vpop.f32.mrf.mxu0
  %v3843 = vadd.f32 %v1294, %v3842
  %v3844 = vpop.f32.mrf.mxu0
  %v3845 = vadd.f32 %v1298, %v3844
  %3846 = vdwg.mxu0
  %3847 = vmatprep.subr.mxu0 %v1223
  %3848 = vmatpush1.msra.mxu0 %v1222
  %3849 = vmatprep.subr.mxu0 %v1219
  %3850 = vmatpush1.msra.mxu0 %v1218
  %3851 = vmatprep.subr.mxu0 %v1215
  %3852 = vmatpush1.msra.mxu0 %v1214
  %3853 = vmatprep.subr.mxu0 %v1211
  %3854 = vmatpush1.msra.mxu0 %v1210
  %3855 = vmatprep.subr.mxu0 %v1207
  %3856 = vmatpush1.msra.mxu0 %v1206
  %3857 = vmatprep.subr.mxu0 %v1203
  %3858 = vmatpush1.msra.mxu0 %v1202
  %3859 = vmatprep.subr.mxu0 %v1199
  %3860 = vmatpush1.msra.mxu0 %v1198
  %3861 = vmatprep.subr.mxu0 %v1195
  %3862 = vmatpush1.msra.mxu0 %v1194
  %3863 = vmatprep.subr.mxu0 %v1191
  %3864 = vmatpush1.msra.mxu0 %v1190
  %3865 = vmatprep.subr.mxu0 %v1187
  %3866 = vmatpush1.msra.mxu0 %v1186
  %3867 = vmatprep.subr.mxu0 %v1183
  %3868 = vmatpush1.msra.mxu0 %v1182
  %3869 = vmatprep.subr.mxu0 %v1179
  %3870 = vmatpush1.msra.mxu0 %v1178
  %3871 = vmatprep.subr.mxu0 %v1175
  %3872 = vmatpush1.msra.mxu0 %v1174
  %3873 = vmatprep.subr.mxu0 %v1171
  %3874 = vmatpush1.msra.mxu0 %v1170
  %3875 = vmatprep.subr.mxu0 %v1167
  %3876 = vmatpush1.msra.mxu0 %v1166
  %3877 = vmatprep.subr.mxu0 %v1163
  %3878 = vmatpush1.msra.mxu0 %v1162
  %3879 = vmatprep.subr.mxu0 %v1287
  %3880 = vmatpush2.msra.mxu0 %v1286
  %3881 = vmatprep.subr.mxu0 %v1283
  %3882 = vmatpush2.msra.mxu0 %v1282
  %3883 = vmatprep.subr.mxu0 %v1279
  %3884 = vmatpush2.msra.mxu0 %v1278
  %3885 = vmatprep.subr.mxu0 %v1275
  %3886 = vmatpush2.msra.mxu0 %v1274
  %3887 = vmatprep.subr.mxu0 %v1271
  %3888 = vmatpush2.msra.mxu0 %v1270
  %3889 = vmatprep.subr.mxu0 %v1267
  %3890 = vmatpush2.msra.mxu0 %v1266
  %3891 = vmatprep.subr.mxu0 %v1263
  %3892 = vmatpush2.msra.mxu0 %v1262
  %3893 = vmatprep.subr.mxu0 %v1259
  %3894 = vmatpush2.msra.mxu0 %v1258
  %3895 = vmatprep.subr.mxu0 %v1255
  %3896 = vmatpush2.msra.mxu0 %v1254
  %3897 = vmatprep.subr.mxu0 %v1251
  %3898 = vmatpush2.msra.mxu0 %v1250
  %3899 = vmatprep.subr.mxu0 %v1247
  %3900 = vmatpush2.msra.mxu0 %v1246
  %3901 = vmatprep.subr.mxu0 %v1243
  %3902 = vmatpush2.msra.mxu0 %v1242
  %3903 = vmatprep.subr.mxu0 %v1239
  %3904 = vmatpush2.msra.mxu0 %v1238
  %3905 = vmatprep.subr.mxu0 %v1235
  %3906 = vmatpush2.msra.mxu0 %v1234
  %3907 = vmatprep.subr.mxu0 %v1231
  %3908 = vmatpush2.msra.mxu0 %v1230
  %3909 = vmatprep.subr.mxu0 %v1227
  %3910 = vmatpush2.msra.mxu0 %v1226
  %3911 = vmatprep.mubr.f32.mxu0 %v3441
  %3912 = vmatmul.mubr.f32.gmra.mxu0 %v3282
  %v3913 = vpop.f32.mrf.mxu0
  %v3914 = vadd.f32 %v1302, %v3913
  %v3915 = vpop.f32.mrf.mxu0
  %v3916 = vadd.f32 %v1306, %v3915
  %3917 = vdwg.mxu0
  %v3918 = vtanh.pop %v3843
  %v3919 = vtanh.pop %v3845
  %v3920 = vtanh.pop %v3914
  %v3921 = vtanh.pop %v3916
  %v3922 = vmul.f32 %v3918, %v49
  %v3923 = vmul.f32 %v3919, %v50
  %v3924 = vmul.f32 %v3920, %v51
  %v3925 = vmul.f32 %v3921, %v52
  %v3926 = vadd.f32 %v3922, %v53
  %v3927 = vadd.f32 %v3923, %v54
  %v3928 = vadd.f32 %v3924, %v55
  %v3929 = vadd.f32 %v3925, %v56
  %v3930 = vmul.f32 %v3927, %v3439
  %v3931 = vmul.f32 %v3926, %v3928
  %v3932 = vadd.f32 %v3930, %v3931
  %v3933 = vtanh.pop %v3932
  %v3934 = vmul.f32 %v3929, %v3933
  %3935 = vmatprep.subr.mxu0 %v577
  %3936 = vmatpush1.msra.mxu0 %v576
  %3937 = vmatprep.subr.mxu0 %v573
  %3938 = vmatpush1.msra.mxu0 %v572
  %3939 = vmatprep.subr.mxu0 %v569
  %3940 = vmatpush1.msra.mxu0 %v568
  %3941 = vmatprep.subr.mxu0 %v565
  %3942 = vmatpush1.msra.mxu0 %v564
  %3943 = vmatprep.subr.mxu0 %v561
  %3944 = vmatpush1.msra.mxu0 %v560
  %3945 = vmatprep.subr.mxu0 %v557
  %3946 = vmatpush1.msra.mxu0 %v556
  %3947 = vmatprep.subr.mxu0 %v553
  %3948 = vmatpush1.msra.mxu0 %v552
  %3949 = vmatprep.subr.mxu0 %v549
  %3950 = vmatpush1.msra.mxu0 %v548
  %3951 = vmatprep.subr.mxu0 %v545
  %3952 = vmatpush1.msra.mxu0 %v544
  %3953 = vmatprep.subr.mxu0 %v541
  %3954 = vmatpush1.msra.mxu0 %v540
  %3955 = vmatprep.subr.mxu0 %v537
  %3956 = vmatpush1.msra.mxu0 %v536
  %3957 = vmatprep.subr.mxu0 %v533
  %3958 = vmatpush1.msra.mxu0 %v532
  %3959 = vmatprep.subr.mxu0 %v529
  %3960 = vmatpush1.msra.mxu0 %v528
  %3961 = vmatprep.subr.mxu0 %v525
  %3962 = vmatpush1.msra.mxu0 %v524
  %3963 = vmatprep.subr.mxu0 %v521
  %3964 = vmatpush1.msra.mxu0 %v520
  %3965 = vmatprep.subr.mxu0 %v517
  %3966 = vmatpush1.msra.mxu0 %v516
  %3967 = vmatprep.subr.mxu0 %v641
  %3968 = vmatpush2.msra.mxu0 %v640
  %3969 = vmatprep.subr.mxu0 %v637
  %3970 = vmatpush2.msra.mxu0 %v636
  %3971 = vmatprep.subr.mxu0 %v633
  %3972 = vmatpush2.msra.mxu0 %v632
  %3973 = vmatprep.subr.mxu0 %v629
  %3974 = vmatpush2.msra.mxu0 %v628
  %3975 = vmatprep.subr.mxu0 %v625
  %3976 = vmatpush2.msra.mxu0 %v624
  %3977 = vmatprep.subr.mxu0 %v621
  %3978 = vmatpush2.msra.mxu0 %v620
  %3979 = vmatprep.subr.mxu0 %v617
  %3980 = vmatpush2.msra.mxu0 %v616
  %3981 = vmatprep.subr.mxu0 %v613
  %3982 = vmatpush2.msra.mxu0 %v612
  %3983 = vmatprep.subr.mxu0 %v609
  %3984 = vmatpush2.msra.mxu0 %v608
  %3985 = vmatprep.subr.mxu0 %v605
  %3986 = vmatpush2.msra.mxu0 %v604
  %3987 = vmatprep.subr.mxu0 %v601
  %3988 = vmatpush2.msra.mxu0 %v600
  %3989 = vmatprep.subr.mxu0 %v597
  %3990 = vmatpush2.msra.mxu0 %v596
  %3991 = vmatprep.subr.mxu0 %v593
  %3992 = vmatpush2.msra.mxu0 %v592
  %3993 = vmatprep.subr.mxu0 %v589
  %3994 = vmatpush2.msra.mxu0 %v588
  %3995 = vmatprep.subr.mxu0 %v585
  %3996 = vmatpush2.msra.mxu0 %v584
  %3997 = vmatprep.subr.mxu0 %v581
  %3998 = vmatpush2.msra.mxu0 %v580
  %3999 = vmatprep.mubr.f32.mxu0 %v3775
  %4000 = vmatmul.mubr.f32.gmra.mxu0 %v3616
  %v4001 = vpop.f32.mrf.mxu0
  %v4002 = vadd.f32 %v650, %v4001
  %v4003 = vpop.f32.mrf.mxu0
  %v4004 = vadd.f32 %v654, %v4003
  %4005 = vdwg.mxu0
  %4006 = vmatprep.subr.mxu0 %v579
  %4007 = vmatpush1.msra.mxu0 %v578
  %4008 = vmatprep.subr.mxu0 %v575
  %4009 = vmatpush1.msra.mxu0 %v574
  %4010 = vmatprep.subr.mxu0 %v571
  %4011 = vmatpush1.msra.mxu0 %v570
  %4012 = vmatprep.subr.mxu0 %v567
  %4013 = vmatpush1.msra.mxu0 %v566
  %4014 = vmatprep.subr.mxu0 %v563
  %4015 = vmatpush1.msra.mxu0 %v562
  %4016 = vmatprep.subr.mxu0 %v559
  %4017 = vmatpush1.msra.mxu0 %v558
  %4018 = vmatprep.subr.mxu0 %v555
  %4019 = vmatpush1.msra.mxu0 %v554
  %4020 = vmatprep.subr.mxu0 %v551
  %4021 = vmatpush1.msra.mxu0 %v550
  %4022 = vmatprep.subr.mxu0 %v547
  %4023 = vmatpush1.msra.mxu0 %v546
  %4024 = vmatprep.subr.mxu0 %v543
  %4025 = vmatpush1.msra.mxu0 %v542
  %4026 = vmatprep.subr.mxu0 %v539
  %4027 = vmatpush1.msra.mxu0 %v538
  %4028 = vmatprep.subr.mxu0 %v535
  %4029 = vmatpush1.msra.mxu0 %v534
  %4030 = vmatprep.subr.mxu0 %v531
  %4031 = vmatpush1.msra.mxu0 %v530
  %4032 = vmatprep.subr.mxu0 %v527
  %4033 = vmatpush1.msra.mxu0 %v526
  %4034 = vmatprep.subr.mxu0 %v523
  %4035 = vmatpush1.msra.mxu0 %v522
  %4036 = vmatprep.subr.mxu0 %v519
  %4037 = vmatpush1.msra.mxu0 %v518
  %4038 = vmatprep.subr.mxu0 %v643
  %4039 = vmatpush2.msra.mxu0 %v642
  %4040 = vmatprep.subr.mxu0 %v639
  %4041 = vmatpush2.msra.mxu0 %v638
  %4042 = vmatprep.subr.mxu0 %v635
  %4043 = vmatpush2.msra.mxu0 %v634
  %4044 = vmatprep.subr.mxu0 %v631
  %4045 = vmatpush2.msra.mxu0 %v630
  %4046 = vmatprep.subr.mxu0 %v627
  %4047 = vmatpush2.msra.mxu0 %v626
  %4048 = vmatprep.subr.mxu0 %v623
  %4049 = vmatpush2.msra.mxu0 %v622
  %4050 = vmatprep.subr.mxu0 %v619
  %4051 = vmatpush2.msra.mxu0 %v618
  %4052 = vmatprep.subr.mxu0 %v615
  %4053 = vmatpush2.msra.mxu0 %v614
  %4054 = vmatprep.subr.mxu0 %v611
  %4055 = vmatpush2.msra.mxu0 %v610
  %4056 = vmatprep.subr.mxu0 %v607
  %4057 = vmatpush2.msra.mxu0 %v606
  %4058 = vmatprep.subr.mxu0 %v603
  %4059 = vmatpush2.msra.mxu0 %v602
  %4060 = vmatprep.subr.mxu0 %v599
  %4061 = vmatpush2.msra.mxu0 %v598
  %4062 = vmatprep.subr.mxu0 %v595
  %4063 = vmatpush2.msra.mxu0 %v594
  %4064 = vmatprep.subr.mxu0 %v591
  %4065 = vmatpush2.msra.mxu0 %v590
  %4066 = vmatprep.subr.mxu0 %v587
  %4067 = vmatpush2.msra.mxu0 %v586
  %4068 = vmatprep.subr.mxu0 %v583
  %4069 = vmatpush2.msra.mxu0 %v582
  %4070 = vmatprep.mubr.f32.mxu0 %v3775
  %4071 = vmatmul.mubr.f32.gmra.mxu0 %v3616
  %v4072 = vpop.f32.mrf.mxu0
  %v4073 = vadd.f32 %v658, %v4072
  %v4074 = vpop.f32.mrf.mxu0
  %v4075 = vadd.f32 %v662, %v4074
  %4076 = vdwg.mxu0
  %v4077 = vtanh.pop %v4002
  %v4078 = vtanh.pop %v4004
  %v4079 = vtanh.pop %v4073
  %v4080 = vtanh.pop %v4075
  %v4081 = vmul.f32 %v4077, %v49
  %v4082 = vmul.f32 %v4078, %v50
  %v4083 = vmul.f32 %v4079, %v51
  %v4084 = vmul.f32 %v4080, %v52
  %v4085 = vadd.f32 %v4081, %v53
  %v4086 = vadd.f32 %v4082, %v54
  %v4087 = vadd.f32 %v4083, %v55
  %v4088 = vadd.f32 %v4084, %v56
  %v4089 = vmul.f32 %v4086, %v3773
  %v4090 = vmul.f32 %v4085, %v4087
  %v4091 = vadd.f32 %v4089, %v4090
  %v4092 = vtanh.pop %v4091
  %v4093 = vmul.f32 %v4088, %v4092
  %4094 = vmatprep.subr.mxu0 %v1221
  %4095 = vmatpush1.msra.mxu0 %v1220
  %4096 = vmatprep.subr.mxu0 %v1217
  %4097 = vmatpush1.msra.mxu0 %v1216
  %4098 = vmatprep.subr.mxu0 %v1213
  %4099 = vmatpush1.msra.mxu0 %v1212
  %4100 = vmatprep.subr.mxu0 %v1209
  %4101 = vmatpush1.msra.mxu0 %v1208
  %4102 = vmatprep.subr.mxu0 %v1205
  %4103 = vmatpush1.msra.mxu0 %v1204
  %4104 = vmatprep.subr.mxu0 %v1201
  %4105 = vmatpush1.msra.mxu0 %v1200
  %4106 = vmatprep.subr.mxu0 %v1197
  %4107 = vmatpush1.msra.mxu0 %v1196
  %4108 = vmatprep.subr.mxu0 %v1193
  %4109 = vmatpush1.msra.mxu0 %v1192
  %4110 = vmatprep.subr.mxu0 %v1189
  %4111 = vmatpush1.msra.mxu0 %v1188
  %4112 = vmatprep.subr.mxu0 %v1185
  %4113 = vmatpush1.msra.mxu0 %v1184
  %4114 = vmatprep.subr.mxu0 %v1181
  %4115 = vmatpush1.msra.mxu0 %v1180
  %4116 = vmatprep.subr.mxu0 %v1177
  %4117 = vmatpush1.msra.mxu0 %v1176
  %4118 = vmatprep.subr.mxu0 %v1173
  %4119 = vmatpush1.msra.mxu0 %v1172
  %4120 = vmatprep.subr.mxu0 %v1169
  %4121 = vmatpush1.msra.mxu0 %v1168
  %4122 = vmatprep.subr.mxu0 %v1165
  %4123 = vmatpush1.msra.mxu0 %v1164
  %4124 = vmatprep.subr.mxu0 %v1161
  %4125 = vmatpush1.msra.mxu0 %v1160
  %4126 = vmatprep.subr.mxu0 %v1285
  %4127 = vmatpush2.msra.mxu0 %v1284
  %4128 = vmatprep.subr.mxu0 %v1281
  %4129 = vmatpush2.msra.mxu0 %v1280
  %4130 = vmatprep.subr.mxu0 %v1277
  %4131 = vmatpush2.msra.mxu0 %v1276
  %4132 = vmatprep.subr.mxu0 %v1273
  %4133 = vmatpush2.msra.mxu0 %v1272
  %4134 = vmatprep.subr.mxu0 %v1269
  %4135 = vmatpush2.msra.mxu0 %v1268
  %4136 = vmatprep.subr.mxu0 %v1265
  %4137 = vmatpush2.msra.mxu0 %v1264
  %4138 = vmatprep.subr.mxu0 %v1261
  %4139 = vmatpush2.msra.mxu0 %v1260
  %4140 = vmatprep.subr.mxu0 %v1257
  %4141 = vmatpush2.msra.mxu0 %v1256
  %4142 = vmatprep.subr.mxu0 %v1253
  %4143 = vmatpush2.msra.mxu0 %v1252
  %4144 = vmatprep.subr.mxu0 %v1249
  %4145 = vmatpush2.msra.mxu0 %v1248
  %4146 = vmatprep.subr.mxu0 %v1245
  %4147 = vmatpush2.msra.mxu0 %v1244
  %4148 = vmatprep.subr.mxu0 %v1241
  %4149 = vmatpush2.msra.mxu0 %v1240
  %4150 = vmatprep.subr.mxu0 %v1237
  %4151 = vmatpush2.msra.mxu0 %v1236
  %4152 = vmatprep.subr.mxu0 %v1233
  %4153 = vmatpush2.msra.mxu0 %v1232
  %4154 = vmatprep.subr.mxu0 %v1229
  %4155 = vmatpush2.msra.mxu0 %v1228
  %4156 = vmatprep.subr.mxu0 %v1225
  %4157 = vmatpush2.msra.mxu0 %v1224
  %4158 = vmatprep.mubr.f32.mxu0 %v3934
  %4159 = vmatmul.mubr.f32.gmra.mxu0 %v3775
  %v4160 = vpop.f32.mrf.mxu0
  %v4161 = vadd.f32 %v1294, %v4160
  %v4162 = vpop.f32.mrf.mxu0
  %v4163 = vadd.f32 %v1298, %v4162
  %4164 = vdwg.mxu0
  %4165 = vmatprep.subr.mxu0 %v1223
  %4166 = vmatpush1.msra.mxu0 %v1222
  %4167 = vmatprep.subr.mxu0 %v1219
  %4168 = vmatpush1.msra.mxu0 %v1218
  %4169 = vmatprep.subr.mxu0 %v1215
  %4170 = vmatpush1.msra.mxu0 %v1214
  %4171 = vmatprep.subr.mxu0 %v1211
  %4172 = vmatpush1.msra.mxu0 %v1210
  %4173 = vmatprep.subr.mxu0 %v1207
  %4174 = vmatpush1.msra.mxu0 %v1206
  %4175 = vmatprep.subr.mxu0 %v1203
  %4176 = vmatpush1.msra.mxu0 %v1202
  %4177 = vmatprep.subr.mxu0 %v1199
  %4178 = vmatpush1.msra.mxu0 %v1198
  %4179 = vmatprep.subr.mxu0 %v1195
  %4180 = vmatpush1.msra.mxu0 %v1194
  %4181 = vmatprep.subr.mxu0 %v1191
  %4182 = vmatpush1.msra.mxu0 %v1190
  %4183 = vmatprep.subr.mxu0 %v1187
  %4184 = vmatpush1.msra.mxu0 %v1186
  %4185 = vmatprep.subr.mxu0 %v1183
  %4186 = vmatpush1.msra.mxu0 %v1182
  %4187 = vmatprep.subr.mxu0 %v1179
  %4188 = vmatpush1.msra.mxu0 %v1178
  %4189 = vmatprep.subr.mxu0 %v1175
  %4190 = vmatpush1.msra.mxu0 %v1174
  %4191 = vmatprep.subr.mxu0 %v1171
  %4192 = vmatpush1.msra.mxu0 %v1170
  %4193 = vmatprep.subr.mxu0 %v1167
  %4194 = vmatpush1.msra.mxu0 %v1166
  %4195 = vmatprep.subr.mxu0 %v1163
  %4196 = vmatpush1.msra.mxu0 %v1162
  %4197 = vmatprep.subr.mxu0 %v1287
  %4198 = vmatpush2.msra.mxu0 %v1286
  %4199 = vmatprep.subr.mxu0 %v1283
  %4200 = vmatpush2.msra.mxu0 %v1282
  %4201 = vmatprep.subr.mxu0 %v1279
  %4202 = vmatpush2.msra.mxu0 %v1278
  %4203 = vmatprep.subr.mxu0 %v1275
  %4204 = vmatpush2.msra.mxu0 %v1274
  %4205 = vmatprep.subr.mxu0 %v1271
  %4206 = vmatpush2.msra.mxu0 %v1270
  %4207 = vmatprep.subr.mxu0 %v1267
  %4208 = vmatpush2.msra.mxu0 %v1266
  %4209 = vmatprep.subr.mxu0 %v1263
  %4210 = vmatpush2.msra.mxu0 %v1262
  %4211 = vmatprep.subr.mxu0 %v1259
  %4212 = vmatpush2.msra.mxu0 %v1258
  %4213 = vmatprep.subr.mxu0 %v1255
  %4214 = vmatpush2.msra.mxu0 %v1254
  %4215 = vmatprep.subr.mxu0 %v1251
  %4216 = vmatpush2.msra.mxu0 %v1250
  %4217 = vmatprep.subr.mxu0 %v1247
  %4218 = vmatpush2.msra.mxu0 %v1246
  %4219 = vmatprep.subr.mxu0 %v1243
  %4220 = vmatpush2.msra.mxu0 %v1242
  %4221 = vmatprep.subr.mxu0 %v1239
  %4222 = vmatpush2.msra.mxu0 %v1238
  %4223 = vmatprep.subr.mxu0 %v1235
  %4224 = vmatpush2.msra.mxu0 %v1234
  %4225 = vmatprep.subr.mxu0 %v1231
  %4226 = vmatpush2.msra.mxu0 %v1230
  %4227 = vmatprep.subr.mxu0 %v1227
  %4228 = vmatpush2.msra.mxu0 %v1226
  %4229 = vmatprep.mubr.f32.mxu0 %v3934
  %4230 = vmatmul.mubr.f32.gmra.mxu0 %v3775
  %v4231 = vpop.f32.mrf.mxu0
  %v4232 = vadd.f32 %v1302, %v4231
  %v4233 = vpop.f32.mrf.mxu0
  %v4234 = vadd.f32 %v1306, %v4233
  %4235 = vdwg.mxu0
  %v4236 = vtanh.pop %v4161
  %v4237 = vtanh.pop %v4163
  %v4238 = vtanh.pop %v4232
  %v4239 = vtanh.pop %v4234
  %v4240 = vmul.f32 %v4236, %v49
  %v4241 = vmul.f32 %v4237, %v50
  %v4242 = vmul.f32 %v4238, %v51
  %v4243 = vmul.f32 %v4239, %v52
  %v4244 = vadd.f32 %v4240, %v53
  %v4245 = vadd.f32 %v4241, %v54
  %v4246 = vadd.f32 %v4242, %v55
  %v4247 = vadd.f32 %v4243, %v56
  %v4248 = vmul.f32 %v4245, %v3932
  %v4249 = vmul.f32 %v4244, %v4246
  %v4250 = vadd.f32 %v4248, %v4249
  %v4251 = vtanh.pop %v4250
  %v4252 = vmul.f32 %v4247, %v4251
  %4253 = vmatprep.subr.mxu0 %v1221
  %4254 = vmatpush1.msra.mxu0 %v1220
  %4255 = vmatprep.subr.mxu0 %v1217
  %4256 = vmatpush1.msra.mxu0 %v1216
  %4257 = vmatprep.subr.mxu0 %v1213
  %4258 = vmatpush1.msra.mxu0 %v1212
  %4259 = vmatprep.subr.mxu0 %v1209
  %4260 = vmatpush1.msra.mxu0 %v1208
  %4261 = vmatprep.subr.mxu0 %v1205
  %4262 = vmatpush1.msra.mxu0 %v1204
  %4263 = vmatprep.subr.mxu0 %v1201
  %4264 = vmatpush1.msra.mxu0 %v1200
  %4265 = vmatprep.subr.mxu0 %v1197
  %4266 = vmatpush1.msra.mxu0 %v1196
  %4267 = vmatprep.subr.mxu0 %v1193
  %4268 = vmatpush1.msra.mxu0 %v1192
  %4269 = vmatprep.subr.mxu0 %v1189
  %4270 = vmatpush1.msra.mxu0 %v1188
  %4271 = vmatprep.subr.mxu0 %v1185
  %4272 = vmatpush1.msra.mxu0 %v1184
  %4273 = vmatprep.subr.mxu0 %v1181
  %4274 = vmatpush1.msra.mxu0 %v1180
  %4275 = vmatprep.subr.mxu0 %v1177
  %4276 = vmatpush1.msra.mxu0 %v1176
  %4277 = vmatprep.subr.mxu0 %v1173
  %4278 = vmatpush1.msra.mxu0 %v1172
  %4279 = vmatprep.subr.mxu0 %v1169
  %4280 = vmatpush1.msra.mxu0 %v1168
  %4281 = vmatprep.subr.mxu0 %v1165
  %4282 = vmatpush1.msra.mxu0 %v1164
  %4283 = vmatprep.subr.mxu0 %v1161
  %4284 = vmatpush1.msra.mxu0 %v1160
  %4285 = vmatprep.subr.mxu0 %v1285
  %4286 = vmatpush2.msra.mxu0 %v1284
  %4287 = vmatprep.subr.mxu0 %v1281
  %4288 = vmatpush2.msra.mxu0 %v1280
  %4289 = vmatprep.subr.mxu0 %v1277
  %4290 = vmatpush2.msra.mxu0 %v1276
  %4291 = vmatprep.subr.mxu0 %v1273
  %4292 = vmatpush2.msra.mxu0 %v1272
  %4293 = vmatprep.subr.mxu0 %v1269
  %4294 = vmatpush2.msra.mxu0 %v1268
  %4295 = vmatprep.subr.mxu0 %v1265
  %4296 = vmatpush2.msra.mxu0 %v1264
  %4297 = vmatprep.subr.mxu0 %v1261
  %4298 = vmatpush2.msra.mxu0 %v1260
  %4299 = vmatprep.subr.mxu0 %v1257
  %4300 = vmatpush2.msra.mxu0 %v1256
  %4301 = vmatprep.subr.mxu0 %v1253
  %4302 = vmatpush2.msra.mxu0 %v1252
  %4303 = vmatprep.subr.mxu0 %v1249
  %4304 = vmatpush2.msra.mxu0 %v1248
  %4305 = vmatprep.subr.mxu0 %v1245
  %4306 = vmatpush2.msra.mxu0 %v1244
  %4307 = vmatprep.subr.mxu0 %v1241
  %4308 = vmatpush2.msra.mxu0 %v1240
  %4309 = vmatprep.subr.mxu0 %v1237
  %4310 = vmatpush2.msra.mxu0 %v1236
  %4311 = vmatprep.subr.mxu0 %v1233
  %4312 = vmatpush2.msra.mxu0 %v1232
  %4313 = vmatprep.subr.mxu0 %v1229
  %4314 = vmatpush2.msra.mxu0 %v1228
  %4315 = vmatprep.subr.mxu0 %v1225
  %4316 = vmatpush2.msra.mxu0 %v1224
  %4317 = vmatprep.mubr.f32.mxu0 %v4252
  %4318 = vmatmul.mubr.f32.gmra.mxu0 %v4093
  %v4319 = vpop.f32.mrf.mxu0
  %v4320 = vadd.f32 %v1294, %v4319
  %v4321 = vpop.f32.mrf.mxu0
  %v4322 = vadd.f32 %v1298, %v4321
  %4323 = vdwg.mxu0
  %4324 = vmatprep.subr.mxu0 %v1223
  %4325 = vmatpush1.msra.mxu0 %v1222
  %4326 = vmatprep.subr.mxu0 %v1219
  %4327 = vmatpush1.msra.mxu0 %v1218
  %4328 = vmatprep.subr.mxu0 %v1215
  %4329 = vmatpush1.msra.mxu0 %v1214
  %4330 = vmatprep.subr.mxu0 %v1211
  %4331 = vmatpush1.msra.mxu0 %v1210
  %4332 = vmatprep.subr.mxu0 %v1207
  %4333 = vmatpush1.msra.mxu0 %v1206
  %4334 = vmatprep.subr.mxu0 %v1203
  %4335 = vmatpush1.msra.mxu0 %v1202
  %4336 = vmatprep.subr.mxu0 %v1199
  %4337 = vmatpush1.msra.mxu0 %v1198
  %4338 = vmatprep.subr.mxu0 %v1195
  %4339 = vmatpush1.msra.mxu0 %v1194
  %4340 = vmatprep.subr.mxu0 %v1191
  %4341 = vmatpush1.msra.mxu0 %v1190
  %4342 = vmatprep.subr.mxu0 %v1187
  %4343 = vmatpush1.msra.mxu0 %v1186
  %4344 = vmatprep.subr.mxu0 %v1183
  %4345 = vmatpush1.msra.mxu0 %v1182
  %4346 = vmatprep.subr.mxu0 %v1179
  %4347 = vmatpush1.msra.mxu0 %v1178
  %4348 = vmatprep.subr.mxu0 %v1175
  %4349 = vmatpush1.msra.mxu0 %v1174
  %4350 = vmatprep.subr.mxu0 %v1171
  %4351 = vmatpush1.msra.mxu0 %v1170
  %4352 = vmatprep.subr.mxu0 %v1167
  %4353 = vmatpush1.msra.mxu0 %v1166
  %4354 = vmatprep.subr.mxu0 %v1163
  %4355 = vmatpush1.msra.mxu0 %v1162
  %4356 = vmatprep.subr.mxu0 %v1287
  %4357 = vmatpush2.msra.mxu0 %v1286
  %4358 = vmatprep.subr.mxu0 %v1283
  %4359 = vmatpush2.msra.mxu0 %v1282
  %4360 = vmatprep.subr.mxu0 %v1279
  %4361 = vmatpush2.msra.mxu0 %v1278
  %4362 = vmatprep.subr.mxu0 %v1275
  %4363 = vmatpush2.msra.mxu0 %v1274
  %4364 = vmatprep.subr.mxu0 %v1271
  %4365 = vmatpush2.msra.mxu0 %v1270
  %4366 = vmatprep.subr.mxu0 %v1267
  %4367 = vmatpush2.msra.mxu0 %v1266
  %4368 = vmatprep.subr.mxu0 %v1263
  %4369 = vmatpush2.msra.mxu0 %v1262
  %4370 = vmatprep.subr.mxu0 %v1259
  %4371 = vmatpush2.msra.mxu0 %v1258
  %4372 = vmatprep.subr.mxu0 %v1255
  %4373 = vmatpush2.msra.mxu0 %v1254
  %4374 = vmatprep.subr.mxu0 %v1251
  %4375 = vmatpush2.msra.mxu0 %v1250
  %4376 = vmatprep.subr.mxu0 %v1247
  %4377 = vmatpush2.msra.mxu0 %v1246
  %4378 = vmatprep.subr.mxu0 %v1243
  %4379 = vmatpush2.msra.mxu0 %v1242
  %4380 = vmatprep.subr.mxu0 %v1239
  %4381 = vmatpush2.msra.mxu0 %v1238
  %4382 = vmatprep.subr.mxu0 %v1235
  %4383 = vmatpush2.msra.mxu0 %v1234
  %4384 = vmatprep.subr.mxu0 %v1231
  %4385 = vmatpush2.msra.mxu0 %v1230
  %4386 = vmatprep.subr.mxu0 %v1227
  %4387 = vmatpush2.msra.mxu0 %v1226
  %4388 = vmatprep.mubr.f32.mxu0 %v4252
  %4389 = vmatmul.mubr.f32.gmra.mxu0 %v4093
  %v4390 = vpop.f32.mrf.mxu0
  %v4391 = vadd.f32 %v1302, %v4390
  %v4392 = vpop.f32.mrf.mxu0
  %v4393 = vadd.f32 %v1306, %v4392
  %4394 = vdwg.mxu0
  %v4395 = vtanh.pop %v4320
  %v4396 = vtanh.pop %v4322
  %v4397 = vtanh.pop %v4391
  %v4398 = vtanh.pop %v4393
  %v4399 = vmul.f32 %v4395, %v49
  %v4400 = vmul.f32 %v4396, %v50
  %v4401 = vmul.f32 %v4397, %v51
  %v4402 = vmul.f32 %v4398, %v52
  %v4403 = vadd.f32 %v4399, %v53
  %v4404 = vadd.f32 %v4400, %v54
  %v4405 = vadd.f32 %v4401, %v55
  %v4406 = vadd.f32 %v4402, %v56
  %v4407 = vmul.f32 %v4404, %v4250
  %v4408 = vmul.f32 %v4403, %v4405
  %v4409 = vadd.f32 %v4407, %v4408
  %v4410 = vtanh.pop %v4409
  %v4411 = vmul.f32 %v4406, %v4410
  %v4412 = vld [vmem:[%s6] sm:$0x1]
  %v4414 = vlaneseq
  %v4415 = vshrl.u32 %v4414, 7
  %v4416 = vsub.s32 0, %v4415
  %v4417 = vrot.slane %v4412, %v4416
  %v4419 = vmul.f32 %v1469, %v4417
  %4420 = vadd.xlane.f32.xlu0 %v4419
  %v4421 = vpop.xlane.xlu0 %4420
  %vm4422 = vcmp.eq.s32.totalorder %v33, 0
  %v4423 = vsel %vm4422, 1, 0
  %vm4424 = vcmp.eq.s32.totalorder %v4423, 1
  %v4425 = vsel %vm4424, %v4421, 0.0
  %v4426 = vadd.f32 %v4425, 0.0
  %v4427 = vmul.f32 %v1962, %v4417
  %4428 = vadd.xlane.f32.xlu0 %v4427
  %v4429 = vpop.xlane.xlu0 %4428
  %vm4430 = vcmp.eq.s32.totalorder %v33, 1
  %v4431 = vsel %vm4430, 1, 0
  %vm4432 = vcmp.eq.s32.totalorder %v4431, 1
  %v4433 = vsel %vm4432, %v4429, 0.0
  %v4434 = vadd.f32 %v4426, %v4433
  %v4435 = vmul.f32 %v2455, %v4417
  %4436 = vadd.xlane.f32.xlu0 %v4435
  %v4437 = vpop.xlane.xlu0 %4436
  %vm4438 = vcmp.eq.s32.totalorder %v33, 2
  %v4439 = vsel %vm4438, 1, 0
  %vm4440 = vcmp.eq.s32.totalorder %v4439, 1
  %v4441 = vsel %vm4440, %v4437, 0.0
  %v4442 = vadd.f32 %v4434, %v4441
  %v4443 = vmul.f32 %v2948, %v4417
  %4444 = vadd.xlane.f32.xlu0 %v4443
  %v4445 = vpop.xlane.xlu0 %4444
  %vm4446 = vcmp.eq.s32.totalorder %v33, 3
  %v4447 = vsel %vm4446, 1, 0
  %vm4448 = vcmp.eq.s32.totalorder %v4447, 1
  %v4449 = vsel %vm4448, %v4445, 0.0
  %v4450 = vadd.f32 %v4442, %v4449
  %v4451 = vmul.f32 %v3441, %v4417
  %4452 = vadd.xlane.f32.xlu0 %v4451
  %v4453 = vpop.xlane.xlu0 %4452
  %vm4454 = vcmp.eq.s32.totalorder %v33, 4
  %v4455 = vsel %vm4454, 1, 0
  %vm4456 = vcmp.eq.s32.totalorder %v4455, 1
  %v4457 = vsel %vm4456, %v4453, 0.0
  %v4458 = vadd.f32 %v4450, %v4457
  %v4459 = vmul.f32 %v3934, %v4417
  %4460 = vadd.xlane.f32.xlu0 %v4459
  %v4461 = vpop.xlane.xlu0 %4460
  %vm4462 = vcmp.eq.s32.totalorder %v33, 5
  %v4463 = vsel %vm4462, 1, 0
  %vm4464 = vcmp.eq.s32.totalorder %v4463, 1
  %v4465 = vsel %vm4464, %v4461, 0.0
  %v4466 = vadd.f32 %v4458, %v4465
  %v4467 = vmul.f32 %v4252, %v4417
  %4468 = vadd.xlane.f32.xlu0 %v4467
  %v4469 = vpop.xlane.xlu0 %4468
  %vm4470 = vcmp.eq.s32.totalorder %v33, 6
  %v4471 = vsel %vm4470, 1, 0
  %vm4472 = vcmp.eq.s32.totalorder %v4471, 1
  %v4473 = vsel %vm4472, %v4469, 0.0
  %v4474 = vadd.f32 %v4466, %v4473
  %v4475 = vmul.f32 %v4411, %v4417
  %4476 = vadd.xlane.f32.xlu0 %v4475
  %v4477 = vpop.xlane.xlu0 %4476
  %vm4478 = vcmp.eq.s32.totalorder %v33, 7
  %v4479 = vsel %vm4478, 1, 0
  %vm4480 = vcmp.eq.s32.totalorder %v4479, 1
  %v4481 = vsel %vm4480, %v4477, 0.0
  %v4482 = vadd.f32 %v4474, %v4481
  %v4483 = vld [vmem:[#allocation2] sm:$0x1]
  %v4485 = vlaneseq
  %v4486 = vshrl.u32 %v4485, 7
  %v4487 = vsub.s32 0, %v4486
  %v4488 = vrot.slane %v4483, %v4487
  %4489 = vset.pattern.permute.xlu0 0
  %4490 = vperm.xlu0 %4489, %v4488
  %v4491 = vpop.permute.xlu0 %4490
  %v4493 = vadd.f32 %v4482, %v4491
  %vm4494 = vcmask 64512
  %4495 = vst.msk [vmem:[%s8] sm:$0xff] %vm4494, %v4493
  // Predicated region
  $region34: #{sequence_one_channel5.1} parent=0 // pred_check
    _
  $region35: #{sequence_one_channel5.1} parent=0 // pred_check_branch
    %4497 = sbr.rel (0) target = $region37
  $region36: #{sequence_one_channel5.1} parent=0 // pred_region
    _
  $region37: #{sequence_one_channel5.1} parent=0 // pred_fallthru
    _
  // Predicated region
  $region38: #{sequence_one_channel5.1} parent=0 // pred_check
    _
  $region39: #{sequence_one_channel5.1} parent=0 // pred_check_branch
    %4499 = sbr.rel (0) target = $region41
  $region40: #{sequence_one_channel5.1} parent=0 // pred_region
    _
  $region41: #{sequence_one_channel5.1} parent=0 // pred_fallthru
    _

</llo_original>
